<compile_context>
chip_gen: v6e
topology: v6e:2x2x1
jax: 0.10.0
libtpu: 0.0.40
codegen_flags: <defaults>
</compile_context>

<pallas_src>
import functools
import math

import jax
import jax.numpy as jnp
from jax import lax
from jax.experimental import pallas as pl
from jax.experimental.pallas import tpu as pltpu


# ----------------------------------------------------------------------------
# in-kernel helpers (operate on VMEM-resident values)
# ----------------------------------------------------------------------------
def _layernorm(x, g, b, eps):
    """f32 LayerNorm over the last axis.  g/b are (1, D)."""
    mu = jnp.mean(x, axis=-1, keepdims=True)
    var = jnp.mean(jnp.square(x - mu), axis=-1, keepdims=True)
    return (x - mu) * lax.rsqrt(var + eps) * g + b


def _mha_heads(q, k, v, *, num_heads, bias=None):
    """Multi-head attention on (T, D) f32 q and (S, D) f32 k/v.

    Per-head matmuls feed the MXU in bf16; softmax is f32; the per-head outputs
    are concatenated so the caller gets one lane-dense (T, D) f32 result
    (single unmasked store downstream, no 32-lane partial stores).
    `bias` is an optional additive f32 (T, S) (causal and/or key-pad mask).
    The 1/sqrt(d_head) scale is already folded into the Q projection weights.
    """
    T, D = q.shape
    S = k.shape[0]
    d = D // num_heads
    outs = []
    for h in range(num_heads):                       # static unroll (H = 4)
        qh = q[:, h * d:(h + 1) * d].astype(jnp.bfloat16)
        kh = k[:, h * d:(h + 1) * d].astype(jnp.bfloat16)
        vh = v[:, h * d:(h + 1) * d].astype(jnp.bfloat16)
        # scores: contract last dims directly (no explicit kh.T materialization)
        s = lax.dot_general(qh, kh, (((1,), (1,)), ((), ())),
                            preferred_element_type=jnp.float32)       # (T, S)
        if bias is not None:
            s = s + bias
        m = jnp.max(s, axis=-1, keepdims=True)
        p = jnp.exp(s - m)
        denom = jnp.sum(p, axis=-1, keepdims=True)
        p = p * pl.reciprocal(denom, approx=True)
        outs.append(jnp.dot(p.astype(jnp.bfloat16), vh,
                            preferred_element_type=jnp.float32))       # (T, d)
    return jnp.concatenate(outs, axis=-1)            # (T, D) f32, lane-dense


# ----------------------------------------------------------------------------
# Fused encoder kernel: patch embed -> self-attn -> LN -> FFN -> LN
# grid = (B,), one batch element per (parallel) grid step.
# ----------------------------------------------------------------------------
def _encoder_kernel(x_ref, pw_ref, pb_ref,
                    wqkv_ref, bqkv_ref, wo_ref, bo_ref,
                    ln1g_ref, ln1b_ref,
                    ffw_ref, ffb_ref,
                    ln2g_ref, ln2b_ref,
                    out_ref, *, num_heads, eps):
    D = wo_ref.shape[0]
    x = x_ref[0]                                                        # (N, Kp) bf16

    # CNNEncoder patchify conv (as matmul) + bias + ReLU
    feat = jnp.dot(x, pw_ref[...], preferred_element_type=jnp.float32) + pb_ref[...]
    feat = jnp.maximum(feat, 0.0)                                       # (N, D) f32

    # self-attention (fused QKV matmul; splits are lane-aligned VMEM views)
    qkv = jnp.dot(feat.astype(jnp.bfloat16), wqkv_ref[...],
                  preferred_element_type=jnp.float32) + bqkv_ref[...]   # (N, 3D)
    q, k, v = qkv[:, :D], qkv[:, D:2 * D], qkv[:, 2 * D:]
    a = _mha_heads(q, k, v, num_heads=num_heads)                        # (N, D)
    a = jnp.dot(a.astype(jnp.bfloat16), wo_ref[...],
                preferred_element_type=jnp.float32) + bo_ref[...]

    h = _layernorm(feat + a, ln1g_ref[...], ln1b_ref[...], eps)         # post-LN

    # FFN + ReLU, then residual + LN
    f = jnp.dot(h.astype(jnp.bfloat16), ffw_ref[...],
                preferred_element_type=jnp.float32) + ffb_ref[...]
    f = jnp.maximum(f, 0.0)
    enc = _layernorm(h + f, ln2g_ref[...], ln2b_ref[...], eps)

    out_ref[0] = enc.astype(out_ref.dtype)                              # (N, D) bf16


def encoder_block(P, x_patches, *, num_heads, eps=1e-5):
    """x_patches: (B, N, Kp) bf16 -> (B, N, D) bf16."""
    B, N, Kp = x_patches.shape
    D = P['enc_wo'].shape[0]

    def w2(shape):
        return pl.BlockSpec(shape, lambda b: (0, 0))

    return pl.pallas_call(
        functools.partial(_encoder_kernel, num_heads=num_heads, eps=eps),
        out_shape=jax.ShapeDtypeStruct((B, N, D), jnp.bfloat16),
        grid=(B,),
        in_specs=[
            pl.BlockSpec((1, N, Kp), lambda b: (b, 0, 0)),
            w2((Kp, D)), w2((1, D)),
            w2((D, 3 * D)), w2((1, 3 * D)), w2((D, D)), w2((1, D)),
            w2((1, D)), w2((1, D)),
            w2((D, D)), w2((1, D)),
            w2((1, D)), w2((1, D)),
        ],
        out_specs=pl.BlockSpec((1, N, D), lambda b: (b, 0, 0)),
        compiler_params=pltpu.CompilerParams(dimension_semantics=("parallel",)),
    )(x_patches,
      P['patch_w'], P['patch_b'],
      P['enc_wqkv'], P['enc_bqkv'], P['enc_wo'], P['enc_bo'],
      P['enc_ln1_g'], P['enc_ln1_b'],
      P['enc_ff_w'], P['enc_ff_b'],
      P['enc_ln2_g'], P['enc_ln2_b'])


# ----------------------------------------------------------------------------
# Fused decoder kernel: masked self-attn -> LN -> cross-attn -> LN -> FFN -> LN
# -> vocab projection (logits).  grid = (B,), one batch element per step.
# ----------------------------------------------------------------------------
def _decoder_kernel(emb_ref, enc_ref, kb_ref,
                    s_wqkv_ref, s_bqkv_ref, s_wo_ref, s_bo_ref,
                    ln1g_ref, ln1b_ref,
                    c_wq_ref, c_bq_ref, c_wkv_ref, c_bkv_ref, c_wo_ref, c_bo_ref,
                    ln2g_ref, ln2b_ref,
                    ff1w_ref, ff1b_ref, ff2w_ref, ff2b_ref,
                    ln3g_ref, ln3b_ref,
                    ow_ref, ob_ref,
                    out_ref, *, num_heads, eps):
    D = s_wo_ref.shape[0]
    emb_bf = emb_ref[0]                                                 # (T, D) bf16
    emb = emb_bf.astype(jnp.float32)
    enc = enc_ref[0]                                                    # (N, D) bf16
    T = emb.shape[0]

    # causal mask built in-kernel + key-pad additive bias (kb: (1, T) over keys)
    row = lax.broadcasted_iota(jnp.int32, (T, T), 0)
    col = lax.broadcasted_iota(jnp.int32, (T, T), 1)
    bias = jnp.where(row >= col, 0.0, -1e9).astype(jnp.float32) + kb_ref[0]

    # ---- masked self-attention -------------------------------------------
    qkv = jnp.dot(emb_bf, s_wqkv_ref[...],
                  preferred_element_type=jnp.float32) + s_bqkv_ref[...]  # (T, 3D)
    q, k, v = qkv[:, :D], qkv[:, D:2 * D], qkv[:, 2 * D:]
    a1 = _mha_heads(q, k, v, num_heads=num_heads, bias=bias)             # (T, D)
    a1 = jnp.dot(a1.astype(jnp.bfloat16), s_wo_ref[...],
                 preferred_element_type=jnp.float32) + s_bo_ref[...]
    h1 = _layernorm(emb + a1, ln1g_ref[...], ln1b_ref[...], eps)

    # ---- cross-attention over encoder output ------------------------------
    qc = jnp.dot(h1.astype(jnp.bfloat16), c_wq_ref[...],
                 preferred_element_type=jnp.float32) + c_bq_ref[...]     # (T, D)
    kv = jnp.dot(enc, c_wkv_ref[...],
                 preferred_element_type=jnp.float32) + c_bkv_ref[...]    # (N, 2D)
    kc, vc = kv[:, :D], kv[:, D:]
    a2 = _mha_heads(qc, kc, vc, num_heads=num_heads)                     # (T, D)
    a2 = jnp.dot(a2.astype(jnp.bfloat16), c_wo_ref[...],
                 preferred_element_type=jnp.float32) + c_bo_ref[...]
    h2 = _layernorm(h1 + a2, ln2g_ref[...], ln2b_ref[...], eps)

    # ---- feed-forward ------------------------------------------------------
    f1 = jnp.dot(h2.astype(jnp.bfloat16), ff1w_ref[...],
                 preferred_element_type=jnp.float32) + ff1b_ref[...]
    f1 = jnp.maximum(f1, 0.0)
    f2 = jnp.dot(f1.astype(jnp.bfloat16), ff2w_ref[...],
                 preferred_element_type=jnp.float32) + ff2b_ref[...]
    h3 = _layernorm(h2 + f2, ln3g_ref[...], ln3b_ref[...], eps)

    # ---- vocab projection (logits), single lane-dense (T, V) store --------
    logits = jnp.dot(h3.astype(jnp.bfloat16), ow_ref[...],
                     preferred_element_type=jnp.float32) + ob_ref[...]
    out_ref[0] = logits.astype(out_ref.dtype)


def decoder_block(P, emb, enc, key_bias, *, num_heads, eps=1e-5):
    """emb: (B, T, D) bf16, enc: (B, N, D) bf16, key_bias: (B, 1, T) f32
       -> logits (B, T, V) f32."""
    B, T, D = emb.shape
    N = enc.shape[1]
    U = P['ff1_w'].shape[1]
    V = P['out_w'].shape[1]

    def w2(shape):
        return pl.BlockSpec(shape, lambda b: (0, 0))

    return pl.pallas_call(
        functools.partial(_decoder_kernel, num_heads=num_heads, eps=eps),
        out_shape=jax.ShapeDtypeStruct((B, T, V), jnp.float32),
        grid=(B,),
        in_specs=[
            pl.BlockSpec((1, T, D), lambda b: (b, 0, 0)),
            pl.BlockSpec((1, N, D), lambda b: (b, 0, 0)),
            pl.BlockSpec((1, 1, T), lambda b: (b, 0, 0)),
            w2((D, 3 * D)), w2((1, 3 * D)), w2((D, D)), w2((1, D)),
            w2((1, D)), w2((1, D)),
            w2((D, D)), w2((1, D)), w2((D, 2 * D)), w2((1, 2 * D)),
            w2((D, D)), w2((1, D)),
            w2((1, D)), w2((1, D)),
            w2((D, U)), w2((1, U)), w2((U, D)), w2((1, D)),
            w2((1, D)), w2((1, D)),
            w2((D, V)), w2((1, V)),
        ],
        out_specs=pl.BlockSpec((1, T, V), lambda b: (b, 0, 0)),
        compiler_params=pltpu.CompilerParams(dimension_semantics=("parallel",)),
    )(emb, enc, key_bias,
      P['dec_s_wqkv'], P['dec_s_bqkv'], P['dec_s_wo'], P['dec_s_bo'],
      P['dec_ln1_g'], P['dec_ln1_b'],
      P['dec_c_wq'], P['dec_c_bq'], P['dec_c_wkv'], P['dec_c_bkv'],
      P['dec_c_wo'], P['dec_c_bo'],
      P['dec_ln2_g'], P['dec_ln2_b'],
      P['ff1_w'], P['ff1_b'], P['ff2_w'], P['ff2_b'],
      P['dec_ln3_g'], P['dec_ln3_b'],
      P['out_w'], P['out_b'])


# ----------------------------------------------------------------------------
# Parameters (weights bf16 for the MXU, biases / LN params f32)
# ----------------------------------------------------------------------------
def init_params(key, glove, *, embed_dim, num_heads, units, vocab_size,
                max_len, patch, in_ch):
    D = embed_dim
    d_head = D // num_heads
    scale = 1.0 / math.sqrt(d_head)
    keys = iter(jax.random.split(key, 32))

    def w(fan_in, fan_out):
        return 0.02 * jax.random.normal(next(keys), (fan_in, fan_out), jnp.float32)

    def zeros_b(n):
        return jnp.zeros((1, n), jnp.float32)

    def ones_g(n):
        return jnp.ones((1, n), jnp.float32)

    P = {}
    # CNNEncoder: patchify conv (as matmul) + ReLU
    P['patch_w'] = w(in_ch * patch * patch, D).astype(jnp.bfloat16)
    P['patch_b'] = zeros_b(D)

    # TransformerEncoder (1 layer, post-LN); 1/sqrt(d_head) folded into Wq
    wq, wk, wv = w(D, D), w(D, D), w(D, D)
    P['enc_wqkv'] = jnp.concatenate([wq * scale, wk, wv], axis=1).astype(jnp.bfloat16)
    P['enc_bqkv'] = zeros_b(3 * D)
    P['enc_wo'] = w(D, D).astype(jnp.bfloat16)
    P['enc_bo'] = zeros_b(D)
    P['enc_ln1_g'] = ones_g(D); P['enc_ln1_b'] = zeros_b(D)
    P['enc_ff_w'] = w(D, D).astype(jnp.bfloat16)
    P['enc_ff_b'] = zeros_b(D)
    P['enc_ln2_g'] = ones_g(D); P['enc_ln2_b'] = zeros_b(D)

    # Embedding: token (glove) * sqrt(D) + learned positional
    P['tok_emb'] = glove.astype(jnp.float32)
    P['pos_emb'] = 0.02 * jax.random.normal(next(keys), (max_len, D), jnp.float32)

    # TransformerDecoder (1 layer)
    wq, wk, wv = w(D, D), w(D, D), w(D, D)
    P['dec_s_wqkv'] = jnp.concatenate([wq * scale, wk, wv], axis=1).astype(jnp.bfloat16)
    P['dec_s_bqkv'] = zeros_b(3 * D)
    P['dec_s_wo'] = w(D, D).astype(jnp.bfloat16)
    P['dec_s_bo'] = zeros_b(D)
    P['dec_ln1_g'] = ones_g(D); P['dec_ln1_b'] = zeros_b(D)

    wq, wk, wv = w(D, D), w(D, D), w(D, D)
    P['dec_c_wq'] = (wq * scale).astype(jnp.bfloat16)
    P['dec_c_bq'] = zeros_b(D)
    P['dec_c_wkv'] = jnp.concatenate([wk, wv], axis=1).astype(jnp.bfloat16)
    P['dec_c_bkv'] = zeros_b(2 * D)
    P['dec_c_wo'] = w(D, D).astype(jnp.bfloat16)
    P['dec_c_bo'] = zeros_b(D)
    P['dec_ln2_g'] = ones_g(D); P['dec_ln2_b'] = zeros_b(D)

    P['ff1_w'] = w(D, units).astype(jnp.bfloat16); P['ff1_b'] = zeros_b(units)
    P['ff2_w'] = w(units, D).astype(jnp.bfloat16); P['ff2_b'] = zeros_b(D)
    P['dec_ln3_g'] = ones_g(D); P['dec_ln3_b'] = zeros_b(D)

    P['out_w'] = w(D, vocab_size).astype(jnp.bfloat16)
    P['out_b'] = zeros_b(vocab_size)
    return P


# ----------------------------------------------------------------------------
# Forward (2 pallas_calls + thin JAX glue)
# ----------------------------------------------------------------------------
def image_caption_forward(params, images, inputs, *, num_heads, patch, pad_id):
    B, C, Him, Wim = images.shape
    Pz = patch
    D = params['pos_emb'].shape[-1]

    # --- CNNEncoder glue: im2col patchify, carried as bf16 ---
    x = images.reshape(B, C, Him // Pz, Pz, Wim // Pz, Pz)
    x = x.transpose(0, 2, 4, 1, 3, 5).reshape(
        B, (Him // Pz) * (Wim // Pz), C * Pz * Pz).astype(jnp.bfloat16)

    # --- fused encoder block: (B, N, D) bf16 ---
    enc = encoder_block(params, x, num_heads=num_heads)

    # --- Embedding glue: token gather (no Pallas gather) + positional, bf16 ---
    T = inputs.shape[1]
    tok = jnp.take(params['tok_emb'], inputs, axis=0) * math.sqrt(D)
    emb = (tok + params['pos_emb'][None, :T, :]).astype(jnp.bfloat16)

    # --- mask = inputs != <PAD>  -> tiny additive key bias (B, 1, T) ---
    key_bias = jnp.where(inputs != pad_id, 0.0, -1e9).astype(jnp.float32)
    key_bias = key_bias.reshape(B, 1, T)

    # --- fused decoder block + logits: (B, T, V) f32 ---
    return decoder_block(params, emb, enc, key_bias, num_heads=num_heads)


# ----------------------------------------------------------------------------
if __name__ == "__main__":
    # Small shapes consistent with the module's forward contract.
    B, C, HW = 2, 3, 32
    embed_dim, num_heads, units = 128, 4, 256     # D=128 keeps all outputs lane-dense
    vocab_size, max_len, T = 512, 16, 8
    patch = 8
    pad_id = 0   # w2i['<PAD>'] == 0

    key = jax.random.PRNGKey(0)
    k_img, k_tok, k_param, k_glove = jax.random.split(key, 4)

    images = jax.random.normal(k_img, (B, C, HW, HW), jnp.float32)
    inputs = jax.random.randint(k_tok, (B, T), 0, vocab_size, dtype=jnp.int32)
    glove = 0.1 * jax.random.normal(k_glove, (vocab_size, embed_dim), jnp.float32)

    params = init_params(k_param, glove, embed_dim=embed_dim, num_heads=num_heads,
                         units=units, vocab_size=vocab_size, max_len=max_len,
                         patch=patch, in_ch=C)

    fwd = jax.jit(functools.partial(image_caption_forward, num_heads=num_heads,
                                    patch=patch, pad_id=pad_id))
    out = fwd(params, images, inputs)
    out = jax.block_until_ready(out)
    assert out.shape == (B, T, vocab_size) and out.dtype == jnp.float32
    assert bool(jnp.all(jnp.isfinite(out)))
    # TODO(synk): original sub-modules (CNNEncoder / TransformerEncoder / Embedding /
    # TransformerDecoder) are not provided in the source; standard single-layer
    # post-LN definitions with a patchify CNN stem are used.
    print("KERNEL_OK")
</pallas_src>

<mosaic_0001>
module attributes {stable_mosaic.version = 11 : i64} {
  func.func @_encoder_kernel(%arg0: i32, %arg1: memref<1x16x192xbf16, #tpu.memory_space<vmem>>, %arg2: memref<192x128xbf16, #tpu.memory_space<vmem>>, %arg3: memref<1x128xf32, #tpu.memory_space<vmem>>, %arg4: memref<128x384xbf16, #tpu.memory_space<vmem>>, %arg5: memref<1x384xf32, #tpu.memory_space<vmem>>, %arg6: memref<128x128xbf16, #tpu.memory_space<vmem>>, %arg7: memref<1x128xf32, #tpu.memory_space<vmem>>, %arg8: memref<1x128xf32, #tpu.memory_space<vmem>>, %arg9: memref<1x128xf32, #tpu.memory_space<vmem>>, %arg10: memref<128x128xbf16, #tpu.memory_space<vmem>>, %arg11: memref<1x128xf32, #tpu.memory_space<vmem>>, %arg12: memref<1x128xf32, #tpu.memory_space<vmem>>, %arg13: memref<1x128xf32, #tpu.memory_space<vmem>>, %arg14: memref<1x16x128xbf16, #tpu.memory_space<vmem>>) attributes {dimension_semantics = [#tpu.dimension_semantics<parallel>], iteration_bounds = array<i64: 2>, scalar_prefetch = 0 : i64, scratch_operands = 0 : i64, tpu.core_type = #tpu.core_type<tc>, window_params = [{transform_indices = @transform_0, window_bounds = array<i64: 1, 16, 192>}, {pipeline_mode = #tpu.pipeline_mode<synchronous>, transform_indices = @transform_1, window_bounds = array<i64: 192, 128>}, {pipeline_mode = #tpu.pipeline_mode<synchronous>, transform_indices = @transform_2, window_bounds = array<i64: 1, 128>}, {pipeline_mode = #tpu.pipeline_mode<synchronous>, transform_indices = @transform_3, window_bounds = array<i64: 128, 384>}, {pipeline_mode = #tpu.pipeline_mode<synchronous>, transform_indices = @transform_4, window_bounds = array<i64: 1, 384>}, {pipeline_mode = #tpu.pipeline_mode<synchronous>, transform_indices = @transform_5, window_bounds = array<i64: 128, 128>}, {pipeline_mode = #tpu.pipeline_mode<synchronous>, transform_indices = @transform_6, window_bounds = array<i64: 1, 128>}, {pipeline_mode = #tpu.pipeline_mode<synchronous>, transform_indices = @transform_7, window_bounds = array<i64: 1, 128>}, {pipeline_mode = #tpu.pipeline_mode<synchronous>, transform_indices = @transform_8, window_bounds = array<i64: 1, 128>}, {pipeline_mode = #tpu.pipeline_mode<synchronous>, transform_indices = @transform_9, window_bounds = array<i64: 128, 128>}, {pipeline_mode = #tpu.pipeline_mode<synchronous>, transform_indices = @transform_10, window_bounds = array<i64: 1, 128>}, {pipeline_mode = #tpu.pipeline_mode<synchronous>, transform_indices = @transform_11, window_bounds = array<i64: 1, 128>}, {pipeline_mode = #tpu.pipeline_mode<synchronous>, transform_indices = @transform_12, window_bounds = array<i64: 1, 128>}, {transform_indices = @transform_13, window_bounds = array<i64: 1, 16, 128>}]} {
    %c0 = arith.constant 0 : index
    %c0_0 = arith.constant 0 : index
    %c0_1 = arith.constant 0 : index
    %0 = vector.load %arg1[%c0, %c0_0, %c0_1] : memref<1x16x192xbf16, #tpu.memory_space<vmem>>, vector<1x16x192xbf16>
    %1 = vector.shape_cast %0 : vector<1x16x192xbf16> to vector<16x192xbf16>
    %c0_2 = arith.constant 0 : index
    %c0_3 = arith.constant 0 : index
    %2 = vector.load %arg2[%c0_2, %c0_3] : memref<192x128xbf16, #tpu.memory_space<vmem>>, vector<192x128xbf16>
    %cst = arith.constant dense<0.000000e+00> : vector<16x128xf32>
    %3 = tpu.matmul %1, %2, %cst {dimension_numbers = #tpu.dot_dimension_numbers<[1], [0], [0], [1], [0, 0, 1, 1], [], []>} : vector<16x192xbf16>, vector<192x128xbf16>, vector<16x128xf32> -> vector<16x128xf32>
    %c0_4 = arith.constant 0 : index
    %c0_5 = arith.constant 0 : index
    %4 = vector.load %arg3[%c0_4, %c0_5] : memref<1x128xf32, #tpu.memory_space<vmem>>, vector<1x128xf32>
    %5 = vector.broadcast %4 : vector<1x128xf32> to vector<16x128xf32>
    %6 = arith.addf %3, %5 : vector<16x128xf32>
    %cst_6 = arith.constant 0.000000e+00 : f32
    %7 = vector.broadcast %cst_6 : f32 to vector<16x128xf32>
    %8 = arith.maximumf %6, %7 : vector<16x128xf32>
    %9 = arith.truncf %8 : vector<16x128xf32> to vector<16x128xbf16>
    %c0_7 = arith.constant 0 : index
    %c0_8 = arith.constant 0 : index
    %10 = vector.load %arg4[%c0_7, %c0_8] : memref<128x384xbf16, #tpu.memory_space<vmem>>, vector<128x384xbf16>
    %cst_9 = arith.constant dense<0.000000e+00> : vector<16x384xf32>
    %11 = tpu.matmul %9, %10, %cst_9 {dimension_numbers = #tpu.dot_dimension_numbers<[1], [0], [0], [1], [0, 0, 1, 1], [], []>} : vector<16x128xbf16>, vector<128x384xbf16>, vector<16x384xf32> -> vector<16x384xf32>
    %c0_10 = arith.constant 0 : index
    %c0_11 = arith.constant 0 : index
    %12 = vector.load %arg5[%c0_10, %c0_11] : memref<1x384xf32, #tpu.memory_space<vmem>>, vector<1x384xf32>
    %13 = vector.broadcast %12 : vector<1x384xf32> to vector<16x384xf32>
    %14 = arith.addf %11, %13 : vector<16x384xf32>
    %15 = vector.extract_strided_slice %14 {offsets = [0, 0], sizes = [16, 128], strides = [1, 1]} : vector<16x384xf32> to vector<16x128xf32>
    %16 = vector.extract_strided_slice %14 {offsets = [0, 128], sizes = [16, 128], strides = [1, 1]} : vector<16x384xf32> to vector<16x128xf32>
    %17 = vector.extract_strided_slice %14 {offsets = [0, 256], sizes = [16, 128], strides = [1, 1]} : vector<16x384xf32> to vector<16x128xf32>
    %18 = vector.extract_strided_slice %15 {offsets = [0, 0], sizes = [16, 32], strides = [1, 1]} : vector<16x128xf32> to vector<16x32xf32>
    %19 = arith.truncf %18 : vector<16x32xf32> to vector<16x32xbf16>
    %20 = vector.extract_strided_slice %16 {offsets = [0, 0], sizes = [16, 32], strides = [1, 1]} : vector<16x128xf32> to vector<16x32xf32>
    %21 = arith.truncf %20 : vector<16x32xf32> to vector<16x32xbf16>
    %22 = vector.extract_strided_slice %17 {offsets = [0, 0], sizes = [16, 32], strides = [1, 1]} : vector<16x128xf32> to vector<16x32xf32>
    %23 = arith.truncf %22 : vector<16x32xf32> to vector<16x32xbf16>
    %cst_12 = arith.constant dense<0.000000e+00> : vector<16x16xf32>
    %24 = tpu.matmul %19, %21, %cst_12 {dimension_numbers = #tpu.dot_dimension_numbers<[1], [1], [0], [0], [0, 0, 1, 0], [], []>} : vector<16x32xbf16>, vector<16x32xbf16>, vector<16x16xf32> -> vector<16x16xf32>
    %cst_13 = arith.constant dense<0xFF800000> : vector<16xf32>
    %25 = vector.multi_reduction <maximumf>, %24, %cst_13 [1] : vector<16x16xf32> to vector<16xf32>
    %26 = vector.shape_cast %25 : vector<16xf32> to vector<16x1xf32>
    %27 = vector.broadcast %26 : vector<16x1xf32> to vector<16x16xf32>
    %28 = arith.subf %24, %27 : vector<16x16xf32>
    %29 = math.exp %28 : vector<16x16xf32>
    %cst_14 = arith.constant dense<0.000000e+00> : vector<16xf32>
    %30 = vector.multi_reduction <add>, %29, %cst_14 [1] : vector<16x16xf32> to vector<16xf32>
    %31 = vector.shape_cast %30 : vector<16xf32> to vector<16x1xf32>
    %32 = tpu.reciprocal %31 {approx = true} : vector<16x1xf32> -> vector<16x1xf32>
    %33 = vector.broadcast %32 : vector<16x1xf32> to vector<16x16xf32>
    %34 = arith.mulf %29, %33 : vector<16x16xf32>
    %35 = arith.truncf %34 : vector<16x16xf32> to vector<16x16xbf16>
    %cst_15 = arith.constant dense<0.000000e+00> : vector<16x32xf32>
    %36 = tpu.matmul %35, %23, %cst_15 {dimension_numbers = #tpu.dot_dimension_numbers<[1], [0], [0], [1], [0, 0, 1, 1], [], []>} : vector<16x16xbf16>, vector<16x32xbf16>, vector<16x32xf32> -> vector<16x32xf32>
    %37 = vector.extract_strided_slice %15 {offsets = [0, 32], sizes = [16, 32], strides = [1, 1]} : vector<16x128xf32> to vector<16x32xf32>
    %38 = arith.truncf %37 : vector<16x32xf32> to vector<16x32xbf16>
    %39 = vector.extract_strided_slice %16 {offsets = [0, 32], sizes = [16, 32], strides = [1, 1]} : vector<16x128xf32> to vector<16x32xf32>
    %40 = arith.truncf %39 : vector<16x32xf32> to vector<16x32xbf16>
    %41 = vector.extract_strided_slice %17 {offsets = [0, 32], sizes = [16, 32], strides = [1, 1]} : vector<16x128xf32> to vector<16x32xf32>
    %42 = arith.truncf %41 : vector<16x32xf32> to vector<16x32xbf16>
    %cst_16 = arith.constant dense<0.000000e+00> : vector<16x16xf32>
    %43 = tpu.matmul %38, %40, %cst_16 {dimension_numbers = #tpu.dot_dimension_numbers<[1], [1], [0], [0], [0, 0, 1, 0], [], []>} : vector<16x32xbf16>, vector<16x32xbf16>, vector<16x16xf32> -> vector<16x16xf32>
    %cst_17 = arith.constant dense<0xFF800000> : vector<16xf32>
    %44 = vector.multi_reduction <maximumf>, %43, %cst_17 [1] : vector<16x16xf32> to vector<16xf32>
    %45 = vector.shape_cast %44 : vector<16xf32> to vector<16x1xf32>
    %46 = vector.broadcast %45 : vector<16x1xf32> to vector<16x16xf32>
    %47 = arith.subf %43, %46 : vector<16x16xf32>
    %48 = math.exp %47 : vector<16x16xf32>
    %cst_18 = arith.constant dense<0.000000e+00> : vector<16xf32>
    %49 = vector.multi_reduction <add>, %48, %cst_18 [1] : vector<16x16xf32> to vector<16xf32>
    %50 = vector.shape_cast %49 : vector<16xf32> to vector<16x1xf32>
    %51 = tpu.reciprocal %50 {approx = true} : vector<16x1xf32> -> vector<16x1xf32>
    %52 = vector.broadcast %51 : vector<16x1xf32> to vector<16x16xf32>
    %53 = arith.mulf %48, %52 : vector<16x16xf32>
    %54 = arith.truncf %53 : vector<16x16xf32> to vector<16x16xbf16>
    %cst_19 = arith.constant dense<0.000000e+00> : vector<16x32xf32>
    %55 = tpu.matmul %54, %42, %cst_19 {dimension_numbers = #tpu.dot_dimension_numbers<[1], [0], [0], [1], [0, 0, 1, 1], [], []>} : vector<16x16xbf16>, vector<16x32xbf16>, vector<16x32xf32> -> vector<16x32xf32>
    %56 = vector.extract_strided_slice %15 {offsets = [0, 64], sizes = [16, 32], strides = [1, 1]} : vector<16x128xf32> to vector<16x32xf32>
    %57 = arith.truncf %56 : vector<16x32xf32> to vector<16x32xbf16>
    %58 = vector.extract_strided_slice %16 {offsets = [0, 64], sizes = [16, 32], strides = [1, 1]} : vector<16x128xf32> to vector<16x32xf32>
    %59 = arith.truncf %58 : vector<16x32xf32> to vector<16x32xbf16>
    %60 = vector.extract_strided_slice %17 {offsets = [0, 64], sizes = [16, 32], strides = [1, 1]} : vector<16x128xf32> to vector<16x32xf32>
    %61 = arith.truncf %60 : vector<16x32xf32> to vector<16x32xbf16>
    %cst_20 = arith.constant dense<0.000000e+00> : vector<16x16xf32>
    %62 = tpu.matmul %57, %59, %cst_20 {dimension_numbers = #tpu.dot_dimension_numbers<[1], [1], [0], [0], [0, 0, 1, 0], [], []>} : vector<16x32xbf16>, vector<16x32xbf16>, vector<16x16xf32> -> vector<16x16xf32>
    %cst_21 = arith.constant dense<0xFF800000> : vector<16xf32>
    %63 = vector.multi_reduction <maximumf>, %62, %cst_21 [1] : vector<16x16xf32> to vector<16xf32>
    %64 = vector.shape_cast %63 : vector<16xf32> to vector<16x1xf32>
    %65 = vector.broadcast %64 : vector<16x1xf32> to vector<16x16xf32>
    %66 = arith.subf %62, %65 : vector<16x16xf32>
    %67 = math.exp %66 : vector<16x16xf32>
    %cst_22 = arith.constant dense<0.000000e+00> : vector<16xf32>
    %68 = vector.multi_reduction <add>, %67, %cst_22 [1] : vector<16x16xf32> to vector<16xf32>
    %69 = vector.shape_cast %68 : vector<16xf32> to vector<16x1xf32>
    %70 = tpu.reciprocal %69 {approx = true} : vector<16x1xf32> -> vector<16x1xf32>
    %71 = vector.broadcast %70 : vector<16x1xf32> to vector<16x16xf32>
    %72 = arith.mulf %67, %71 : vector<16x16xf32>
    %73 = arith.truncf %72 : vector<16x16xf32> to vector<16x16xbf16>
    %cst_23 = arith.constant dense<0.000000e+00> : vector<16x32xf32>
    %74 = tpu.matmul %73, %61, %cst_23 {dimension_numbers = #tpu.dot_dimension_numbers<[1], [0], [0], [1], [0, 0, 1, 1], [], []>} : vector<16x16xbf16>, vector<16x32xbf16>, vector<16x32xf32> -> vector<16x32xf32>
    %75 = vector.extract_strided_slice %15 {offsets = [0, 96], sizes = [16, 32], strides = [1, 1]} : vector<16x128xf32> to vector<16x32xf32>
    %76 = arith.truncf %75 : vector<16x32xf32> to vector<16x32xbf16>
    %77 = vector.extract_strided_slice %16 {offsets = [0, 96], sizes = [16, 32], strides = [1, 1]} : vector<16x128xf32> to vector<16x32xf32>
    %78 = arith.truncf %77 : vector<16x32xf32> to vector<16x32xbf16>
    %79 = vector.extract_strided_slice %17 {offsets = [0, 96], sizes = [16, 32], strides = [1, 1]} : vector<16x128xf32> to vector<16x32xf32>
    %80 = arith.truncf %79 : vector<16x32xf32> to vector<16x32xbf16>
    %cst_24 = arith.constant dense<0.000000e+00> : vector<16x16xf32>
    %81 = tpu.matmul %76, %78, %cst_24 {dimension_numbers = #tpu.dot_dimension_numbers<[1], [1], [0], [0], [0, 0, 1, 0], [], []>} : vector<16x32xbf16>, vector<16x32xbf16>, vector<16x16xf32> -> vector<16x16xf32>
    %cst_25 = arith.constant dense<0xFF800000> : vector<16xf32>
    %82 = vector.multi_reduction <maximumf>, %81, %cst_25 [1] : vector<16x16xf32> to vector<16xf32>
    %83 = vector.shape_cast %82 : vector<16xf32> to vector<16x1xf32>
    %84 = vector.broadcast %83 : vector<16x1xf32> to vector<16x16xf32>
    %85 = arith.subf %81, %84 : vector<16x16xf32>
    %86 = math.exp %85 : vector<16x16xf32>
    %cst_26 = arith.constant dense<0.000000e+00> : vector<16xf32>
    %87 = vector.multi_reduction <add>, %86, %cst_26 [1] : vector<16x16xf32> to vector<16xf32>
    %88 = vector.shape_cast %87 : vector<16xf32> to vector<16x1xf32>
    %89 = tpu.reciprocal %88 {approx = true} : vector<16x1xf32> -> vector<16x1xf32>
    %90 = vector.broadcast %89 : vector<16x1xf32> to vector<16x16xf32>
    %91 = arith.mulf %86, %90 : vector<16x16xf32>
    %92 = arith.truncf %91 : vector<16x16xf32> to vector<16x16xbf16>
    %cst_27 = arith.constant dense<0.000000e+00> : vector<16x32xf32>
    %93 = tpu.matmul %92, %80, %cst_27 {dimension_numbers = #tpu.dot_dimension_numbers<[1], [0], [0], [1], [0, 0, 1, 1], [], []>} : vector<16x16xbf16>, vector<16x32xbf16>, vector<16x32xf32> -> vector<16x32xf32>
    %94 = tpu.concatenate %36, %55, %74, %93 in 1 : vector<16x32xf32>, vector<16x32xf32>, vector<16x32xf32>, vector<16x32xf32> -> vector<16x128xf32>
    %95 = arith.truncf %94 : vector<16x128xf32> to vector<16x128xbf16>
    %c0_28 = arith.constant 0 : index
    %c0_29 = arith.constant 0 : index
    %96 = vector.load %arg6[%c0_28, %c0_29] : memref<128x128xbf16, #tpu.memory_space<vmem>>, vector<128x128xbf16>
    %cst_30 = arith.constant dense<0.000000e+00> : vector<16x128xf32>
    %97 = tpu.matmul %95, %96, %cst_30 {dimension_numbers = #tpu.dot_dimension_numbers<[1], [0], [0], [1], [0, 0, 1, 1], [], []>} : vector<16x128xbf16>, vector<128x128xbf16>, vector<16x128xf32> -> vector<16x128xf32>
    %c0_31 = arith.constant 0 : index
    %c0_32 = arith.constant 0 : index
    %98 = vector.load %arg7[%c0_31, %c0_32] : memref<1x128xf32, #tpu.memory_space<vmem>>, vector<1x128xf32>
    %99 = vector.broadcast %98 : vector<1x128xf32> to vector<16x128xf32>
    %100 = arith.addf %97, %99 : vector<16x128xf32>
    %101 = arith.addf %8, %100 : vector<16x128xf32>
    %c0_33 = arith.constant 0 : index
    %c0_34 = arith.constant 0 : index
    %102 = vector.load %arg8[%c0_33, %c0_34] : memref<1x128xf32, #tpu.memory_space<vmem>>, vector<1x128xf32>
    %c0_35 = arith.constant 0 : index
    %c0_36 = arith.constant 0 : index
    %103 = vector.load %arg9[%c0_35, %c0_36] : memref<1x128xf32, #tpu.memory_space<vmem>>, vector<1x128xf32>
    %cst_37 = arith.constant dense<0.000000e+00> : vector<16xf32>
    %104 = vector.multi_reduction <add>, %101, %cst_37 [1] : vector<16x128xf32> to vector<16xf32>
    %105 = vector.shape_cast %104 : vector<16xf32> to vector<16x1xf32>
    %cst_38 = arith.constant 1.280000e+02 : f32
    %106 = vector.broadcast %cst_38 : f32 to vector<16x1xf32>
    %107 = arith.divf %105, %106 : vector<16x1xf32>
    %108 = vector.broadcast %107 : vector<16x1xf32> to vector<16x128xf32>
    %109 = arith.subf %101, %108 : vector<16x128xf32>
    %110 = arith.mulf %109, %109 : vector<16x128xf32>
    %cst_39 = arith.constant dense<0.000000e+00> : vector<16xf32>
    %111 = vector.multi_reduction <add>, %110, %cst_39 [1] : vector<16x128xf32> to vector<16xf32>
    %112 = vector.shape_cast %111 : vector<16xf32> to vector<16x1xf32>
    %cst_40 = arith.constant 1.280000e+02 : f32
    %113 = vector.broadcast %cst_40 : f32 to vector<16x1xf32>
    %114 = arith.divf %112, %113 : vector<16x1xf32>
    %115 = vector.broadcast %107 : vector<16x1xf32> to vector<16x128xf32>
    %116 = arith.subf %101, %115 : vector<16x128xf32>
    %cst_41 = arith.constant 9.99999974E-6 : f32
    %117 = vector.broadcast %cst_41 : f32 to vector<16x1xf32>
    %118 = arith.addf %114, %117 : vector<16x1xf32>
    %119 = math.rsqrt %118 : vector<16x1xf32>
    %120 = vector.broadcast %119 : vector<16x1xf32> to vector<16x128xf32>
    %121 = arith.mulf %116, %120 : vector<16x128xf32>
    %122 = vector.broadcast %102 : vector<1x128xf32> to vector<16x128xf32>
    %123 = arith.mulf %121, %122 : vector<16x128xf32>
    %124 = vector.broadcast %103 : vector<1x128xf32> to vector<16x128xf32>
    %125 = arith.addf %123, %124 : vector<16x128xf32>
    %126 = arith.truncf %125 : vector<16x128xf32> to vector<16x128xbf16>
    %c0_42 = arith.constant 0 : index
    %c0_43 = arith.constant 0 : index
    %127 = vector.load %arg10[%c0_42, %c0_43] : memref<128x128xbf16, #tpu.memory_space<vmem>>, vector<128x128xbf16>
    %cst_44 = arith.constant dense<0.000000e+00> : vector<16x128xf32>
    %128 = tpu.matmul %126, %127, %cst_44 {dimension_numbers = #tpu.dot_dimension_numbers<[1], [0], [0], [1], [0, 0, 1, 1], [], []>} : vector<16x128xbf16>, vector<128x128xbf16>, vector<16x128xf32> -> vector<16x128xf32>
    %c0_45 = arith.constant 0 : index
    %c0_46 = arith.constant 0 : index
    %129 = vector.load %arg11[%c0_45, %c0_46] : memref<1x128xf32, #tpu.memory_space<vmem>>, vector<1x128xf32>
    %130 = vector.broadcast %129 : vector<1x128xf32> to vector<16x128xf32>
    %131 = arith.addf %128, %130 : vector<16x128xf32>
    %cst_47 = arith.constant 0.000000e+00 : f32
    %132 = vector.broadcast %cst_47 : f32 to vector<16x128xf32>
    %133 = arith.maximumf %131, %132 : vector<16x128xf32>
    %134 = arith.addf %125, %133 : vector<16x128xf32>
    %c0_48 = arith.constant 0 : index
    %c0_49 = arith.constant 0 : index
    %135 = vector.load %arg12[%c0_48, %c0_49] : memref<1x128xf32, #tpu.memory_space<vmem>>, vector<1x128xf32>
    %c0_50 = arith.constant 0 : index
    %c0_51 = arith.constant 0 : index
    %136 = vector.load %arg13[%c0_50, %c0_51] : memref<1x128xf32, #tpu.memory_space<vmem>>, vector<1x128xf32>
    %cst_52 = arith.constant dense<0.000000e+00> : vector<16xf32>
    %137 = vector.multi_reduction <add>, %134, %cst_52 [1] : vector<16x128xf32> to vector<16xf32>
    %138 = vector.shape_cast %137 : vector<16xf32> to vector<16x1xf32>
    %cst_53 = arith.constant 1.280000e+02 : f32
    %139 = vector.broadcast %cst_53 : f32 to vector<16x1xf32>
    %140 = arith.divf %138, %139 : vector<16x1xf32>
    %141 = vector.broadcast %140 : vector<16x1xf32> to vector<16x128xf32>
    %142 = arith.subf %134, %141 : vector<16x128xf32>
    %143 = arith.mulf %142, %142 : vector<16x128xf32>
    %cst_54 = arith.constant dense<0.000000e+00> : vector<16xf32>
    %144 = vector.multi_reduction <add>, %143, %cst_54 [1] : vector<16x128xf32> to vector<16xf32>
    %145 = vector.shape_cast %144 : vector<16xf32> to vector<16x1xf32>
    %cst_55 = arith.constant 1.280000e+02 : f32
    %146 = vector.broadcast %cst_55 : f32 to vector<16x1xf32>
    %147 = arith.divf %145, %146 : vector<16x1xf32>
    %148 = vector.broadcast %140 : vector<16x1xf32> to vector<16x128xf32>
    %149 = arith.subf %134, %148 : vector<16x128xf32>
    %cst_56 = arith.constant 9.99999974E-6 : f32
    %150 = vector.broadcast %cst_56 : f32 to vector<16x1xf32>
    %151 = arith.addf %147, %150 : vector<16x1xf32>
    %152 = math.rsqrt %151 : vector<16x1xf32>
    %153 = vector.broadcast %152 : vector<16x1xf32> to vector<16x128xf32>
    %154 = arith.mulf %149, %153 : vector<16x128xf32>
    %155 = vector.broadcast %135 : vector<1x128xf32> to vector<16x128xf32>
    %156 = arith.mulf %154, %155 : vector<16x128xf32>
    %157 = vector.broadcast %136 : vector<1x128xf32> to vector<16x128xf32>
    %158 = arith.addf %156, %157 : vector<16x128xf32>
    %159 = arith.truncf %158 : vector<16x128xf32> to vector<16x128xbf16>
    %c0_57 = arith.constant 0 : index
    %c0_58 = arith.constant 0 : index
    %c0_59 = arith.constant 0 : index
    %160 = vector.load %arg14[%c0_57, %c0_58, %c0_59] : memref<1x16x128xbf16, #tpu.memory_space<vmem>>, vector<1x16x128xbf16>
    %161 = vector.shape_cast %160 : vector<1x16x128xbf16> to vector<16x128xbf16>
    %162 = vector.shape_cast %159 : vector<16x128xbf16> to vector<1x16x128xbf16>
    tpu.vector_store %arg14[%c0_57, %c0_58, %c0_59], %162 {strides = array<i32>} : memref<1x16x128xbf16, #tpu.memory_space<vmem>>, vector<1x16x128xbf16>,
    return
  }
  func.func @transform_0(%arg0: i32) -> (i32, i32, i32) {
    %c0_i32 = arith.constant 0 : i32
    %c0_i32_0 = arith.constant 0 : i32
    %c0_i32_1 = arith.constant 0 : i32
    return %arg0, %c0_i32, %c0_i32_0 : i32, i32, i32
  }
  func.func @transform_1(%arg0: i32) -> (i32, i32) {
    %c0_i32 = arith.constant 0 : i32
    %c0_i32_0 = arith.constant 0 : i32
    %c0_i32_1 = arith.constant 0 : i32
    return %c0_i32, %c0_i32_0 : i32, i32
  }
  func.func @transform_2(%arg0: i32) -> (i32, i32) {
    %c0_i32 = arith.constant 0 : i32
    %c0_i32_0 = arith.constant 0 : i32
    %c0_i32_1 = arith.constant 0 : i32
    return %c0_i32, %c0_i32_0 : i32, i32
  }
  func.func @transform_3(%arg0: i32) -> (i32, i32) {
    %c0_i32 = arith.constant 0 : i32
    %c0_i32_0 = arith.constant 0 : i32
    %c0_i32_1 = arith.constant 0 : i32
    return %c0_i32, %c0_i32_0 : i32, i32
  }
  func.func @transform_4(%arg0: i32) -> (i32, i32) {
    %c0_i32 = arith.constant 0 : i32
    %c0_i32_0 = arith.constant 0 : i32
    %c0_i32_1 = arith.constant 0 : i32
    return %c0_i32, %c0_i32_0 : i32, i32
  }
  func.func @transform_5(%arg0: i32) -> (i32, i32) {
    %c0_i32 = arith.constant 0 : i32
    %c0_i32_0 = arith.constant 0 : i32
    %c0_i32_1 = arith.constant 0 : i32
    return %c0_i32, %c0_i32_0 : i32, i32
  }
  func.func @transform_6(%arg0: i32) -> (i32, i32) {
    %c0_i32 = arith.constant 0 : i32
    %c0_i32_0 = arith.constant 0 : i32
    %c0_i32_1 = arith.constant 0 : i32
    return %c0_i32, %c0_i32_0 : i32, i32
  }
  func.func @transform_7(%arg0: i32) -> (i32, i32) {
    %c0_i32 = arith.constant 0 : i32
    %c0_i32_0 = arith.constant 0 : i32
    %c0_i32_1 = arith.constant 0 : i32
    return %c0_i32, %c0_i32_0 : i32, i32
  }
  func.func @transform_8(%arg0: i32) -> (i32, i32) {
    %c0_i32 = arith.constant 0 : i32
    %c0_i32_0 = arith.constant 0 : i32
    %c0_i32_1 = arith.constant 0 : i32
    return %c0_i32, %c0_i32_0 : i32, i32
  }
  func.func @transform_9(%arg0: i32) -> (i32, i32) {
    %c0_i32 = arith.constant 0 : i32
    %c0_i32_0 = arith.constant 0 : i32
    %c0_i32_1 = arith.constant 0 : i32
    return %c0_i32, %c0_i32_0 : i32, i32
  }
  func.func @transform_10(%arg0: i32) -> (i32, i32) {
    %c0_i32 = arith.constant 0 : i32
    %c0_i32_0 = arith.constant 0 : i32
    %c0_i32_1 = arith.constant 0 : i32
    return %c0_i32, %c0_i32_0 : i32, i32
  }
  func.func @transform_11(%arg0: i32) -> (i32, i32) {
    %c0_i32 = arith.constant 0 : i32
    %c0_i32_0 = arith.constant 0 : i32
    %c0_i32_1 = arith.constant 0 : i32
    return %c0_i32, %c0_i32_0 : i32, i32
  }
  func.func @transform_12(%arg0: i32) -> (i32, i32) {
    %c0_i32 = arith.constant 0 : i32
    %c0_i32_0 = arith.constant 0 : i32
    %c0_i32_1 = arith.constant 0 : i32
    return %c0_i32, %c0_i32_0 : i32, i32
  }
  func.func @transform_13(%arg0: i32) -> (i32, i32, i32) {
    %c0_i32 = arith.constant 0 : i32
    %c0_i32_0 = arith.constant 0 : i32
    %c0_i32_1 = arith.constant 0 : i32
    return %arg0, %c0_i32, %c0_i32_0 : i32, i32, i32
  }
}

module attributes {stable_mosaic.version = 11 : i64} {
  func.func @_decoder_kernel(%arg0: i32, %arg1: memref<1x8x128xbf16, #tpu.memory_space<vmem>>, %arg2: memref<1x16x128xbf16, #tpu.memory_space<vmem>>, %arg3: memref<1x1x8xf32, #tpu.memory_space<vmem>>, %arg4: memref<128x384xbf16, #tpu.memory_space<vmem>>, %arg5: memref<1x384xf32, #tpu.memory_space<vmem>>, %arg6: memref<128x128xbf16, #tpu.memory_space<vmem>>, %arg7: memref<1x128xf32, #tpu.memory_space<vmem>>, %arg8: memref<1x128xf32, #tpu.memory_space<vmem>>, %arg9: memref<1x128xf32, #tpu.memory_space<vmem>>, %arg10: memref<128x128xbf16, #tpu.memory_space<vmem>>, %arg11: memref<1x128xf32, #tpu.memory_space<vmem>>, %arg12: memref<128x256xbf16, #tpu.memory_space<vmem>>, %arg13: memref<1x256xf32, #tpu.memory_space<vmem>>, %arg14: memref<128x128xbf16, #tpu.memory_space<vmem>>, %arg15: memref<1x128xf32, #tpu.memory_space<vmem>>, %arg16: memref<1x128xf32, #tpu.memory_space<vmem>>, %arg17: memref<1x128xf32, #tpu.memory_space<vmem>>, %arg18: memref<128x256xbf16, #tpu.memory_space<vmem>>, %arg19: memref<1x256xf32, #tpu.memory_space<vmem>>, %arg20: memref<256x128xbf16, #tpu.memory_space<vmem>>, %arg21: memref<1x128xf32, #tpu.memory_space<vmem>>, %arg22: memref<1x128xf32, #tpu.memory_space<vmem>>, %arg23: memref<1x128xf32, #tpu.memory_space<vmem>>, %arg24: memref<128x512xbf16, #tpu.memory_space<vmem>>, %arg25: memref<1x512xf32, #tpu.memory_space<vmem>>, %arg26: memref<1x8x512xf32, #tpu.memory_space<vmem>>) attributes {dimension_semantics = [#tpu.dimension_semantics<parallel>], iteration_bounds = array<i64: 2>, scalar_prefetch = 0 : i64, scratch_operands = 0 : i64, tpu.core_type = #tpu.core_type<tc>, window_params = [{transform_indices = @transform_0, window_bounds = array<i64: 1, 8, 128>}, {transform_indices = @transform_1, window_bounds = array<i64: 1, 16, 128>}, {transform_indices = @transform_2, window_bounds = array<i64: 1, 1, 8>}, {pipeline_mode = #tpu.pipeline_mode<synchronous>, transform_indices = @transform_3, window_bounds = array<i64: 128, 384>}, {pipeline_mode = #tpu.pipeline_mode<synchronous>, transform_indices = @transform_4, window_bounds = array<i64: 1, 384>}, {pipeline_mode = #tpu.pipeline_mode<synchronous>, transform_indices = @transform_5, window_bounds = array<i64: 128, 128>}, {pipeline_mode = #tpu.pipeline_mode<synchronous>, transform_indices = @transform_6, window_bounds = array<i64: 1, 128>}, {pipeline_mode = #tpu.pipeline_mode<synchronous>, transform_indices = @transform_7, window_bounds = array<i64: 1, 128>}, {pipeline_mode = #tpu.pipeline_mode<synchronous>, transform_indices = @transform_8, window_bounds = array<i64: 1, 128>}, {pipeline_mode = #tpu.pipeline_mode<synchronous>, transform_indices = @transform_9, window_bounds = array<i64: 128, 128>}, {pipeline_mode = #tpu.pipeline_mode<synchronous>, transform_indices = @transform_10, window_bounds = array<i64: 1, 128>}, {pipeline_mode = #tpu.pipeline_mode<synchronous>, transform_indices = @transform_11, window_bounds = array<i64: 128, 256>}, {pipeline_mode = #tpu.pipeline_mode<synchronous>, transform_indices = @transform_12, window_bounds = array<i64: 1, 256>}, {pipeline_mode = #tpu.pipeline_mode<synchronous>, transform_indices = @transform_13, window_bounds = array<i64: 128, 128>}, {pipeline_mode = #tpu.pipeline_mode<synchronous>, transform_indices = @transform_14, window_bounds = array<i64: 1, 128>}, {pipeline_mode = #tpu.pipeline_mode<synchronous>, transform_indices = @transform_15, window_bounds = array<i64: 1, 128>}, {pipeline_mode = #tpu.pipeline_mode<synchronous>, transform_indices = @transform_16, window_bounds = array<i64: 1, 128>}, {pipeline_mode = #tpu.pipeline_mode<synchronous>, transform_indices = @transform_17, window_bounds = array<i64: 128, 256>}, {pipeline_mode = #tpu.pipeline_mode<synchronous>, transform_indices = @transform_18, window_bounds = array<i64: 1, 256>}, {pipeline_mode = #tpu.pipeline_mode<synchronous>, transform_indices = @transform_19, window_bounds = array<i64: 256, 128>}, {pipeline_mode = #tpu.pipeline_mode<synchronous>, transform_indices = @transform_20, window_bounds = array<i64: 1, 128>}, {pipeline_mode = #tpu.pipeline_mode<synchronous>, transform_indices = @transform_21, window_bounds = array<i64: 1, 128>}, {pipeline_mode = #tpu.pipeline_mode<synchronous>, transform_indices = @transform_22, window_bounds = array<i64: 1, 128>}, {pipeline_mode = #tpu.pipeline_mode<synchronous>, transform_indices = @transform_23, window_bounds = array<i64: 128, 512>}, {pipeline_mode = #tpu.pipeline_mode<synchronous>, transform_indices = @transform_24, window_bounds = array<i64: 1, 512>}, {transform_indices = @transform_25, window_bounds = array<i64: 1, 8, 512>}]} {
    %c0 = arith.constant 0 : index
    %c0_0 = arith.constant 0 : index
    %c0_1 = arith.constant 0 : index
    %0 = vector.load %arg1[%c0, %c0_0, %c0_1] : memref<1x8x128xbf16, #tpu.memory_space<vmem>>, vector<1x8x128xbf16>
    %1 = vector.shape_cast %0 : vector<1x8x128xbf16> to vector<8x128xbf16>
    %2 = arith.extf %1 : vector<8x128xbf16> to vector<8x128xf32>
    %c0_2 = arith.constant 0 : index
    %c0_3 = arith.constant 0 : index
    %c0_4 = arith.constant 0 : index
    %3 = vector.load %arg2[%c0_2, %c0_3, %c0_4] : memref<1x16x128xbf16, #tpu.memory_space<vmem>>, vector<1x16x128xbf16>
    %4 = vector.shape_cast %3 : vector<1x16x128xbf16> to vector<16x128xbf16>
    %5 = tpu.iota {dimensions = array<i32: 0>} : vector<8x8xi32>
    %6 = tpu.iota {dimensions = array<i32: 1>} : vector<8x8xi32>
    %7 = arith.cmpi sge, %5, %6 : vector<8x8xi32>
    %cst = arith.constant 0.000000e+00 : f32
    %cst_5 = arith.constant -1.000000e+09 : f32
    %8 = vector.broadcast %cst : f32 to vector<8x8xf32>
    %9 = vector.broadcast %cst_5 : f32 to vector<8x8xf32>
    %10 = arith.select %7, %8, %9 : vector<8x8xi1>, vector<8x8xf32>
    %c0_6 = arith.constant 0 : index
    %c0_7 = arith.constant 0 : index
    %c0_8 = arith.constant 0 : index
    %11 = vector.load %arg3[%c0_6, %c0_7, %c0_8] : memref<1x1x8xf32, #tpu.memory_space<vmem>>, vector<1x1x8xf32>
    %12 = vector.shape_cast %11 : vector<1x1x8xf32> to vector<1x8xf32>
    %13 = vector.broadcast %12 : vector<1x8xf32> to vector<8x8xf32>
    %14 = arith.addf %10, %13 : vector<8x8xf32>
    %c0_9 = arith.constant 0 : index
    %c0_10 = arith.constant 0 : index
    %15 = vector.load %arg4[%c0_9, %c0_10] : memref<128x384xbf16, #tpu.memory_space<vmem>>, vector<128x384xbf16>
    %cst_11 = arith.constant dense<0.000000e+00> : vector<8x384xf32>
    %16 = tpu.matmul %1, %15, %cst_11 {dimension_numbers = #tpu.dot_dimension_numbers<[1], [0], [0], [1], [0, 0, 1, 1], [], []>} : vector<8x128xbf16>, vector<128x384xbf16>, vector<8x384xf32> -> vector<8x384xf32>
    %c0_12 = arith.constant 0 : index
    %c0_13 = arith.constant 0 : index
    %17 = vector.load %arg5[%c0_12, %c0_13] : memref<1x384xf32, #tpu.memory_space<vmem>>, vector<1x384xf32>
    %18 = vector.broadcast %17 : vector<1x384xf32> to vector<8x384xf32>
    %19 = arith.addf %16, %18 : vector<8x384xf32>
    %20 = vector.extract_strided_slice %19 {offsets = [0, 0], sizes = [8, 128], strides = [1, 1]} : vector<8x384xf32> to vector<8x128xf32>
    %21 = vector.extract_strided_slice %19 {offsets = [0, 128], sizes = [8, 128], strides = [1, 1]} : vector<8x384xf32> to vector<8x128xf32>
    %22 = vector.extract_strided_slice %19 {offsets = [0, 256], sizes = [8, 128], strides = [1, 1]} : vector<8x384xf32> to vector<8x128xf32>
    %23 = vector.extract_strided_slice %20 {offsets = [0, 0], sizes = [8, 32], strides = [1, 1]} : vector<8x128xf32> to vector<8x32xf32>
    %24 = arith.truncf %23 : vector<8x32xf32> to vector<8x32xbf16>
    %25 = vector.extract_strided_slice %21 {offsets = [0, 0], sizes = [8, 32], strides = [1, 1]} : vector<8x128xf32> to vector<8x32xf32>
    %26 = arith.truncf %25 : vector<8x32xf32> to vector<8x32xbf16>
    %27 = vector.extract_strided_slice %22 {offsets = [0, 0], sizes = [8, 32], strides = [1, 1]} : vector<8x128xf32> to vector<8x32xf32>
    %28 = arith.truncf %27 : vector<8x32xf32> to vector<8x32xbf16>
    %cst_14 = arith.constant dense<0.000000e+00> : vector<8x8xf32>
    %29 = tpu.matmul %24, %26, %cst_14 {dimension_numbers = #tpu.dot_dimension_numbers<[1], [1], [0], [0], [0, 0, 1, 0], [], []>} : vector<8x32xbf16>, vector<8x32xbf16>, vector<8x8xf32> -> vector<8x8xf32>
    %30 = arith.addf %29, %14 : vector<8x8xf32>
    %cst_15 = arith.constant dense<0xFF800000> : vector<8xf32>
    %31 = vector.multi_reduction <maximumf>, %30, %cst_15 [1] : vector<8x8xf32> to vector<8xf32>
    %32 = vector.shape_cast %31 : vector<8xf32> to vector<8x1xf32>
    %33 = vector.broadcast %32 : vector<8x1xf32> to vector<8x8xf32>
    %34 = arith.subf %30, %33 : vector<8x8xf32>
    %35 = math.exp %34 : vector<8x8xf32>
    %cst_16 = arith.constant dense<0.000000e+00> : vector<8xf32>
    %36 = vector.multi_reduction <add>, %35, %cst_16 [1] : vector<8x8xf32> to vector<8xf32>
    %37 = vector.shape_cast %36 : vector<8xf32> to vector<8x1xf32>
    %38 = tpu.reciprocal %37 {approx = true} : vector<8x1xf32> -> vector<8x1xf32>
    %39 = vector.broadcast %38 : vector<8x1xf32> to vector<8x8xf32>
    %40 = arith.mulf %35, %39 : vector<8x8xf32>
    %41 = arith.truncf %40 : vector<8x8xf32> to vector<8x8xbf16>
    %cst_17 = arith.constant dense<0.000000e+00> : vector<8x32xf32>
    %42 = tpu.matmul %41, %28, %cst_17 {dimension_numbers = #tpu.dot_dimension_numbers<[1], [0], [0], [1], [0, 0, 1, 1], [], []>} : vector<8x8xbf16>, vector<8x32xbf16>, vector<8x32xf32> -> vector<8x32xf32>
    %43 = vector.extract_strided_slice %20 {offsets = [0, 32], sizes = [8, 32], strides = [1, 1]} : vector<8x128xf32> to vector<8x32xf32>
    %44 = arith.truncf %43 : vector<8x32xf32> to vector<8x32xbf16>
    %45 = vector.extract_strided_slice %21 {offsets = [0, 32], sizes = [8, 32], strides = [1, 1]} : vector<8x128xf32> to vector<8x32xf32>
    %46 = arith.truncf %45 : vector<8x32xf32> to vector<8x32xbf16>
    %47 = vector.extract_strided_slice %22 {offsets = [0, 32], sizes = [8, 32], strides = [1, 1]} : vector<8x128xf32> to vector<8x32xf32>
    %48 = arith.truncf %47 : vector<8x32xf32> to vector<8x32xbf16>
    %cst_18 = arith.constant dense<0.000000e+00> : vector<8x8xf32>
    %49 = tpu.matmul %44, %46, %cst_18 {dimension_numbers = #tpu.dot_dimension_numbers<[1], [1], [0], [0], [0, 0, 1, 0], [], []>} : vector<8x32xbf16>, vector<8x32xbf16>, vector<8x8xf32> -> vector<8x8xf32>
    %50 = arith.addf %49, %14 : vector<8x8xf32>
    %cst_19 = arith.constant dense<0xFF800000> : vector<8xf32>
    %51 = vector.multi_reduction <maximumf>, %50, %cst_19 [1] : vector<8x8xf32> to vector<8xf32>
    %52 = vector.shape_cast %51 : vector<8xf32> to vector<8x1xf32>
    %53 = vector.broadcast %52 : vector<8x1xf32> to vector<8x8xf32>
    %54 = arith.subf %50, %53 : vector<8x8xf32>
    %55 = math.exp %54 : vector<8x8xf32>
    %cst_20 = arith.constant dense<0.000000e+00> : vector<8xf32>
    %56 = vector.multi_reduction <add>, %55, %cst_20 [1] : vector<8x8xf32> to vector<8xf32>
    %57 = vector.shape_cast %56 : vector<8xf32> to vector<8x1xf32>
    %58 = tpu.reciprocal %57 {approx = true} : vector<8x1xf32> -> vector<8x1xf32>
    %59 = vector.broadcast %58 : vector<8x1xf32> to vector<8x8xf32>
    %60 = arith.mulf %55, %59 : vector<8x8xf32>
    %61 = arith.truncf %60 : vector<8x8xf32> to vector<8x8xbf16>
    %cst_21 = arith.constant dense<0.000000e+00> : vector<8x32xf32>
    %62 = tpu.matmul %61, %48, %cst_21 {dimension_numbers = #tpu.dot_dimension_numbers<[1], [0], [0], [1], [0, 0, 1, 1], [], []>} : vector<8x8xbf16>, vector<8x32xbf16>, vector<8x32xf32> -> vector<8x32xf32>
    %63 = vector.extract_strided_slice %20 {offsets = [0, 64], sizes = [8, 32], strides = [1, 1]} : vector<8x128xf32> to vector<8x32xf32>
    %64 = arith.truncf %63 : vector<8x32xf32> to vector<8x32xbf16>
    %65 = vector.extract_strided_slice %21 {offsets = [0, 64], sizes = [8, 32], strides = [1, 1]} : vector<8x128xf32> to vector<8x32xf32>
    %66 = arith.truncf %65 : vector<8x32xf32> to vector<8x32xbf16>
    %67 = vector.extract_strided_slice %22 {offsets = [0, 64], sizes = [8, 32], strides = [1, 1]} : vector<8x128xf32> to vector<8x32xf32>
    %68 = arith.truncf %67 : vector<8x32xf32> to vector<8x32xbf16>
    %cst_22 = arith.constant dense<0.000000e+00> : vector<8x8xf32>
    %69 = tpu.matmul %64, %66, %cst_22 {dimension_numbers = #tpu.dot_dimension_numbers<[1], [1], [0], [0], [0, 0, 1, 0], [], []>} : vector<8x32xbf16>, vector<8x32xbf16>, vector<8x8xf32> -> vector<8x8xf32>
    %70 = arith.addf %69, %14 : vector<8x8xf32>
    %cst_23 = arith.constant dense<0xFF800000> : vector<8xf32>
    %71 = vector.multi_reduction <maximumf>, %70, %cst_23 [1] : vector<8x8xf32> to vector<8xf32>
    %72 = vector.shape_cast %71 : vector<8xf32> to vector<8x1xf32>
    %73 = vector.broadcast %72 : vector<8x1xf32> to vector<8x8xf32>
    %74 = arith.subf %70, %73 : vector<8x8xf32>
    %75 = math.exp %74 : vector<8x8xf32>
    %cst_24 = arith.constant dense<0.000000e+00> : vector<8xf32>
    %76 = vector.multi_reduction <add>, %75, %cst_24 [1] : vector<8x8xf32> to vector<8xf32>
    %77 = vector.shape_cast %76 : vector<8xf32> to vector<8x1xf32>
    %78 = tpu.reciprocal %77 {approx = true} : vector<8x1xf32> -> vector<8x1xf32>
    %79 = vector.broadcast %78 : vector<8x1xf32> to vector<8x8xf32>
    %80 = arith.mulf %75, %79 : vector<8x8xf32>
    %81 = arith.truncf %80 : vector<8x8xf32> to vector<8x8xbf16>
    %cst_25 = arith.constant dense<0.000000e+00> : vector<8x32xf32>
    %82 = tpu.matmul %81, %68, %cst_25 {dimension_numbers = #tpu.dot_dimension_numbers<[1], [0], [0], [1], [0, 0, 1, 1], [], []>} : vector<8x8xbf16>, vector<8x32xbf16>, vector<8x32xf32> -> vector<8x32xf32>
    %83 = vector.extract_strided_slice %20 {offsets = [0, 96], sizes = [8, 32], strides = [1, 1]} : vector<8x128xf32> to vector<8x32xf32>
    %84 = arith.truncf %83 : vector<8x32xf32> to vector<8x32xbf16>
    %85 = vector.extract_strided_slice %21 {offsets = [0, 96], sizes = [8, 32], strides = [1, 1]} : vector<8x128xf32> to vector<8x32xf32>
    %86 = arith.truncf %85 : vector<8x32xf32> to vector<8x32xbf16>
    %87 = vector.extract_strided_slice %22 {offsets = [0, 96], sizes = [8, 32], strides = [1, 1]} : vector<8x128xf32> to vector<8x32xf32>
    %88 = arith.truncf %87 : vector<8x32xf32> to vector<8x32xbf16>
    %cst_26 = arith.constant dense<0.000000e+00> : vector<8x8xf32>
    %89 = tpu.matmul %84, %86, %cst_26 {dimension_numbers = #tpu.dot_dimension_numbers<[1], [1], [0], [0], [0, 0, 1, 0], [], []>} : vector<8x32xbf16>, vector<8x32xbf16>, vector<8x8xf32> -> vector<8x8xf32>
    %90 = arith.addf %89, %14 : vector<8x8xf32>
    %cst_27 = arith.constant dense<0xFF800000> : vector<8xf32>
    %91 = vector.multi_reduction <maximumf>, %90, %cst_27 [1] : vector<8x8xf32> to vector<8xf32>
    %92 = vector.shape_cast %91 : vector<8xf32> to vector<8x1xf32>
    %93 = vector.broadcast %92 : vector<8x1xf32> to vector<8x8xf32>
    %94 = arith.subf %90, %93 : vector<8x8xf32>
    %95 = math.exp %94 : vector<8x8xf32>
    %cst_28 = arith.constant dense<0.000000e+00> : vector<8xf32>
    %96 = vector.multi_reduction <add>, %95, %cst_28 [1] : vector<8x8xf32> to vector<8xf32>
    %97 = vector.shape_cast %96 : vector<8xf32> to vector<8x1xf32>
    %98 = tpu.reciprocal %97 {approx = true} : vector<8x1xf32> -> vector<8x1xf32>
    %99 = vector.broadcast %98 : vector<8x1xf32> to vector<8x8xf32>
    %100 = arith.mulf %95, %99 : vector<8x8xf32>
    %101 = arith.truncf %100 : vector<8x8xf32> to vector<8x8xbf16>
    %cst_29 = arith.constant dense<0.000000e+00> : vector<8x32xf32>
    %102 = tpu.matmul %101, %88, %cst_29 {dimension_numbers = #tpu.dot_dimension_numbers<[1], [0], [0], [1], [0, 0, 1, 1], [], []>} : vector<8x8xbf16>, vector<8x32xbf16>, vector<8x32xf32> -> vector<8x32xf32>
    %103 = tpu.concatenate %42, %62, %82, %102 in 1 : vector<8x32xf32>, vector<8x32xf32>, vector<8x32xf32>, vector<8x32xf32> -> vector<8x128xf32>
    %104 = arith.truncf %103 : vector<8x128xf32> to vector<8x128xbf16>
    %c0_30 = arith.constant 0 : index
    %c0_31 = arith.constant 0 : index
    %105 = vector.load %arg6[%c0_30, %c0_31] : memref<128x128xbf16, #tpu.memory_space<vmem>>, vector<128x128xbf16>
    %cst_32 = arith.constant dense<0.000000e+00> : vector<8x128xf32>
    %106 = tpu.matmul %104, %105, %cst_32 {dimension_numbers = #tpu.dot_dimension_numbers<[1], [0], [0], [1], [0, 0, 1, 1], [], []>} : vector<8x128xbf16>, vector<128x128xbf16>, vector<8x128xf32> -> vector<8x128xf32>
    %c0_33 = arith.constant 0 : index
    %c0_34 = arith.constant 0 : index
    %107 = vector.load %arg7[%c0_33, %c0_34] : memref<1x128xf32, #tpu.memory_space<vmem>>, vector<1x128xf32>
    %108 = vector.broadcast %107 : vector<1x128xf32> to vector<8x128xf32>
    %109 = arith.addf %106, %108 : vector<8x128xf32>
    %110 = arith.addf %2, %109 : vector<8x128xf32>
    %c0_35 = arith.constant 0 : index
    %c0_36 = arith.constant 0 : index
    %111 = vector.load %arg8[%c0_35, %c0_36] : memref<1x128xf32, #tpu.memory_space<vmem>>, vector<1x128xf32>
    %c0_37 = arith.constant 0 : index
    %c0_38 = arith.constant 0 : index
    %112 = vector.load %arg9[%c0_37, %c0_38] : memref<1x128xf32, #tpu.memory_space<vmem>>, vector<1x128xf32>
    %cst_39 = arith.constant dense<0.000000e+00> : vector<8xf32>
    %113 = vector.multi_reduction <add>, %110, %cst_39 [1] : vector<8x128xf32> to vector<8xf32>
    %114 = vector.shape_cast %113 : vector<8xf32> to vector<8x1xf32>
    %cst_40 = arith.constant 1.280000e+02 : f32
    %115 = vector.broadcast %cst_40 : f32 to vector<8x1xf32>
    %116 = arith.divf %114, %115 : vector<8x1xf32>
    %117 = vector.broadcast %116 : vector<8x1xf32> to vector<8x128xf32>
    %118 = arith.subf %110, %117 : vector<8x128xf32>
    %119 = arith.mulf %118, %118 : vector<8x128xf32>
    %cst_41 = arith.constant dense<0.000000e+00> : vector<8xf32>
    %120 = vector.multi_reduction <add>, %119, %cst_41 [1] : vector<8x128xf32> to vector<8xf32>
    %121 = vector.shape_cast %120 : vector<8xf32> to vector<8x1xf32>
    %cst_42 = arith.constant 1.280000e+02 : f32
    %122 = vector.broadcast %cst_42 : f32 to vector<8x1xf32>
    %123 = arith.divf %121, %122 : vector<8x1xf32>
    %124 = vector.broadcast %116 : vector<8x1xf32> to vector<8x128xf32>
    %125 = arith.subf %110, %124 : vector<8x128xf32>
    %cst_43 = arith.constant 9.99999974E-6 : f32
    %126 = vector.broadcast %cst_43 : f32 to vector<8x1xf32>
    %127 = arith.addf %123, %126 : vector<8x1xf32>
    %128 = math.rsqrt %127 : vector<8x1xf32>
    %129 = vector.broadcast %128 : vector<8x1xf32> to vector<8x128xf32>
    %130 = arith.mulf %125, %129 : vector<8x128xf32>
    %131 = vector.broadcast %111 : vector<1x128xf32> to vector<8x128xf32>
    %132 = arith.mulf %130, %131 : vector<8x128xf32>
    %133 = vector.broadcast %112 : vector<1x128xf32> to vector<8x128xf32>
    %134 = arith.addf %132, %133 : vector<8x128xf32>
    %135 = arith.truncf %134 : vector<8x128xf32> to vector<8x128xbf16>
    %c0_44 = arith.constant 0 : index
    %c0_45 = arith.constant 0 : index
    %136 = vector.load %arg10[%c0_44, %c0_45] : memref<128x128xbf16, #tpu.memory_space<vmem>>, vector<128x128xbf16>
    %cst_46 = arith.constant dense<0.000000e+00> : vector<8x128xf32>
    %137 = tpu.matmul %135, %136, %cst_46 {dimension_numbers = #tpu.dot_dimension_numbers<[1], [0], [0], [1], [0, 0, 1, 1], [], []>} : vector<8x128xbf16>, vector<128x128xbf16>, vector<8x128xf32> -> vector<8x128xf32>
    %c0_47 = arith.constant 0 : index
    %c0_48 = arith.constant 0 : index
    %138 = vector.load %arg11[%c0_47, %c0_48] : memref<1x128xf32, #tpu.memory_space<vmem>>, vector<1x128xf32>
    %139 = vector.broadcast %138 : vector<1x128xf32> to vector<8x128xf32>
    %140 = arith.addf %137, %139 : vector<8x128xf32>
    %c0_49 = arith.constant 0 : index
    %c0_50 = arith.constant 0 : index
    %141 = vector.load %arg12[%c0_49, %c0_50] : memref<128x256xbf16, #tpu.memory_space<vmem>>, vector<128x256xbf16>
    %cst_51 = arith.constant dense<0.000000e+00> : vector<16x256xf32>
    %142 = tpu.matmul %4, %141, %cst_51 {dimension_numbers = #tpu.dot_dimension_numbers<[1], [0], [0], [1], [0, 0, 1, 1], [], []>} : vector<16x128xbf16>, vector<128x256xbf16>, vector<16x256xf32> -> vector<16x256xf32>
    %c0_52 = arith.constant 0 : index
    %c0_53 = arith.constant 0 : index
    %143 = vector.load %arg13[%c0_52, %c0_53] : memref<1x256xf32, #tpu.memory_space<vmem>>, vector<1x256xf32>
    %144 = vector.broadcast %143 : vector<1x256xf32> to vector<16x256xf32>
    %145 = arith.addf %142, %144 : vector<16x256xf32>
    %146 = vector.extract_strided_slice %145 {offsets = [0, 0], sizes = [16, 128], strides = [1, 1]} : vector<16x256xf32> to vector<16x128xf32>
    %147 = vector.extract_strided_slice %145 {offsets = [0, 128], sizes = [16, 128], strides = [1, 1]} : vector<16x256xf32> to vector<16x128xf32>
    %148 = vector.extract_strided_slice %140 {offsets = [0, 0], sizes = [8, 32], strides = [1, 1]} : vector<8x128xf32> to vector<8x32xf32>
    %149 = arith.truncf %148 : vector<8x32xf32> to vector<8x32xbf16>
    %150 = vector.extract_strided_slice %146 {offsets = [0, 0], sizes = [16, 32], strides = [1, 1]} : vector<16x128xf32> to vector<16x32xf32>
    %151 = arith.truncf %150 : vector<16x32xf32> to vector<16x32xbf16>
    %152 = vector.extract_strided_slice %147 {offsets = [0, 0], sizes = [16, 32], strides = [1, 1]} : vector<16x128xf32> to vector<16x32xf32>
    %153 = arith.truncf %152 : vector<16x32xf32> to vector<16x32xbf16>
    %cst_54 = arith.constant dense<0.000000e+00> : vector<8x16xf32>
    %154 = tpu.matmul %149, %151, %cst_54 {dimension_numbers = #tpu.dot_dimension_numbers<[1], [1], [0], [0], [0, 0, 1, 0], [], []>} : vector<8x32xbf16>, vector<16x32xbf16>, vector<8x16xf32> -> vector<8x16xf32>
    %cst_55 = arith.constant dense<0xFF800000> : vector<8xf32>
    %155 = vector.multi_reduction <maximumf>, %154, %cst_55 [1] : vector<8x16xf32> to vector<8xf32>
    %156 = vector.shape_cast %155 : vector<8xf32> to vector<8x1xf32>
    %157 = vector.broadcast %156 : vector<8x1xf32> to vector<8x16xf32>
    %158 = arith.subf %154, %157 : vector<8x16xf32>
    %159 = math.exp %158 : vector<8x16xf32>
    %cst_56 = arith.constant dense<0.000000e+00> : vector<8xf32>
    %160 = vector.multi_reduction <add>, %159, %cst_56 [1] : vector<8x16xf32> to vector<8xf32>
    %161 = vector.shape_cast %160 : vector<8xf32> to vector<8x1xf32>
    %162 = tpu.reciprocal %161 {approx = true} : vector<8x1xf32> -> vector<8x1xf32>
    %163 = vector.broadcast %162 : vector<8x1xf32> to vector<8x16xf32>
    %164 = arith.mulf %159, %163 : vector<8x16xf32>
    %165 = arith.truncf %164 : vector<8x16xf32> to vector<8x16xbf16>
    %cst_57 = arith.constant dense<0.000000e+00> : vector<8x32xf32>
    %166 = tpu.matmul %165, %153, %cst_57 {dimension_numbers = #tpu.dot_dimension_numbers<[1], [0], [0], [1], [0, 0, 1, 1], [], []>} : vector<8x16xbf16>, vector<16x32xbf16>, vector<8x32xf32> -> vector<8x32xf32>
    %167 = vector.extract_strided_slice %140 {offsets = [0, 32], sizes = [8, 32], strides = [1, 1]} : vector<8x128xf32> to vector<8x32xf32>
    %168 = arith.truncf %167 : vector<8x32xf32> to vector<8x32xbf16>
    %169 = vector.extract_strided_slice %146 {offsets = [0, 32], sizes = [16, 32], strides = [1, 1]} : vector<16x128xf32> to vector<16x32xf32>
    %170 = arith.truncf %169 : vector<16x32xf32> to vector<16x32xbf16>
    %171 = vector.extract_strided_slice %147 {offsets = [0, 32], sizes = [16, 32], strides = [1, 1]} : vector<16x128xf32> to vector<16x32xf32>
    %172 = arith.truncf %171 : vector<16x32xf32> to vector<16x32xbf16>
    %cst_58 = arith.constant dense<0.000000e+00> : vector<8x16xf32>
    %173 = tpu.matmul %168, %170, %cst_58 {dimension_numbers = #tpu.dot_dimension_numbers<[1], [1], [0], [0], [0, 0, 1, 0], [], []>} : vector<8x32xbf16>, vector<16x32xbf16>, vector<8x16xf32> -> vector<8x16xf32>
    %cst_59 = arith.constant dense<0xFF800000> : vector<8xf32>
    %174 = vector.multi_reduction <maximumf>, %173, %cst_59 [1] : vector<8x16xf32> to vector<8xf32>
    %175 = vector.shape_cast %174 : vector<8xf32> to vector<8x1xf32>
    %176 = vector.broadcast %175 : vector<8x1xf32> to vector<8x16xf32>
    %177 = arith.subf %173, %176 : vector<8x16xf32>
    %178 = math.exp %177 : vector<8x16xf32>
    %cst_60 = arith.constant dense<0.000000e+00> : vector<8xf32>
    %179 = vector.multi_reduction <add>, %178, %cst_60 [1] : vector<8x16xf32> to vector<8xf32>
    %180 = vector.shape_cast %179 : vector<8xf32> to vector<8x1xf32>
    %181 = tpu.reciprocal %180 {approx = true} : vector<8x1xf32> -> vector<8x1xf32>
    %182 = vector.broadcast %181 : vector<8x1xf32> to vector<8x16xf32>
    %183 = arith.mulf %178, %182 : vector<8x16xf32>
    %184 = arith.truncf %183 : vector<8x16xf32> to vector<8x16xbf16>
    %cst_61 = arith.constant dense<0.000000e+00> : vector<8x32xf32>
    %185 = tpu.matmul %184, %172, %cst_61 {dimension_numbers = #tpu.dot_dimension_numbers<[1], [0], [0], [1], [0, 0, 1, 1], [], []>} : vector<8x16xbf16>, vector<16x32xbf16>, vector<8x32xf32> -> vector<8x32xf32>
    %186 = vector.extract_strided_slice %140 {offsets = [0, 64], sizes = [8, 32], strides = [1, 1]} : vector<8x128xf32> to vector<8x32xf32>
    %187 = arith.truncf %186 : vector<8x32xf32> to vector<8x32xbf16>
    %188 = vector.extract_strided_slice %146 {offsets = [0, 64], sizes = [16, 32], strides = [1, 1]} : vector<16x128xf32> to vector<16x32xf32>
    %189 = arith.truncf %188 : vector<16x32xf32> to vector<16x32xbf16>
    %190 = vector.extract_strided_slice %147 {offsets = [0, 64], sizes = [16, 32], strides = [1, 1]} : vector<16x128xf32> to vector<16x32xf32>
    %191 = arith.truncf %190 : vector<16x32xf32> to vector<16x32xbf16>
    %cst_62 = arith.constant dense<0.000000e+00> : vector<8x16xf32>
    %192 = tpu.matmul %187, %189, %cst_62 {dimension_numbers = #tpu.dot_dimension_numbers<[1], [1], [0], [0], [0, 0, 1, 0], [], []>} : vector<8x32xbf16>, vector<16x32xbf16>, vector<8x16xf32> -> vector<8x16xf32>
    %cst_63 = arith.constant dense<0xFF800000> : vector<8xf32>
    %193 = vector.multi_reduction <maximumf>, %192, %cst_63 [1] : vector<8x16xf32> to vector<8xf32>
    %194 = vector.shape_cast %193 : vector<8xf32> to vector<8x1xf32>
    %195 = vector.broadcast %194 : vector<8x1xf32> to vector<8x16xf32>
    %196 = arith.subf %192, %195 : vector<8x16xf32>
    %197 = math.exp %196 : vector<8x16xf32>
    %cst_64 = arith.constant dense<0.000000e+00> : vector<8xf32>
    %198 = vector.multi_reduction <add>, %197, %cst_64 [1] : vector<8x16xf32> to vector<8xf32>
    %199 = vector.shape_cast %198 : vector<8xf32> to vector<8x1xf32>
    %200 = tpu.reciprocal %199 {approx = true} : vector<8x1xf32> -> vector<8x1xf32>
    %201 = vector.broadcast %200 : vector<8x1xf32> to vector<8x16xf32>
    %202 = arith.mulf %197, %201 : vector<8x16xf32>
    %203 = arith.truncf %202 : vector<8x16xf32> to vector<8x16xbf16>
    %cst_65 = arith.constant dense<0.000000e+00> : vector<8x32xf32>
    %204 = tpu.matmul %203, %191, %cst_65 {dimension_numbers = #tpu.dot_dimension_numbers<[1], [0], [0], [1], [0, 0, 1, 1], [], []>} : vector<8x16xbf16>, vector<16x32xbf16>, vector<8x32xf32> -> vector<8x32xf32>
    %205 = vector.extract_strided_slice %140 {offsets = [0, 96], sizes = [8, 32], strides = [1, 1]} : vector<8x128xf32> to vector<8x32xf32>
    %206 = arith.truncf %205 : vector<8x32xf32> to vector<8x32xbf16>
    %207 = vector.extract_strided_slice %146 {offsets = [0, 96], sizes = [16, 32], strides = [1, 1]} : vector<16x128xf32> to vector<16x32xf32>
    %208 = arith.truncf %207 : vector<16x32xf32> to vector<16x32xbf16>
    %209 = vector.extract_strided_slice %147 {offsets = [0, 96], sizes = [16, 32], strides = [1, 1]} : vector<16x128xf32> to vector<16x32xf32>
    %210 = arith.truncf %209 : vector<16x32xf32> to vector<16x32xbf16>
    %cst_66 = arith.constant dense<0.000000e+00> : vector<8x16xf32>
    %211 = tpu.matmul %206, %208, %cst_66 {dimension_numbers = #tpu.dot_dimension_numbers<[1], [1], [0], [0], [0, 0, 1, 0], [], []>} : vector<8x32xbf16>, vector<16x32xbf16>, vector<8x16xf32> -> vector<8x16xf32>
    %cst_67 = arith.constant dense<0xFF800000> : vector<8xf32>
    %212 = vector.multi_reduction <maximumf>, %211, %cst_67 [1] : vector<8x16xf32> to vector<8xf32>
    %213 = vector.shape_cast %212 : vector<8xf32> to vector<8x1xf32>
    %214 = vector.broadcast %213 : vector<8x1xf32> to vector<8x16xf32>
    %215 = arith.subf %211, %214 : vector<8x16xf32>
    %216 = math.exp %215 : vector<8x16xf32>
    %cst_68 = arith.constant dense<0.000000e+00> : vector<8xf32>
    %217 = vector.multi_reduction <add>, %216, %cst_68 [1] : vector<8x16xf32> to vector<8xf32>
    %218 = vector.shape_cast %217 : vector<8xf32> to vector<8x1xf32>
    %219 = tpu.reciprocal %218 {approx = true} : vector<8x1xf32> -> vector<8x1xf32>
    %220 = vector.broadcast %219 : vector<8x1xf32> to vector<8x16xf32>
    %221 = arith.mulf %216, %220 : vector<8x16xf32>
    %222 = arith.truncf %221 : vector<8x16xf32> to vector<8x16xbf16>
    %cst_69 = arith.constant dense<0.000000e+00> : vector<8x32xf32>
    %223 = tpu.matmul %222, %210, %cst_69 {dimension_numbers = #tpu.dot_dimension_numbers<[1], [0], [0], [1], [0, 0, 1, 1], [], []>} : vector<8x16xbf16>, vector<16x32xbf16>, vector<8x32xf32> -> vector<8x32xf32>
    %224 = tpu.concatenate %166, %185, %204, %223 in 1 : vector<8x32xf32>, vector<8x32xf32>, vector<8x32xf32>, vector<8x32xf32> -> vector<8x128xf32>
    %225 = arith.truncf %224 : vector<8x128xf32> to vector<8x128xbf16>
    %c0_70 = arith.constant 0 : index
    %c0_71 = arith.constant 0 : index
    %226 = vector.load %arg14[%c0_70, %c0_71] : memref<128x128xbf16, #tpu.memory_space<vmem>>, vector<128x128xbf16>
    %cst_72 = arith.constant dense<0.000000e+00> : vector<8x128xf32>
    %227 = tpu.matmul %225, %226, %cst_72 {dimension_numbers = #tpu.dot_dimension_numbers<[1], [0], [0], [1], [0, 0, 1, 1], [], []>} : vector<8x128xbf16>, vector<128x128xbf16>, vector<8x128xf32> -> vector<8x128xf32>
    %c0_73 = arith.constant 0 : index
    %c0_74 = arith.constant 0 : index
    %228 = vector.load %arg15[%c0_73, %c0_74] : memref<1x128xf32, #tpu.memory_space<vmem>>, vector<1x128xf32>
    %229 = vector.broadcast %228 : vector<1x128xf32> to vector<8x128xf32>
    %230 = arith.addf %227, %229 : vector<8x128xf32>
    %231 = arith.addf %134, %230 : vector<8x128xf32>
    %c0_75 = arith.constant 0 : index
    %c0_76 = arith.constant 0 : index
    %232 = vector.load %arg16[%c0_75, %c0_76] : memref<1x128xf32, #tpu.memory_space<vmem>>, vector<1x128xf32>
    %c0_77 = arith.constant 0 : index
    %c0_78 = arith.constant 0 : index
    %233 = vector.load %arg17[%c0_77, %c0_78] : memref<1x128xf32, #tpu.memory_space<vmem>>, vector<1x128xf32>
    %cst_79 = arith.constant dense<0.000000e+00> : vector<8xf32>
    %234 = vector.multi_reduction <add>, %231, %cst_79 [1] : vector<8x128xf32> to vector<8xf32>
    %235 = vector.shape_cast %234 : vector<8xf32> to vector<8x1xf32>
    %cst_80 = arith.constant 1.280000e+02 : f32
    %236 = vector.broadcast %cst_80 : f32 to vector<8x1xf32>
    %237 = arith.divf %235, %236 : vector<8x1xf32>
    %238 = vector.broadcast %237 : vector<8x1xf32> to vector<8x128xf32>
    %239 = arith.subf %231, %238 : vector<8x128xf32>
    %240 = arith.mulf %239, %239 : vector<8x128xf32>
    %cst_81 = arith.constant dense<0.000000e+00> : vector<8xf32>
    %241 = vector.multi_reduction <add>, %240, %cst_81 [1] : vector<8x128xf32> to vector<8xf32>
    %242 = vector.shape_cast %241 : vector<8xf32> to vector<8x1xf32>
    %cst_82 = arith.constant 1.280000e+02 : f32
    %243 = vector.broadcast %cst_82 : f32 to vector<8x1xf32>
    %244 = arith.divf %242, %243 : vector<8x1xf32>
    %245 = vector.broadcast %237 : vector<8x1xf32> to vector<8x128xf32>
    %246 = arith.subf %231, %245 : vector<8x128xf32>
    %cst_83 = arith.constant 9.99999974E-6 : f32
    %247 = vector.broadcast %cst_83 : f32 to vector<8x1xf32>
    %248 = arith.addf %244, %247 : vector<8x1xf32>
    %249 = math.rsqrt %248 : vector<8x1xf32>
    %250 = vector.broadcast %249 : vector<8x1xf32> to vector<8x128xf32>
    %251 = arith.mulf %246, %250 : vector<8x128xf32>
    %252 = vector.broadcast %232 : vector<1x128xf32> to vector<8x128xf32>
    %253 = arith.mulf %251, %252 : vector<8x128xf32>
    %254 = vector.broadcast %233 : vector<1x128xf32> to vector<8x128xf32>
    %255 = arith.addf %253, %254 : vector<8x128xf32>
    %256 = arith.truncf %255 : vector<8x128xf32> to vector<8x128xbf16>
    %c0_84 = arith.constant 0 : index
    %c0_85 = arith.constant 0 : index
    %257 = vector.load %arg18[%c0_84, %c0_85] : memref<128x256xbf16, #tpu.memory_space<vmem>>, vector<128x256xbf16>
    %cst_86 = arith.constant dense<0.000000e+00> : vector<8x256xf32>
    %258 = tpu.matmul %256, %257, %cst_86 {dimension_numbers = #tpu.dot_dimension_numbers<[1], [0], [0], [1], [0, 0, 1, 1], [], []>} : vector<8x128xbf16>, vector<128x256xbf16>, vector<8x256xf32> -> vector<8x256xf32>
    %c0_87 = arith.constant 0 : index
    %c0_88 = arith.constant 0 : index
    %259 = vector.load %arg19[%c0_87, %c0_88] : memref<1x256xf32, #tpu.memory_space<vmem>>, vector<1x256xf32>
    %260 = vector.broadcast %259 : vector<1x256xf32> to vector<8x256xf32>
    %261 = arith.addf %258, %260 : vector<8x256xf32>
    %cst_89 = arith.constant 0.000000e+00 : f32
    %262 = vector.broadcast %cst_89 : f32 to vector<8x256xf32>
    %263 = arith.maximumf %261, %262 : vector<8x256xf32>
    %264 = arith.truncf %263 : vector<8x256xf32> to vector<8x256xbf16>
    %c0_90 = arith.constant 0 : index
    %c0_91 = arith.constant 0 : index
    %265 = vector.load %arg20[%c0_90, %c0_91] : memref<256x128xbf16, #tpu.memory_space<vmem>>, vector<256x128xbf16>
    %cst_92 = arith.constant dense<0.000000e+00> : vector<8x128xf32>
    %266 = tpu.matmul %264, %265, %cst_92 {dimension_numbers = #tpu.dot_dimension_numbers<[1], [0], [0], [1], [0, 0, 1, 1], [], []>} : vector<8x256xbf16>, vector<256x128xbf16>, vector<8x128xf32> -> vector<8x128xf32>
    %c0_93 = arith.constant 0 : index
    %c0_94 = arith.constant 0 : index
    %267 = vector.load %arg21[%c0_93, %c0_94] : memref<1x128xf32, #tpu.memory_space<vmem>>, vector<1x128xf32>
    %268 = vector.broadcast %267 : vector<1x128xf32> to vector<8x128xf32>
    %269 = arith.addf %266, %268 : vector<8x128xf32>
    %270 = arith.addf %255, %269 : vector<8x128xf32>
    %c0_95 = arith.constant 0 : index
    %c0_96 = arith.constant 0 : index
    %271 = vector.load %arg22[%c0_95, %c0_96] : memref<1x128xf32, #tpu.memory_space<vmem>>, vector<1x128xf32>
    %c0_97 = arith.constant 0 : index
    %c0_98 = arith.constant 0 : index
    %272 = vector.load %arg23[%c0_97, %c0_98] : memref<1x128xf32, #tpu.memory_space<vmem>>, vector<1x128xf32>
    %cst_99 = arith.constant dense<0.000000e+00> : vector<8xf32>
    %273 = vector.multi_reduction <add>, %270, %cst_99 [1] : vector<8x128xf32> to vector<8xf32>
    %274 = vector.shape_cast %273 : vector<8xf32> to vector<8x1xf32>
    %cst_100 = arith.constant 1.280000e+02 : f32
    %275 = vector.broadcast %cst_100 : f32 to vector<8x1xf32>
    %276 = arith.divf %274, %275 : vector<8x1xf32>
    %277 = vector.broadcast %276 : vector<8x1xf32> to vector<8x128xf32>
    %278 = arith.subf %270, %277 : vector<8x128xf32>
    %279 = arith.mulf %278, %278 : vector<8x128xf32>
    %cst_101 = arith.constant dense<0.000000e+00> : vector<8xf32>
    %280 = vector.multi_reduction <add>, %279, %cst_101 [1] : vector<8x128xf32> to vector<8xf32>
    %281 = vector.shape_cast %280 : vector<8xf32> to vector<8x1xf32>
    %cst_102 = arith.constant 1.280000e+02 : f32
    %282 = vector.broadcast %cst_102 : f32 to vector<8x1xf32>
    %283 = arith.divf %281, %282 : vector<8x1xf32>
    %284 = vector.broadcast %276 : vector<8x1xf32> to vector<8x128xf32>
    %285 = arith.subf %270, %284 : vector<8x128xf32>
    %cst_103 = arith.constant 9.99999974E-6 : f32
    %286 = vector.broadcast %cst_103 : f32 to vector<8x1xf32>
    %287 = arith.addf %283, %286 : vector<8x1xf32>
    %288 = math.rsqrt %287 : vector<8x1xf32>
    %289 = vector.broadcast %288 : vector<8x1xf32> to vector<8x128xf32>
    %290 = arith.mulf %285, %289 : vector<8x128xf32>
    %291 = vector.broadcast %271 : vector<1x128xf32> to vector<8x128xf32>
    %292 = arith.mulf %290, %291 : vector<8x128xf32>
    %293 = vector.broadcast %272 : vector<1x128xf32> to vector<8x128xf32>
    %294 = arith.addf %292, %293 : vector<8x128xf32>
    %295 = arith.truncf %294 : vector<8x128xf32> to vector<8x128xbf16>
    %c0_104 = arith.constant 0 : index
    %c0_105 = arith.constant 0 : index
    %296 = vector.load %arg24[%c0_104, %c0_105] : memref<128x512xbf16, #tpu.memory_space<vmem>>, vector<128x512xbf16>
    %cst_106 = arith.constant dense<0.000000e+00> : vector<8x512xf32>
    %297 = tpu.matmul %295, %296, %cst_106 {dimension_numbers = #tpu.dot_dimension_numbers<[1], [0], [0], [1], [0, 0, 1, 1], [], []>} : vector<8x128xbf16>, vector<128x512xbf16>, vector<8x512xf32> -> vector<8x512xf32>
    %c0_107 = arith.constant 0 : index
    %c0_108 = arith.constant 0 : index
    %298 = vector.load %arg25[%c0_107, %c0_108] : memref<1x512xf32, #tpu.memory_space<vmem>>, vector<1x512xf32>
    %299 = vector.broadcast %298 : vector<1x512xf32> to vector<8x512xf32>
    %300 = arith.addf %297, %299 : vector<8x512xf32>
    %c0_109 = arith.constant 0 : index
    %c0_110 = arith.constant 0 : index
    %c0_111 = arith.constant 0 : index
    %301 = vector.load %arg26[%c0_109, %c0_110, %c0_111] : memref<1x8x512xf32, #tpu.memory_space<vmem>>, vector<1x8x512xf32>
    %302 = vector.shape_cast %301 : vector<1x8x512xf32> to vector<8x512xf32>
    %303 = vector.shape_cast %300 : vector<8x512xf32> to vector<1x8x512xf32>
    tpu.vector_store %arg26[%c0_109, %c0_110, %c0_111], %303 {strides = array<i32>} : memref<1x8x512xf32, #tpu.memory_space<vmem>>, vector<1x8x512xf32>,
    return
  }
  func.func @transform_0(%arg0: i32) -> (i32, i32, i32) {
    %c0_i32 = arith.constant 0 : i32
    %c0_i32_0 = arith.constant 0 : i32
    %c0_i32_1 = arith.constant 0 : i32
    return %arg0, %c0_i32, %c0_i32_0 : i32, i32, i32
  }
  func.func @transform_1(%arg0: i32) -> (i32, i32, i32) {
    %c0_i32 = arith.constant 0 : i32
    %c0_i32_0 = arith.constant 0 : i32
    %c0_i32_1 = arith.constant 0 : i32
    return %arg0, %c0_i32, %c0_i32_0 : i32, i32, i32
  }
  func.func @transform_2(%arg0: i32) -> (i32, i32, i32) {
    %c0_i32 = arith.constant 0 : i32
    %c0_i32_0 = arith.constant 0 : i32
    %c0_i32_1 = arith.constant 0 : i32
    return %arg0, %c0_i32, %c0_i32_0 : i32, i32, i32
  }
  func.func @transform_3(%arg0: i32) -> (i32, i32) {
    %c0_i32 = arith.constant 0 : i32
    %c0_i32_0 = arith.constant 0 : i32
    %c0_i32_1 = arith.constant 0 : i32
    return %c0_i32, %c0_i32_0 : i32, i32
  }
  func.func @transform_4(%arg0: i32) -> (i32, i32) {
    %c0_i32 = arith.constant 0 : i32
    %c0_i32_0 = arith.constant 0 : i32
    %c0_i32_1 = arith.constant 0 : i32
    return %c0_i32, %c0_i32_0 : i32, i32
  }
  func.func @transform_5(%arg0: i32) -> (i32, i32) {
    %c0_i32 = arith.constant 0 : i32
    %c0_i32_0 = arith.constant 0 : i32
    %c0_i32_1 = arith.constant 0 : i32
    return %c0_i32, %c0_i32_0 : i32, i32
  }
  func.func @transform_6(%arg0: i32) -> (i32, i32) {
    %c0_i32 = arith.constant 0 : i32
    %c0_i32_0 = arith.constant 0 : i32
    %c0_i32_1 = arith.constant 0 : i32
    return %c0_i32, %c0_i32_0 : i32, i32
  }
  func.func @transform_7(%arg0: i32) -> (i32, i32) {
    %c0_i32 = arith.constant 0 : i32
    %c0_i32_0 = arith.constant 0 : i32
    %c0_i32_1 = arith.constant 0 : i32
    return %c0_i32, %c0_i32_0 : i32, i32
  }
  func.func @transform_8(%arg0: i32) -> (i32, i32) {
    %c0_i32 = arith.constant 0 : i32
    %c0_i32_0 = arith.constant 0 : i32
    %c0_i32_1 = arith.constant 0 : i32
    return %c0_i32, %c0_i32_0 : i32, i32
  }
  func.func @transform_9(%arg0: i32) -> (i32, i32) {
    %c0_i32 = arith.constant 0 : i32
    %c0_i32_0 = arith.constant 0 : i32
    %c0_i32_1 = arith.constant 0 : i32
    return %c0_i32, %c0_i32_0 : i32, i32
  }
  func.func @transform_10(%arg0: i32) -> (i32, i32) {
    %c0_i32 = arith.constant 0 : i32
    %c0_i32_0 = arith.constant 0 : i32
    %c0_i32_1 = arith.constant 0 : i32
    return %c0_i32, %c0_i32_0 : i32, i32
  }
  func.func @transform_11(%arg0: i32) -> (i32, i32) {
    %c0_i32 = arith.constant 0 : i32
    %c0_i32_0 = arith.constant 0 : i32
    %c0_i32_1 = arith.constant 0 : i32
    return %c0_i32, %c0_i32_0 : i32, i32
  }
  func.func @transform_12(%arg0: i32) -> (i32, i32) {
    %c0_i32 = arith.constant 0 : i32
    %c0_i32_0 = arith.constant 0 : i32
    %c0_i32_1 = arith.constant 0 : i32
    return %c0_i32, %c0_i32_0 : i32, i32
  }
  func.func @transform_13(%arg0: i32) -> (i32, i32) {
    %c0_i32 = arith.constant 0 : i32
    %c0_i32_0 = arith.constant 0 : i32
    %c0_i32_1 = arith.constant 0 : i32
    return %c0_i32, %c0_i32_0 : i32, i32
  }
  func.func @transform_14(%arg0: i32) -> (i32, i32) {
    %c0_i32 = arith.constant 0 : i32
    %c0_i32_0 = arith.constant 0 : i32
    %c0_i32_1 = arith.constant 0 : i32
    return %c0_i32, %c0_i32_0 : i32, i32
  }
  func.func @transform_15(%arg0: i32) -> (i32, i32) {
    %c0_i32 = arith.constant 0 : i32
    %c0_i32_0 = arith.constant 0 : i32
    %c0_i32_1 = arith.constant 0 : i32
    return %c0_i32, %c0_i32_0 : i32, i32
  }
  func.func @transform_16(%arg0: i32) -> (i32, i32) {
    %c0_i32 = arith.constant 0 : i32
    %c0_i32_0 = arith.constant 0 : i32
    %c0_i32_1 = arith.constant 0 : i32
    return %c0_i32, %c0_i32_0 : i32, i32
  }
  func.func @transform_17(%arg0: i32) -> (i32, i32) {
    %c0_i32 = arith.constant 0 : i32
    %c0_i32_0 = arith.constant 0 : i32
    %c0_i32_1 = arith.constant 0 : i32
    return %c0_i32, %c0_i32_0 : i32, i32
  }
  func.func @transform_18(%arg0: i32) -> (i32, i32) {
    %c0_i32 = arith.constant 0 : i32
    %c0_i32_0 = arith.constant 0 : i32
    %c0_i32_1 = arith.constant 0 : i32
    return %c0_i32, %c0_i32_0 : i32, i32
  }
  func.func @transform_19(%arg0: i32) -> (i32, i32) {
    %c0_i32 = arith.constant 0 : i32
    %c0_i32_0 = arith.constant 0 : i32
    %c0_i32_1 = arith.constant 0 : i32
    return %c0_i32, %c0_i32_0 : i32, i32
  }
  func.func @transform_20(%arg0: i32) -> (i32, i32) {
    %c0_i32 = arith.constant 0 : i32
    %c0_i32_0 = arith.constant 0 : i32
    %c0_i32_1 = arith.constant 0 : i32
    return %c0_i32, %c0_i32_0 : i32, i32
  }
  func.func @transform_21(%arg0: i32) -> (i32, i32) {
    %c0_i32 = arith.constant 0 : i32
    %c0_i32_0 = arith.constant 0 : i32
    %c0_i32_1 = arith.constant 0 : i32
    return %c0_i32, %c0_i32_0 : i32, i32
  }
  func.func @transform_22(%arg0: i32) -> (i32, i32) {
    %c0_i32 = arith.constant 0 : i32
    %c0_i32_0 = arith.constant 0 : i32
    %c0_i32_1 = arith.constant 0 : i32
    return %c0_i32, %c0_i32_0 : i32, i32
  }
  func.func @transform_23(%arg0: i32) -> (i32, i32) {
    %c0_i32 = arith.constant 0 : i32
    %c0_i32_0 = arith.constant 0 : i32
    %c0_i32_1 = arith.constant 0 : i32
    return %c0_i32, %c0_i32_0 : i32, i32
  }
  func.func @transform_24(%arg0: i32) -> (i32, i32) {
    %c0_i32 = arith.constant 0 : i32
    %c0_i32_0 = arith.constant 0 : i32
    %c0_i32_1 = arith.constant 0 : i32
    return %c0_i32, %c0_i32_0 : i32, i32
  }
  func.func @transform_25(%arg0: i32) -> (i32, i32, i32) {
    %c0_i32 = arith.constant 0 : i32
    %c0_i32_0 = arith.constant 0 : i32
    %c0_i32_1 = arith.constant 0 : i32
    return %arg0, %c0_i32, %c0_i32_0 : i32, i32, i32
  }
}

</mosaic_0001>

<llo_original>
// kernel: image_caption_forward.2
$region0: #{image_caption_forward.2}
  #allocation0 [shape = 'u32[]', space=smem, size = 0x4, offset = 0x4, fixed_abs, tag = 'smem constant byte address 0x4 - core index']
  #allocation1 [shape = 'u32[144,128]{1,0:T(1,128)}', space=vmem, size = 0x12000, scoped, tag = 'internal scratch']
  %s0 = inlined_call_operand.vmem [shape: bf16[2,16,192], index: 0, kind: input, shape index: {}]
  %s1 = inlined_call_operand.vmem [shape: bf16[192,128], index: 1, kind: input, shape index: {}]
  %s2 = inlined_call_operand.vmem [shape: f32[1,128], index: 2, kind: input, shape index: {}]
  %s3 = inlined_call_operand.vmem [shape: bf16[128,384], index: 3, kind: input, shape index: {}]
  %s4 = inlined_call_operand.vmem [shape: f32[1,384], index: 4, kind: input, shape index: {}]
  %s5 = inlined_call_operand.vmem [shape: bf16[128,128], index: 5, kind: input, shape index: {}]
  %s6 = inlined_call_operand.vmem [shape: f32[1,128], index: 6, kind: input, shape index: {}]
  %s7 = inlined_call_operand.vmem [shape: f32[1,128], index: 7, kind: input, shape index: {}]
  %s8 = inlined_call_operand.vmem [shape: f32[1,128], index: 8, kind: input, shape index: {}]
  %s9 = inlined_call_operand.vmem [shape: bf16[128,128], index: 9, kind: input, shape index: {}]
  %s10 = inlined_call_operand.vmem [shape: f32[1,128], index: 10, kind: input, shape index: {}]
  %s11 = inlined_call_operand.vmem [shape: f32[1,128], index: 11, kind: input, shape index: {}]
  %s12 = inlined_call_operand.vmem [shape: f32[1,128], index: 12, kind: input, shape index: {}]
  %s13 = inlined_call_operand.vmem [shape: bf16[2,16,128], index: 13, kind: output, shape index: {}]
  %s14 = sld [smem:[#allocation0]]
  $region85: #{image_caption_forward.2} parent=0
    _
  %s16 = ssub.s32 1, %s14
  %s17 = scalar_select 0, %s16, %s14
  loop: start=0, step=1, limit=4
  $region2: #{image_caption_forward.2} parent=0 // loop_pre_header
    _
  $region3: #{image_caption_forward.2} parent=0 // loop_header
    %s19 = sphi 0, %s23
    %p20 = scmp.ge.s32.totalorder %s19, 4
    %s29 = sphi 0, %s31
    %s32 = sphi 0, %s29
    %s33 = sphi 0, %s32
    %s49 = sphi 0, %s33
    %s53 = sphi 0, %s53
    %s55 = sphi 0, %s53
    %s56 = sphi 0, %s55
    %s70 = sphi 0, %s56
    %s74 = sphi 0, %s74
    %s76 = sphi 0, %s74
    %s77 = sphi 0, %s76
    %s91 = sphi 0, %s77
    %s95 = sphi 0, %s95
    %s97 = sphi 0, %s95
    %s98 = sphi 0, %s97
    %s112 = sphi 0, %s98
    %s116 = sphi 0, %s116
    %s118 = sphi 0, %s116
    %s119 = sphi 0, %s118
    %s133 = sphi 0, %s119
    %s137 = sphi 0, %s137
    %s139 = sphi 0, %s137
    %s140 = sphi 0, %s139
    %s154 = sphi 0, %s140
    %s158 = sphi 0, %s158
    %s160 = sphi 0, %s158
    %s161 = sphi 0, %s160
    %s175 = sphi 0, %s161
    %s179 = sphi 0, %s179
    %s181 = sphi 0, %s179
    %s182 = sphi 0, %s181
    %s196 = sphi 0, %s182
    %s200 = sphi 0, %s200
    %s202 = sphi 0, %s200
    %s203 = sphi 0, %s202
    %s217 = sphi 0, %s203
    %s221 = sphi 0, %s221
    %s223 = sphi 0, %s221
    %s224 = sphi 0, %s223
    %s238 = sphi 0, %s224
    %s242 = sphi 0, %s242
    %s244 = sphi 0, %s242
    %s245 = sphi 0, %s244
    %s259 = sphi 0, %s245
    %s263 = sphi 0, %s263
    %s265 = sphi 0, %s263
    %s266 = sphi 0, %s265
    %s280 = sphi 0, %s266
    %s284 = sphi 0, %s284
    %s286 = sphi 0, %s284
    %s287 = sphi 0, %s286
    %s301 = sphi 0, %s287
    %s307 = sphi 0, %s309
    %s310 = sphi 0, %s307
    %s311 = sphi 0, %s310
    %s327 = sphi 0, %s311
  $region4: #{image_caption_forward.2} parent=0 // loop_header_branch
    %22 = sbr.rel (%p20) target = $region8
  $region5: #{image_caption_forward.2} parent=0 // loop_body
    %s24 = ssub.s32 %s19, 1
    %s25 = ssub.s32 %s19, 2
    %s26 = sadd.s32 %s19, 1
    %s27 = ssub.s32 %s19, %s26
    %p28 = scmp.eq.s32.totalorder %s27, 0
    %s30 = sadd.s32 %s29, 1
    %s31 = scalar_select %p28, %s29, %s30
    %p34 = pneg %p28
    %p35 = scmp.eq.s32.totalorder %s19, 1
    %p36 = por %p34, %p35
    %p37 = scmp.ne.s32.totalorder %s29, %s32
    %p38 = scmp.eq.s32.totalorder %s19, 0
    %p39 = por %p37, %p38
    %p40 = scmp.ne.s32.totalorder %s29, %s32
    %p41 = scmp.eq.s32.totalorder %s24, 1
    %p42 = por %p40, %p41
    %p43 = scmp.ne.s32.totalorder %s32, %s33
    %p44 = scmp.eq.s32.totalorder %s24, 0
    %p45 = por %p43, %p44
    %p46 = scmp.ne.s32.totalorder %s32, %s33
    %p47 = scmp.eq.s32.totalorder %s25, 1
    %p48 = por %p46, %p47
    %p50 = scmp.ne.s32.totalorder %s33, %s49
    %p51 = scmp.eq.s32.totalorder %s25, 0
    %p52 = por %p50, %p51
    %s54 = sadd.s32 %s53, 1
    %p57 = scmp.eq.s32.totalorder %s19, 1
    %p58 = scmp.ne.s32.totalorder %s53, %s55
    %p59 = scmp.eq.s32.totalorder %s19, 0
    %p60 = por %p58, %p59
    %p61 = scmp.ne.s32.totalorder %s53, %s55
    %p62 = scmp.eq.s32.totalorder %s24, 1
    %p63 = por %p61, %p62
    %p64 = scmp.ne.s32.totalorder %s55, %s56
    %p65 = scmp.eq.s32.totalorder %s24, 0
    %p66 = por %p64, %p65
    %p67 = scmp.ne.s32.totalorder %s55, %s56
    %p68 = scmp.eq.s32.totalorder %s25, 1
    %p69 = por %p67, %p68
    %p71 = scmp.ne.s32.totalorder %s56, %s70
    %p72 = scmp.eq.s32.totalorder %s25, 0
    %p73 = por %p71, %p72
    %s75 = sadd.s32 %s74, 1
    %p78 = scmp.eq.s32.totalorder %s19, 1
    %p79 = scmp.ne.s32.totalorder %s74, %s76
    %p80 = scmp.eq.s32.totalorder %s19, 0
    %p81 = por %p79, %p80
    %p82 = scmp.ne.s32.totalorder %s74, %s76
    %p83 = scmp.eq.s32.totalorder %s24, 1
    %p84 = por %p82, %p83
    %p85 = scmp.ne.s32.totalorder %s76, %s77
    %p86 = scmp.eq.s32.totalorder %s24, 0
    %p87 = por %p85, %p86
    %p88 = scmp.ne.s32.totalorder %s76, %s77
    %p89 = scmp.eq.s32.totalorder %s25, 1
    %p90 = por %p88, %p89
    %p92 = scmp.ne.s32.totalorder %s77, %s91
    %p93 = scmp.eq.s32.totalorder %s25, 0
    %p94 = por %p92, %p93
    %s96 = sadd.s32 %s95, 1
    %p99 = scmp.eq.s32.totalorder %s19, 1
    %p100 = scmp.ne.s32.totalorder %s95, %s97
    %p101 = scmp.eq.s32.totalorder %s19, 0
    %p102 = por %p100, %p101
    %p103 = scmp.ne.s32.totalorder %s95, %s97
    %p104 = scmp.eq.s32.totalorder %s24, 1
    %p105 = por %p103, %p104
    %p106 = scmp.ne.s32.totalorder %s97, %s98
    %p107 = scmp.eq.s32.totalorder %s24, 0
    %p108 = por %p106, %p107
    %p109 = scmp.ne.s32.totalorder %s97, %s98
    %p110 = scmp.eq.s32.totalorder %s25, 1
    %p111 = por %p109, %p110
    %p113 = scmp.ne.s32.totalorder %s98, %s112
    %p114 = scmp.eq.s32.totalorder %s25, 0
    %p115 = por %p113, %p114
    %s117 = sadd.s32 %s116, 1
    %p120 = scmp.eq.s32.totalorder %s19, 1
    %p121 = scmp.ne.s32.totalorder %s116, %s118
    %p122 = scmp.eq.s32.totalorder %s19, 0
    %p123 = por %p121, %p122
    %p124 = scmp.ne.s32.totalorder %s116, %s118
    %p125 = scmp.eq.s32.totalorder %s24, 1
    %p126 = por %p124, %p125
    %p127 = scmp.ne.s32.totalorder %s118, %s119
    %p128 = scmp.eq.s32.totalorder %s24, 0
    %p129 = por %p127, %p128
    %p130 = scmp.ne.s32.totalorder %s118, %s119
    %p131 = scmp.eq.s32.totalorder %s25, 1
    %p132 = por %p130, %p131
    %p134 = scmp.ne.s32.totalorder %s119, %s133
    %p135 = scmp.eq.s32.totalorder %s25, 0
    %p136 = por %p134, %p135
    %s138 = sadd.s32 %s137, 1
    %p141 = scmp.eq.s32.totalorder %s19, 1
    %p142 = scmp.ne.s32.totalorder %s137, %s139
    %p143 = scmp.eq.s32.totalorder %s19, 0
    %p144 = por %p142, %p143
    %p145 = scmp.ne.s32.totalorder %s137, %s139
    %p146 = scmp.eq.s32.totalorder %s24, 1
    %p147 = por %p145, %p146
    %p148 = scmp.ne.s32.totalorder %s139, %s140
    %p149 = scmp.eq.s32.totalorder %s24, 0
    %p150 = por %p148, %p149
    %p151 = scmp.ne.s32.totalorder %s139, %s140
    %p152 = scmp.eq.s32.totalorder %s25, 1
    %p153 = por %p151, %p152
    %p155 = scmp.ne.s32.totalorder %s140, %s154
    %p156 = scmp.eq.s32.totalorder %s25, 0
    %p157 = por %p155, %p156
    %s159 = sadd.s32 %s158, 1
    %p162 = scmp.eq.s32.totalorder %s19, 1
    %p163 = scmp.ne.s32.totalorder %s158, %s160
    %p164 = scmp.eq.s32.totalorder %s19, 0
    %p165 = por %p163, %p164
    %p166 = scmp.ne.s32.totalorder %s158, %s160
    %p167 = scmp.eq.s32.totalorder %s24, 1
    %p168 = por %p166, %p167
    %p169 = scmp.ne.s32.totalorder %s160, %s161
    %p170 = scmp.eq.s32.totalorder %s24, 0
    %p171 = por %p169, %p170
    %p172 = scmp.ne.s32.totalorder %s160, %s161
    %p173 = scmp.eq.s32.totalorder %s25, 1
    %p174 = por %p172, %p173
    %p176 = scmp.ne.s32.totalorder %s161, %s175
    %p177 = scmp.eq.s32.totalorder %s25, 0
    %p178 = por %p176, %p177
    %s180 = sadd.s32 %s179, 1
    %p183 = scmp.eq.s32.totalorder %s19, 1
    %p184 = scmp.ne.s32.totalorder %s179, %s181
    %p185 = scmp.eq.s32.totalorder %s19, 0
    %p186 = por %p184, %p185
    %p187 = scmp.ne.s32.totalorder %s179, %s181
    %p188 = scmp.eq.s32.totalorder %s24, 1
    %p189 = por %p187, %p188
    %p190 = scmp.ne.s32.totalorder %s181, %s182
    %p191 = scmp.eq.s32.totalorder %s24, 0
    %p192 = por %p190, %p191
    %p193 = scmp.ne.s32.totalorder %s181, %s182
    %p194 = scmp.eq.s32.totalorder %s25, 1
    %p195 = por %p193, %p194
    %p197 = scmp.ne.s32.totalorder %s182, %s196
    %p198 = scmp.eq.s32.totalorder %s25, 0
    %p199 = por %p197, %p198
    %s201 = sadd.s32 %s200, 1
    %p204 = scmp.eq.s32.totalorder %s19, 1
    %p205 = scmp.ne.s32.totalorder %s200, %s202
    %p206 = scmp.eq.s32.totalorder %s19, 0
    %p207 = por %p205, %p206
    %p208 = scmp.ne.s32.totalorder %s200, %s202
    %p209 = scmp.eq.s32.totalorder %s24, 1
    %p210 = por %p208, %p209
    %p211 = scmp.ne.s32.totalorder %s202, %s203
    %p212 = scmp.eq.s32.totalorder %s24, 0
    %p213 = por %p211, %p212
    %p214 = scmp.ne.s32.totalorder %s202, %s203
    %p215 = scmp.eq.s32.totalorder %s25, 1
    %p216 = por %p214, %p215
    %p218 = scmp.ne.s32.totalorder %s203, %s217
    %p219 = scmp.eq.s32.totalorder %s25, 0
    %p220 = por %p218, %p219
    %s222 = sadd.s32 %s221, 1
    %p225 = scmp.eq.s32.totalorder %s19, 1
    %p226 = scmp.ne.s32.totalorder %s221, %s223
    %p227 = scmp.eq.s32.totalorder %s19, 0
    %p228 = por %p226, %p227
    %p229 = scmp.ne.s32.totalorder %s221, %s223
    %p230 = scmp.eq.s32.totalorder %s24, 1
    %p231 = por %p229, %p230
    %p232 = scmp.ne.s32.totalorder %s223, %s224
    %p233 = scmp.eq.s32.totalorder %s24, 0
    %p234 = por %p232, %p233
    %p235 = scmp.ne.s32.totalorder %s223, %s224
    %p236 = scmp.eq.s32.totalorder %s25, 1
    %p237 = por %p235, %p236
    %p239 = scmp.ne.s32.totalorder %s224, %s238
    %p240 = scmp.eq.s32.totalorder %s25, 0
    %p241 = por %p239, %p240
    %s243 = sadd.s32 %s242, 1
    %p246 = scmp.eq.s32.totalorder %s19, 1
    %p247 = scmp.ne.s32.totalorder %s242, %s244
    %p248 = scmp.eq.s32.totalorder %s19, 0
    %p249 = por %p247, %p248
    %p250 = scmp.ne.s32.totalorder %s242, %s244
    %p251 = scmp.eq.s32.totalorder %s24, 1
    %p252 = por %p250, %p251
    %p253 = scmp.ne.s32.totalorder %s244, %s245
    %p254 = scmp.eq.s32.totalorder %s24, 0
    %p255 = por %p253, %p254
    %p256 = scmp.ne.s32.totalorder %s244, %s245
    %p257 = scmp.eq.s32.totalorder %s25, 1
    %p258 = por %p256, %p257
    %p260 = scmp.ne.s32.totalorder %s245, %s259
    %p261 = scmp.eq.s32.totalorder %s25, 0
    %p262 = por %p260, %p261
    %s264 = sadd.s32 %s263, 1
    %p267 = scmp.eq.s32.totalorder %s19, 1
    %p268 = scmp.ne.s32.totalorder %s263, %s265
    %p269 = scmp.eq.s32.totalorder %s19, 0
    %p270 = por %p268, %p269
    %p271 = scmp.ne.s32.totalorder %s263, %s265
    %p272 = scmp.eq.s32.totalorder %s24, 1
    %p273 = por %p271, %p272
    %p274 = scmp.ne.s32.totalorder %s265, %s266
    %p275 = scmp.eq.s32.totalorder %s24, 0
    %p276 = por %p274, %p275
    %p277 = scmp.ne.s32.totalorder %s265, %s266
    %p278 = scmp.eq.s32.totalorder %s25, 1
    %p279 = por %p277, %p278
    %p281 = scmp.ne.s32.totalorder %s266, %s280
    %p282 = scmp.eq.s32.totalorder %s25, 0
    %p283 = por %p281, %p282
    %s285 = sadd.s32 %s284, 1
    %p288 = scmp.eq.s32.totalorder %s19, 1
    %p289 = scmp.ne.s32.totalorder %s284, %s286
    %p290 = scmp.eq.s32.totalorder %s19, 0
    %p291 = por %p289, %p290
    %p292 = scmp.ne.s32.totalorder %s284, %s286
    %p293 = scmp.eq.s32.totalorder %s24, 1
    %p294 = por %p292, %p293
    %p295 = scmp.ne.s32.totalorder %s286, %s287
    %p296 = scmp.eq.s32.totalorder %s24, 0
    %p297 = por %p295, %p296
    %p298 = scmp.ne.s32.totalorder %s286, %s287
    %p299 = scmp.eq.s32.totalorder %s25, 1
    %p300 = por %p298, %p299
    %p302 = scmp.ne.s32.totalorder %s287, %s301
    %p303 = scmp.eq.s32.totalorder %s25, 0
    %p304 = por %p302, %p303
    %s305 = ssub.s32 %s19, %s26
    %p306 = scmp.eq.s32.totalorder %s305, 0
    %s308 = sadd.s32 %s307, 1
    %s309 = scalar_select %p306, %s307, %s308
    %p312 = pneg %p306
    %p313 = scmp.eq.s32.totalorder %s19, 1
    %p314 = por %p312, %p313
    %p315 = scmp.ne.s32.totalorder %s307, %s310
    %p316 = scmp.eq.s32.totalorder %s19, 0
    %p317 = por %p315, %p316
    %p318 = scmp.ne.s32.totalorder %s307, %s310
    %p319 = scmp.eq.s32.totalorder %s24, 1
    %p320 = por %p318, %p319
    %p321 = scmp.ne.s32.totalorder %s310, %s311
    %p322 = scmp.eq.s32.totalorder %s24, 0
    %p323 = por %p321, %p322
    %p324 = scmp.ne.s32.totalorder %s310, %s311
    %p325 = scmp.eq.s32.totalorder %s25, 1
    %p326 = por %p324, %p325
    %p328 = scmp.ne.s32.totalorder %s311, %s327
    %p329 = scmp.eq.s32.totalorder %s25, 0
    %p330 = por %p328, %p329
    %p331 = scmp.le.s32.totalorder 1, %s19
    %p332 = scmp.lt.s32.totalorder %s19, 3
    %p333 = pnand %p331, %p332
    %p334 = pneg %p333
    // Predicated region
    $region9: #{image_caption_forward.2} parent=5 // pred_check
      _
    $region10: #{image_caption_forward.2} parent=5 // pred_check_branch
      %336 = sbr.rel (%p333) target = $region12
    $region11: #{image_caption_forward.2} parent=5 // pred_region
      %s337 = ssub.s32 %s19, 1
      // Predicated region
      $region13: #{image_caption_forward.2} parent=11 // pred_check
        %p338 = pneg %p66
      $region14: #{image_caption_forward.2} parent=11 // pred_check_branch
        %340 = sbr.rel (%p338) target = $region16
      $region15: #{image_caption_forward.2} parent=11 // pred_region
        _
      $region16: #{image_caption_forward.2} parent=11 // pred_fallthru
        _
      // Predicated region
      $region17: #{image_caption_forward.2} parent=11 // pred_check
        %p341 = pneg %p87
      $region18: #{image_caption_forward.2} parent=11 // pred_check_branch
        %343 = sbr.rel (%p341) target = $region20
      $region19: #{image_caption_forward.2} parent=11 // pred_region
        _
      $region20: #{image_caption_forward.2} parent=11 // pred_fallthru
        _
      // Predicated region
      $region21: #{image_caption_forward.2} parent=11 // pred_check
        %p344 = pneg %p108
      $region22: #{image_caption_forward.2} parent=11 // pred_check_branch
        %346 = sbr.rel (%p344) target = $region24
      $region23: #{image_caption_forward.2} parent=11 // pred_region
        _
      $region24: #{image_caption_forward.2} parent=11 // pred_fallthru
        _
      // Predicated region
      $region25: #{image_caption_forward.2} parent=11 // pred_check
        %p347 = pneg %p129
      $region26: #{image_caption_forward.2} parent=11 // pred_check_branch
        %349 = sbr.rel (%p347) target = $region28
      $region27: #{image_caption_forward.2} parent=11 // pred_region
        _
      $region28: #{image_caption_forward.2} parent=11 // pred_fallthru
        _
      // Predicated region
      $region29: #{image_caption_forward.2} parent=11 // pred_check
        %p350 = pneg %p150
      $region30: #{image_caption_forward.2} parent=11 // pred_check_branch
        %352 = sbr.rel (%p350) target = $region32
      $region31: #{image_caption_forward.2} parent=11 // pred_region
        _
      $region32: #{image_caption_forward.2} parent=11 // pred_fallthru
        _
      // Predicated region
      $region33: #{image_caption_forward.2} parent=11 // pred_check
        %p353 = pneg %p171
      $region34: #{image_caption_forward.2} parent=11 // pred_check_branch
        %355 = sbr.rel (%p353) target = $region36
      $region35: #{image_caption_forward.2} parent=11 // pred_region
        _
      $region36: #{image_caption_forward.2} parent=11 // pred_fallthru
        _
      // Predicated region
      $region37: #{image_caption_forward.2} parent=11 // pred_check
        %p356 = pneg %p192
      $region38: #{image_caption_forward.2} parent=11 // pred_check_branch
        %358 = sbr.rel (%p356) target = $region40
      $region39: #{image_caption_forward.2} parent=11 // pred_region
        _
      $region40: #{image_caption_forward.2} parent=11 // pred_fallthru
        _
      // Predicated region
      $region41: #{image_caption_forward.2} parent=11 // pred_check
        %p359 = pneg %p213
      $region42: #{image_caption_forward.2} parent=11 // pred_check_branch
        %361 = sbr.rel (%p359) target = $region44
      $region43: #{image_caption_forward.2} parent=11 // pred_region
        _
      $region44: #{image_caption_forward.2} parent=11 // pred_fallthru
        _
      // Predicated region
      $region45: #{image_caption_forward.2} parent=11 // pred_check
        %p362 = pneg %p234
      $region46: #{image_caption_forward.2} parent=11 // pred_check_branch
        %364 = sbr.rel (%p362) target = $region48
      $region47: #{image_caption_forward.2} parent=11 // pred_region
        _
      $region48: #{image_caption_forward.2} parent=11 // pred_fallthru
        _
      // Predicated region
      $region49: #{image_caption_forward.2} parent=11 // pred_check
        %p365 = pneg %p255
      $region50: #{image_caption_forward.2} parent=11 // pred_check_branch
        %367 = sbr.rel (%p365) target = $region52
      $region51: #{image_caption_forward.2} parent=11 // pred_region
        _
      $region52: #{image_caption_forward.2} parent=11 // pred_fallthru
        _
      // Predicated region
      $region53: #{image_caption_forward.2} parent=11 // pred_check
        %p368 = pneg %p276
      $region54: #{image_caption_forward.2} parent=11 // pred_check_branch
        %370 = sbr.rel (%p368) target = $region56
      $region55: #{image_caption_forward.2} parent=11 // pred_region
        _
      $region56: #{image_caption_forward.2} parent=11 // pred_fallthru
        _
      // Predicated region
      $region57: #{image_caption_forward.2} parent=11 // pred_check
        %p371 = pneg %p297
      $region58: #{image_caption_forward.2} parent=11 // pred_check_branch
        %373 = sbr.rel (%p371) target = $region60
      $region59: #{image_caption_forward.2} parent=11 // pred_region
        _
      $region60: #{image_caption_forward.2} parent=11 // pred_fallthru
        _
    $region12: #{image_caption_forward.2} parent=5 // pred_fallthru
      _
    %p374 = scmp.lt.s32.totalorder %s19, 2
    // Predicated region
    $region61: #{image_caption_forward.2} parent=5 // pred_check
      %p375 = pneg %p374
    $region62: #{image_caption_forward.2} parent=5 // pred_check_branch
      %377 = sbr.rel (%p375) target = $region64
    $region63: #{image_caption_forward.2} parent=5 // pred_region
      // Predicated region
      $region65: #{image_caption_forward.2} parent=63 // pred_check
        %p378 = pneg %p39
      $region66: #{image_caption_forward.2} parent=63 // pred_check_branch
        %380 = sbr.rel (%p378) target = $region68
      $region67: #{image_caption_forward.2} parent=63 // pred_region
        %p381 = scmp.lt.s32.totalorder %s19, 1
        %s382 = scalar_select %p381, %s19, 1
        %s383 = smul.addr %s382, 4
        %s384 = smul.addr %s383, 4
        %s385 = scalar_lea.vmem %s0, %s384
      $region68: #{image_caption_forward.2} parent=63 // pred_fallthru
        _
    $region64: #{image_caption_forward.2} parent=5 // pred_fallthru
      _
    %p386 = scmp.le.s32.totalorder 1, %s19
    %p387 = scmp.lt.s32.totalorder %s19, 3
    %p388 = pnand %p386, %p387
    %p389 = pneg %p388
    // Predicated region
    $region69: #{image_caption_forward.2} parent=5 // pred_check
      _
    $region70: #{image_caption_forward.2} parent=5 // pred_check_branch
      %391 = sbr.rel (%p388) target = $region72
    $region71: #{image_caption_forward.2} parent=5 // pred_region
      %s392 = ssub.s32 %s19, 1
      %p393 = scmp.lt.s32.totalorder %s24, 1
      %s394 = scalar_select %p393, %s24, 1
      %s395 = smul.addr %s394, 4
      %s396 = smul.addr %s395, 4
      %s397 = scalar_lea.vmem %s0, %s396
      %p398 = pneg %p45
      %p399 = pneg %p42
      %p400 = pneg %p66
      %p401 = pneg %p63
      %p402 = pneg %p87
      %p403 = pneg %p84
      %p404 = pneg %p108
      %p405 = pneg %p105
      %p406 = pneg %p129
      %p407 = pneg %p126
      %p408 = pneg %p150
      %p409 = pneg %p147
      %p410 = pneg %p171
      %p411 = pneg %p168
      %p412 = pneg %p192
      %p413 = pneg %p189
      %p414 = pneg %p213
      %p415 = pneg %p210
      %p416 = pneg %p234
      %p417 = pneg %p231
      %p418 = pneg %p255
      %p419 = pneg %p252
      %p420 = pneg %p276
      %p421 = pneg %p273
      %p422 = pneg %p297
      %p423 = pneg %p294
      %p424 = pneg %p323
      %p425 = pneg %p320
      %p426 = scmp.lt.s32.totalorder %s24, 1
      %s427 = scalar_select %p426, %s24, 1
      %s428 = smul.addr %s427, 2
      %s429 = smul.addr %s428, 4
      %s430 = scalar_lea.vmem %s13, %s429
      %p431 = scmp.lt.s32.totalorder %s24, 1
      %s432 = scalar_select %p431, %s24, 1
      %s433 = smul.addr %s432, 4
      %s434 = smul.addr %s433, 4
      %s435 = scalar_lea.vmem %s0, %s434
      %p436 = scmp.lt.s32.totalorder %s24, 1
      %s437 = scalar_select %p436, %s24, 1
      %s438 = smul.addr %s437, 2
      %s439 = smul.addr %s438, 4
      %s440 = scalar_lea.vmem %s13, %s439
      %v442 = vld [vmem:[%s435] sm:$0xff]
      %v443 = vld [vmem:[%s435 + $0x8] sm:$0xff]
      %v444 = vld [vmem:[%s1] sm:$0xf]
      %v445 = vld [vmem:[%s1 + $0x4] sm:$0xf]
      %v446 = vld [vmem:[%s1 + $0x8] sm:$0xf]
      %v447 = vld [vmem:[%s1 + $0xc] sm:$0xf]
      %v448 = vld [vmem:[%s1 + $0x10] sm:$0xf]
      %v449 = vld [vmem:[%s1 + $0x14] sm:$0xf]
      %v450 = vld [vmem:[%s1 + $0x18] sm:$0xf]
      %v451 = vld [vmem:[%s1 + $0x1c] sm:$0xf]
      %v452 = vld [vmem:[%s1 + $0x20] sm:$0xf]
      %v453 = vld [vmem:[%s1 + $0x24] sm:$0xf]
      %v454 = vld [vmem:[%s1 + $0x28] sm:$0xf]
      %v455 = vld [vmem:[%s1 + $0x2c] sm:$0xf]
      %v456 = vld [vmem:[%s1 + $0x30] sm:$0xf]
      %v457 = vld [vmem:[%s1 + $0x34] sm:$0xf]
      %v458 = vld [vmem:[%s1 + $0x38] sm:$0xf]
      %v459 = vld [vmem:[%s1 + $0x3c] sm:$0xf]
      %v460 = vld [vmem:[%s1 + $0x40] sm:$0xf]
      %v461 = vld [vmem:[%s1 + $0x44] sm:$0xf]
      %v462 = vld [vmem:[%s1 + $0x48] sm:$0xf]
      %v463 = vld [vmem:[%s1 + $0x4c] sm:$0xf]
      %v464 = vld [vmem:[%s1 + $0x50] sm:$0xf]
      %v465 = vld [vmem:[%s1 + $0x54] sm:$0xf]
      %v466 = vld [vmem:[%s1 + $0x58] sm:$0xf]
      %v467 = vld [vmem:[%s1 + $0x5c] sm:$0xf]
      %v468 = vld [vmem:[%s2] sm:$0x1]
      %v470 = vlaneseq
      %v471 = vshrl.u32 %v470, 7
      %v472 = vsub.s32 0, %v471
      %v473 = vrot.slane %v468, %v472
      %v477 = vunpack.c.l.b16 %v442
      %v478 = vunpack.c.h.b16 %v442
      %v479 = vunpack.c.l.b16 %v443
      %v480 = vunpack.c.h.b16 %v443
      %v481 = vpack.c.b16 %v479, %v477
      %v482 = vpack.c.b16 %v480, %v478
      %v508 = vunpack.c.l.b16 %v444
      %v509 = vunpack.c.l.b16 %v445
      %v510 = vunpack.c.l.b16 %v446
      %v511 = vunpack.c.l.b16 %v447
      %v512 = vunpack.c.l.b16 %v448
      %v513 = vunpack.c.l.b16 %v449
      %v514 = vunpack.c.l.b16 %v450
      %v515 = vunpack.c.l.b16 %v451
      %v516 = vunpack.c.l.b16 %v452
      %v517 = vunpack.c.l.b16 %v453
      %v518 = vunpack.c.l.b16 %v454
      %v519 = vunpack.c.l.b16 %v455
      %v520 = vunpack.c.l.b16 %v456
      %v521 = vunpack.c.l.b16 %v457
      %v522 = vunpack.c.l.b16 %v458
      %v523 = vunpack.c.l.b16 %v459
      %v524 = vunpack.c.l.b16 %v460
      %v525 = vunpack.c.l.b16 %v461
      %v526 = vunpack.c.l.b16 %v462
      %v527 = vunpack.c.l.b16 %v463
      %v528 = vunpack.c.l.b16 %v464
      %v529 = vunpack.c.l.b16 %v465
      %v530 = vunpack.c.l.b16 %v466
      %v531 = vunpack.c.l.b16 %v467
      %v532 = vpack.c.b16 %v509, %v508
      %v533 = vpack.c.b16 %v511, %v510
      %v534 = vpack.c.b16 %v513, %v512
      %v535 = vpack.c.b16 %v515, %v514
      %v536 = vpack.c.b16 %v517, %v516
      %v537 = vpack.c.b16 %v519, %v518
      %v538 = vpack.c.b16 %v521, %v520
      %v539 = vpack.c.b16 %v523, %v522
      %v540 = vpack.c.b16 %v525, %v524
      %v541 = vpack.c.b16 %v527, %v526
      %v542 = vpack.c.b16 %v529, %v528
      %v543 = vpack.c.b16 %v531, %v530
      %vm556 = vcmask 523264
      %v558 = vsel %vm556, %v482, 0
      %560 = vmatprep.subr.bf16.mxu0 0
      %561 = vmatpush1.bf16.msra.mxu0 %v539
      %562 = vmatprep.subr.bf16.mxu0 0
      %563 = vmatpush1.bf16.msra.mxu0 %v538
      %564 = vmatprep.subr.bf16.mxu0 0
      %565 = vmatpush1.bf16.msra.mxu0 %v537
      %566 = vmatprep.subr.bf16.mxu0 0
      %567 = vmatpush1.bf16.msra.mxu0 %v536
      %568 = vmatprep.subr.bf16.mxu0 0
      %569 = vmatpush1.bf16.msra.mxu0 %v535
      %570 = vmatprep.subr.bf16.mxu0 0
      %571 = vmatpush1.bf16.msra.mxu0 %v534
      %572 = vmatprep.subr.bf16.mxu0 0
      %573 = vmatpush1.bf16.msra.mxu0 %v533
      %574 = vmatprep.subr.bf16.mxu0 0
      %575 = vmatpush1.bf16.msra.mxu0 %v532
      %576 = vmatprep.subr.bf16.mxu0 0
      %577 = vmatpush2.bf16.msra.mxu0 0
      %578 = vmatprep.subr.bf16.mxu0 0
      %579 = vmatpush2.bf16.msra.mxu0 0
      %580 = vmatprep.subr.bf16.mxu0 0
      %581 = vmatpush2.bf16.msra.mxu0 0
      %582 = vmatprep.subr.bf16.mxu0 0
      %583 = vmatpush2.bf16.msra.mxu0 0
      %584 = vmatprep.subr.bf16.mxu0 0
      %585 = vmatpush2.bf16.msra.mxu0 %v543
      %586 = vmatprep.subr.bf16.mxu0 0
      %587 = vmatpush2.bf16.msra.mxu0 %v542
      %588 = vmatprep.subr.bf16.mxu0 0
      %589 = vmatpush2.bf16.msra.mxu0 %v541
      %590 = vmatprep.subr.bf16.mxu0 0
      %591 = vmatpush2.bf16.msra.mxu0 %v540
      %592 = vmatprep.mubr.bf16.mxu0 %v558
      %593 = vmatmul.mubr.bf16.gmra.mxu0 %v481
      %v594 = vpop.f32.mrf.mxu0
      %v595 = vadd.f32 %v473, %v594
      %v596 = vpop.f32.mrf.mxu0
      %v597 = vpop.f32.mrf.mxu0
      %v598 = vadd.f32 %v473, %v597
      %v599 = vpop.f32.mrf.mxu0
      %600 = vdwg.mxu0
      %v601 = vmax.f32 %v595, 0.0
      %v602 = vmax.f32 %v598, 0.0
      %v603 = vpack.c.bf16 %v602, %v601
      %v604 = vld [vmem:[%s3] sm:$0xff]
      %v605 = vld [vmem:[%s3 + $0x8] sm:$0xf]
      %v606 = vld [vmem:[%s3 + $0xc] sm:$0xff]
      %v607 = vld [vmem:[%s3 + $0x14] sm:$0xf]
      %v608 = vld [vmem:[%s3 + $0x18] sm:$0xff]
      %v609 = vld [vmem:[%s3 + $0x20] sm:$0xf]
      %v610 = vld [vmem:[%s3 + $0x24] sm:$0xff]
      %v611 = vld [vmem:[%s3 + $0x2c] sm:$0xf]
      %v612 = vld [vmem:[%s3 + $0x30] sm:$0xff]
      %v613 = vld [vmem:[%s3 + $0x38] sm:$0xf]
      %v614 = vld [vmem:[%s3 + $0x3c] sm:$0xff]
      %v615 = vld [vmem:[%s3 + $0x44] sm:$0xf]
      %v616 = vld [vmem:[%s3 + $0x48] sm:$0xff]
      %v617 = vld [vmem:[%s3 + $0x50] sm:$0xf]
      %v618 = vld [vmem:[%s3 + $0x54] sm:$0xff]
      %v619 = vld [vmem:[%s3 + $0x5c] sm:$0xf]
      %v620 = vld [vmem:[%s3 + $0x60] sm:$0xff]
      %v621 = vld [vmem:[%s3 + $0x68] sm:$0xf]
      %v622 = vld [vmem:[%s3 + $0x6c] sm:$0xff]
      %v623 = vld [vmem:[%s3 + $0x74] sm:$0xf]
      %v624 = vld [vmem:[%s3 + $0x78] sm:$0xff]
      %v625 = vld [vmem:[%s3 + $0x80] sm:$0xf]
      %v626 = vld [vmem:[%s3 + $0x84] sm:$0xff]
      %v627 = vld [vmem:[%s3 + $0x8c] sm:$0xf]
      %v628 = vld [vmem:[%s3 + $0x90] sm:$0xff]
      %v629 = vld [vmem:[%s3 + $0x98] sm:$0xf]
      %v630 = vld [vmem:[%s3 + $0x9c] sm:$0xff]
      %v631 = vld [vmem:[%s3 + $0xa4] sm:$0xf]
      %v632 = vld [vmem:[%s3 + $0xa8] sm:$0xff]
      %v633 = vld [vmem:[%s3 + $0xb0] sm:$0xf]
      %v634 = vld [vmem:[%s3 + $0xb4] sm:$0xff]
      %v635 = vld [vmem:[%s3 + $0xbc] sm:$0xf]
      %v636 = vld [vmem:[%s4] sm:$0x7]
      %v638 = vlaneseq
      %v639 = vshrl.u32 %v638, 7
      %v640 = vsub.s32 0, %v639
      %v641 = vrot.slane %v636, %v640
      %v642 = vlaneseq
      %v643 = vshrl.u32 %v642, 7
      %v644 = vsub.s32 1, %v643
      %v645 = vrot.slane %v636, %v644
      %v646 = vlaneseq
      %v647 = vshrl.u32 %v646, 7
      %v648 = vsub.s32 2, %v647
      %v649 = vrot.slane %v636, %v648
      %v685 = vunpack.c.l.b16 %v604
      %v686 = vunpack.c.h.b16 %v604
      %v687 = vunpack.c.l.b16 %v605
      %v688 = vunpack.c.l.b16 %v606
      %v689 = vunpack.c.h.b16 %v606
      %v690 = vunpack.c.l.b16 %v607
      %v691 = vunpack.c.l.b16 %v608
      %v692 = vunpack.c.h.b16 %v608
      %v693 = vunpack.c.l.b16 %v609
      %v694 = vunpack.c.l.b16 %v610
      %v695 = vunpack.c.h.b16 %v610
      %v696 = vunpack.c.l.b16 %v611
      %v697 = vunpack.c.l.b16 %v612
      %v698 = vunpack.c.h.b16 %v612
      %v699 = vunpack.c.l.b16 %v613
      %v700 = vunpack.c.l.b16 %v614
      %v701 = vunpack.c.h.b16 %v614
      %v702 = vunpack.c.l.b16 %v615
      %v703 = vunpack.c.l.b16 %v616
      %v704 = vunpack.c.h.b16 %v616
      %v705 = vunpack.c.l.b16 %v617
      %v706 = vunpack.c.l.b16 %v618
      %v707 = vunpack.c.h.b16 %v618
      %v708 = vunpack.c.l.b16 %v619
      %v709 = vunpack.c.l.b16 %v620
      %v710 = vunpack.c.h.b16 %v620
      %v711 = vunpack.c.l.b16 %v621
      %v712 = vunpack.c.l.b16 %v622
      %v713 = vunpack.c.h.b16 %v622
      %v714 = vunpack.c.l.b16 %v623
      %v715 = vunpack.c.l.b16 %v624
      %v716 = vunpack.c.h.b16 %v624
      %v717 = vunpack.c.l.b16 %v625
      %v718 = vunpack.c.l.b16 %v626
      %v719 = vunpack.c.h.b16 %v626
      %v720 = vunpack.c.l.b16 %v627
      %v721 = vunpack.c.l.b16 %v628
      %v722 = vunpack.c.h.b16 %v628
      %v723 = vunpack.c.l.b16 %v629
      %v724 = vunpack.c.l.b16 %v630
      %v725 = vunpack.c.h.b16 %v630
      %v726 = vunpack.c.l.b16 %v631
      %v727 = vunpack.c.l.b16 %v632
      %v728 = vunpack.c.h.b16 %v632
      %v729 = vunpack.c.l.b16 %v633
      %v730 = vunpack.c.l.b16 %v634
      %v731 = vunpack.c.h.b16 %v634
      %v732 = vunpack.c.l.b16 %v635
      %v733 = vpack.c.b16 %v688, %v685
      %v734 = vpack.c.b16 %v689, %v686
      %v735 = vpack.c.b16 %v690, %v687
      %v736 = vpack.c.b16 %v694, %v691
      %v737 = vpack.c.b16 %v695, %v692
      %v738 = vpack.c.b16 %v696, %v693
      %v739 = vpack.c.b16 %v700, %v697
      %v740 = vpack.c.b16 %v701, %v698
      %v741 = vpack.c.b16 %v702, %v699
      %v742 = vpack.c.b16 %v706, %v703
      %v743 = vpack.c.b16 %v707, %v704
      %v744 = vpack.c.b16 %v708, %v705
      %v745 = vpack.c.b16 %v712, %v709
      %v746 = vpack.c.b16 %v713, %v710
      %v747 = vpack.c.b16 %v714, %v711
      %v748 = vpack.c.b16 %v718, %v715
      %v749 = vpack.c.b16 %v719, %v716
      %v750 = vpack.c.b16 %v720, %v717
      %v751 = vpack.c.b16 %v724, %v721
      %v752 = vpack.c.b16 %v725, %v722
      %v753 = vpack.c.b16 %v726, %v723
      %v754 = vpack.c.b16 %v730, %v727
      %v755 = vpack.c.b16 %v731, %v728
      %v756 = vpack.c.b16 %v732, %v729
      %781 = vmatprep.subr.bf16.mxu0 %v755
      %782 = vmatpush1.bf16.msra.mxu0 %v754
      %783 = vmatprep.subr.bf16.mxu0 %v752
      %784 = vmatpush1.bf16.msra.mxu0 %v751
      %785 = vmatprep.subr.bf16.mxu0 %v749
      %786 = vmatpush1.bf16.msra.mxu0 %v748
      %787 = vmatprep.subr.bf16.mxu0 %v746
      %788 = vmatpush1.bf16.msra.mxu0 %v745
      %789 = vmatprep.subr.bf16.mxu0 %v743
      %790 = vmatpush1.bf16.msra.mxu0 %v742
      %791 = vmatprep.subr.bf16.mxu0 %v740
      %792 = vmatpush1.bf16.msra.mxu0 %v739
      %793 = vmatprep.subr.bf16.mxu0 %v737
      %794 = vmatpush1.bf16.msra.mxu0 %v736
      %795 = vmatprep.subr.bf16.mxu0 %v734
      %796 = vmatpush1.bf16.msra.mxu0 %v733
      %797 = vmatprep.subr.bf16.mxu0 0
      %798 = vmatpush2.bf16.msra.mxu0 0
      %799 = vmatprep.subr.bf16.mxu0 0
      %800 = vmatpush2.bf16.msra.mxu0 0
      %801 = vmatprep.subr.bf16.mxu0 0
      %802 = vmatpush2.bf16.msra.mxu0 0
      %803 = vmatprep.subr.bf16.mxu0 0
      %804 = vmatpush2.bf16.msra.mxu0 0
      %805 = vmatprep.subr.bf16.mxu0 0
      %806 = vmatpush2.bf16.msra.mxu0 0
      %807 = vmatprep.subr.bf16.mxu0 0
      %808 = vmatpush2.bf16.msra.mxu0 0
      %809 = vmatprep.subr.bf16.mxu0 0
      %810 = vmatpush2.bf16.msra.mxu0 0
      %811 = vmatprep.subr.bf16.mxu0 0
      %812 = vmatpush2.bf16.msra.mxu0 0
      %813 = vmatprep.mubr.bf16.mxu0 0
      %814 = vmatmul.mubr.bf16.gmra.mxu0 %v603
      %v815 = vpop.f32.mrf.mxu0
      %v816 = vadd.f32 %v641, %v815
      %v817 = vpop.f32.mrf.mxu0
      %v818 = vadd.f32 %v645, %v817
      %v819 = vpop.f32.mrf.mxu0
      %v820 = vadd.f32 %v641, %v819
      %v821 = vpop.f32.mrf.mxu0
      %v822 = vadd.f32 %v645, %v821
      %823 = vdwg.mxu0
      %824 = vmatprep.subr.bf16.mxu0 0
      %825 = vmatpush1.bf16.msra.mxu0 %v756
      %826 = vmatprep.subr.bf16.mxu0 0
      %827 = vmatpush1.bf16.msra.mxu0 %v753
      %828 = vmatprep.subr.bf16.mxu0 0
      %829 = vmatpush1.bf16.msra.mxu0 %v750
      %830 = vmatprep.subr.bf16.mxu0 0
      %831 = vmatpush1.bf16.msra.mxu0 %v747
      %832 = vmatprep.subr.bf16.mxu0 0
      %833 = vmatpush1.bf16.msra.mxu0 %v744
      %834 = vmatprep.subr.bf16.mxu0 0
      %835 = vmatpush1.bf16.msra.mxu0 %v741
      %836 = vmatprep.subr.bf16.mxu0 0
      %837 = vmatpush1.bf16.msra.mxu0 %v738
      %838 = vmatprep.subr.bf16.mxu0 0
      %839 = vmatpush1.bf16.msra.mxu0 %v735
      %840 = vmatprep.subr.bf16.mxu0 0
      %841 = vmatpush2.bf16.msra.mxu0 0
      %842 = vmatprep.subr.bf16.mxu0 0
      %843 = vmatpush2.bf16.msra.mxu0 0
      %844 = vmatprep.subr.bf16.mxu0 0
      %845 = vmatpush2.bf16.msra.mxu0 0
      %846 = vmatprep.subr.bf16.mxu0 0
      %847 = vmatpush2.bf16.msra.mxu0 0
      %848 = vmatprep.subr.bf16.mxu0 0
      %849 = vmatpush2.bf16.msra.mxu0 0
      %850 = vmatprep.subr.bf16.mxu0 0
      %851 = vmatpush2.bf16.msra.mxu0 0
      %852 = vmatprep.subr.bf16.mxu0 0
      %853 = vmatpush2.bf16.msra.mxu0 0
      %854 = vmatprep.subr.bf16.mxu0 0
      %855 = vmatpush2.bf16.msra.mxu0 0
      %856 = vmatprep.mubr.bf16.mxu0 0
      %857 = vmatmul.mubr.bf16.gmra.mxu0 %v603
      %v858 = vpop.f32.mrf.mxu0
      %v859 = vadd.f32 %v649, %v858
      %v860 = vpop.f32.mrf.mxu0
      %v861 = vpop.f32.mrf.mxu0
      %v862 = vadd.f32 %v649, %v861
      %v863 = vpop.f32.mrf.mxu0
      %864 = vdwg.mxu0
      %v865 = vpack.c.bf16 %v820, %v816
      %v866 = vpack.c.bf16 %v822, %v818
      %v867 = vpack.c.bf16 %v862, %v859
      %vm868 = vcmask 261120
      %v870 = vsel %vm868, %v865, 0
      %v873 = vsel %vm868, %v866, 0
      %875 = vmatprep.subr.bf16.mxu0 0
      %876 = vmatpush1.bf16.xpose.msra.mxu0 0
      %877 = vmatprep.subr.bf16.mxu0 0
      %878 = vmatpush1.bf16.xpose.msra.mxu0 0
      %879 = vmatprep.subr.bf16.mxu0 0
      %880 = vmatpush1.bf16.xpose.msra.mxu0 0
      %881 = vmatprep.subr.bf16.mxu0 0
      %882 = vmatpush1.bf16.xpose.msra.mxu0 0
      %883 = vmatprep.subr.bf16.mxu0 0
      %884 = vmatpush1.bf16.xpose.msra.mxu0 0
      %885 = vmatprep.subr.bf16.mxu0 0
      %886 = vmatpush1.bf16.xpose.msra.mxu0 0
      %887 = vmatprep.subr.bf16.mxu0 0
      %888 = vmatpush1.bf16.xpose.msra.mxu0 0
      %889 = vmatprep.subr.bf16.mxu0 0
      %890 = vmatpush1.bf16.xpose.msra.mxu0 %v873
      %891 = vmatprep.subr.bf16.mxu0 0
      %892 = vmatpush2.bf16.xpose.msra.mxu0 0
      %893 = vmatprep.subr.bf16.mxu0 0
      %894 = vmatpush2.bf16.xpose.msra.mxu0 0
      %895 = vmatprep.subr.bf16.mxu0 0
      %896 = vmatpush2.bf16.xpose.msra.mxu0 0
      %897 = vmatprep.subr.bf16.mxu0 0
      %898 = vmatpush2.bf16.xpose.msra.mxu0 0
      %899 = vmatprep.subr.bf16.mxu0 0
      %900 = vmatpush2.bf16.xpose.msra.mxu0 0
      %901 = vmatprep.subr.bf16.mxu0 0
      %902 = vmatpush2.bf16.xpose.msra.mxu0 0
      %903 = vmatprep.subr.bf16.mxu0 0
      %904 = vmatpush2.bf16.xpose.msra.mxu0 0
      %905 = vmatprep.subr.bf16.mxu0 0
      %906 = vmatpush2.bf16.xpose.msra.mxu0 0
      %907 = vmatprep.mubr.bf16.mxu0 0
      %908 = vmatmul.mubr.bf16.gmra.mxu0 %v870
      %v909 = vpop.f32.mrf.mxu0
      %v910 = vadd.f32 0.0, %v909
      %v911 = vpop.f32.mrf.mxu0
      %v912 = vpop.f32.mrf.mxu0
      %v913 = vadd.f32 0.0, %v912
      %v914 = vpop.f32.mrf.mxu0
      %915 = vdwg.mxu0
      %vm916 = vcmask 130048
      %v917 = vsel %vm916, %v910, -inf
      %918 = vmax.xlane.f32.xlu0 %v917
      %v919 = vpop.xlane.xlu0 %918
      %v920 = vsel %vm916, %v913, -inf
      %921 = vmax.xlane.f32.xlu0 %v920
      %v922 = vpop.xlane.xlu0 %921
      %v923 = vsub.f32 %v910, %v919
      %v924 = vsub.f32 %v913, %v922
      %v925 = vmul.f32 %v923, 1.442695
      %v926 = vpow.pop %v925
      %v927 = vmul.f32 %v924, 1.442695
      %v928 = vpow.pop %v927
      %v929 = vsel %vm916, %v926, 0.0
      %930 = vadd.xlane.f32.xlu0 %v929
      %v931 = vpop.xlane.xlu0 %930
      %v932 = vsel %vm916, %v928, 0.0
      %933 = vadd.xlane.f32.xlu0 %v932
      %v934 = vpop.xlane.xlu0 %933
      %v935 = vrcp.pop %v931
      %v936 = vrcp.pop %v934
      %v937 = vmul.f32 %v926, %v935
      %v938 = vmul.f32 %v928, %v936
      %v939 = vpack.c.bf16 %v938, %v937
      %v941 = vsel %vm916, %v939, 0
      %943 = vmatprep.subr.bf16.mxu0 0
      %944 = vmatpush1.bf16.msra.mxu0 0
      %945 = vmatprep.subr.bf16.mxu0 0
      %946 = vmatpush1.bf16.msra.mxu0 0
      %947 = vmatprep.subr.bf16.mxu0 0
      %948 = vmatpush1.bf16.msra.mxu0 0
      %949 = vmatprep.subr.bf16.mxu0 0
      %950 = vmatpush1.bf16.msra.mxu0 0
      %951 = vmatprep.subr.bf16.mxu0 0
      %952 = vmatpush1.bf16.msra.mxu0 0
      %953 = vmatprep.subr.bf16.mxu0 0
      %954 = vmatpush1.bf16.msra.mxu0 0
      %955 = vmatprep.subr.bf16.mxu0 0
      %956 = vmatpush1.bf16.msra.mxu0 0
      %957 = vmatprep.subr.bf16.mxu0 0
      %958 = vmatpush1.bf16.msra.mxu0 %v867
      %959 = vmatprep.subr.bf16.mxu0 0
      %960 = vmatpush2.bf16.msra.mxu0 0
      %961 = vmatprep.subr.bf16.mxu0 0
      %962 = vmatpush2.bf16.msra.mxu0 0
      %963 = vmatprep.subr.bf16.mxu0 0
      %964 = vmatpush2.bf16.msra.mxu0 0
      %965 = vmatprep.subr.bf16.mxu0 0
      %966 = vmatpush2.bf16.msra.mxu0 0
      %967 = vmatprep.subr.bf16.mxu0 0
      %968 = vmatpush2.bf16.msra.mxu0 0
      %969 = vmatprep.subr.bf16.mxu0 0
      %970 = vmatpush2.bf16.msra.mxu0 0
      %971 = vmatprep.subr.bf16.mxu0 0
      %972 = vmatpush2.bf16.msra.mxu0 0
      %973 = vmatprep.subr.bf16.mxu0 0
      %974 = vmatpush2.bf16.msra.mxu0 0
      %975 = vmatprep.mubr.bf16.mxu0 0
      %976 = vmatmul.mubr.bf16.gmra.mxu0 %v941
      %v977 = vpop.f32.mrf.mxu0
      %v978 = vadd.f32 0.0, %v977
      %v979 = vpop.f32.mrf.mxu0
      %v980 = vpop.f32.mrf.mxu0
      %v981 = vadd.f32 0.0, %v980
      %v982 = vpop.f32.mrf.mxu0
      %983 = vdwg.mxu0
      %985 = vrot.lane.b32.xlu0 %v865, 96
      %v986 = vpop.permute.xlu0 %985
      %988 = vrot.lane.b32.xlu0 %v866, 96
      %v989 = vpop.permute.xlu0 %988
      %v991 = vsel %vm868, %v986, 0
      %v994 = vsel %vm868, %v989, 0
      %996 = vmatprep.subr.bf16.mxu0 0
      %997 = vmatpush1.bf16.xpose.msra.mxu0 0
      %998 = vmatprep.subr.bf16.mxu0 0
      %999 = vmatpush1.bf16.xpose.msra.mxu0 0
      %1000 = vmatprep.subr.bf16.mxu0 0
      %1001 = vmatpush1.bf16.xpose.msra.mxu0 0
      %1002 = vmatprep.subr.bf16.mxu0 0
      %1003 = vmatpush1.bf16.xpose.msra.mxu0 0
      %1004 = vmatprep.subr.bf16.mxu0 0
      %1005 = vmatpush1.bf16.xpose.msra.mxu0 0
      %1006 = vmatprep.subr.bf16.mxu0 0
      %1007 = vmatpush1.bf16.xpose.msra.mxu0 0
      %1008 = vmatprep.subr.bf16.mxu0 0
      %1009 = vmatpush1.bf16.xpose.msra.mxu0 0
      %1010 = vmatprep.subr.bf16.mxu0 0
      %1011 = vmatpush1.bf16.xpose.msra.mxu0 %v994
      %1012 = vmatprep.subr.bf16.mxu0 0
      %1013 = vmatpush2.bf16.xpose.msra.mxu0 0
      %1014 = vmatprep.subr.bf16.mxu0 0
      %1015 = vmatpush2.bf16.xpose.msra.mxu0 0
      %1016 = vmatprep.subr.bf16.mxu0 0
      %1017 = vmatpush2.bf16.xpose.msra.mxu0 0
      %1018 = vmatprep.subr.bf16.mxu0 0
      %1019 = vmatpush2.bf16.xpose.msra.mxu0 0
      %1020 = vmatprep.subr.bf16.mxu0 0
      %1021 = vmatpush2.bf16.xpose.msra.mxu0 0
      %1022 = vmatprep.subr.bf16.mxu0 0
      %1023 = vmatpush2.bf16.xpose.msra.mxu0 0
      %1024 = vmatprep.subr.bf16.mxu0 0
      %1025 = vmatpush2.bf16.xpose.msra.mxu0 0
      %1026 = vmatprep.subr.bf16.mxu0 0
      %1027 = vmatpush2.bf16.xpose.msra.mxu0 0
      %1028 = vmatprep.mubr.bf16.mxu0 0
      %1029 = vmatmul.mubr.bf16.gmra.mxu0 %v991
      %v1030 = vpop.f32.mrf.mxu0
      %v1031 = vadd.f32 0.0, %v1030
      %v1032 = vpop.f32.mrf.mxu0
      %v1033 = vpop.f32.mrf.mxu0
      %v1034 = vadd.f32 0.0, %v1033
      %v1035 = vpop.f32.mrf.mxu0
      %1036 = vdwg.mxu0
      %v1037 = vsel %vm916, %v1031, -inf
      %1038 = vmax.xlane.f32.xlu0 %v1037
      %v1039 = vpop.xlane.xlu0 %1038
      %v1040 = vsel %vm916, %v1034, -inf
      %1041 = vmax.xlane.f32.xlu0 %v1040
      %v1042 = vpop.xlane.xlu0 %1041
      %v1043 = vsub.f32 %v1031, %v1039
      %v1044 = vsub.f32 %v1034, %v1042
      %v1045 = vmul.f32 %v1043, 1.442695
      %v1046 = vpow.pop %v1045
      %v1047 = vmul.f32 %v1044, 1.442695
      %v1048 = vpow.pop %v1047
      %v1049 = vsel %vm916, %v1046, 0.0
      %1050 = vadd.xlane.f32.xlu0 %v1049
      %v1051 = vpop.xlane.xlu0 %1050
      %v1052 = vsel %vm916, %v1048, 0.0
      %1053 = vadd.xlane.f32.xlu0 %v1052
      %v1054 = vpop.xlane.xlu0 %1053
      %v1055 = vrcp.pop %v1051
      %v1056 = vrcp.pop %v1054
      %v1057 = vmul.f32 %v1046, %v1055
      %v1058 = vmul.f32 %v1048, %v1056
      %v1059 = vpack.c.bf16 %v1058, %v1057
      %1061 = vrot.lane.b32.xlu0 %v867, 96
      %v1062 = vpop.permute.xlu0 %1061
      %v1065 = vsel %vm916, %v1059, 0
      %1067 = vmatprep.subr.bf16.mxu0 0
      %1068 = vmatpush1.bf16.msra.mxu0 0
      %1069 = vmatprep.subr.bf16.mxu0 0
      %1070 = vmatpush1.bf16.msra.mxu0 0
      %1071 = vmatprep.subr.bf16.mxu0 0
      %1072 = vmatpush1.bf16.msra.mxu0 0
      %1073 = vmatprep.subr.bf16.mxu0 0
      %1074 = vmatpush1.bf16.msra.mxu0 0
      %1075 = vmatprep.subr.bf16.mxu0 0
      %1076 = vmatpush1.bf16.msra.mxu0 0
      %1077 = vmatprep.subr.bf16.mxu0 0
      %1078 = vmatpush1.bf16.msra.mxu0 0
      %1079 = vmatprep.subr.bf16.mxu0 0
      %1080 = vmatpush1.bf16.msra.mxu0 0
      %1081 = vmatprep.subr.bf16.mxu0 0
      %1082 = vmatpush1.bf16.msra.mxu0 %v1062
      %1083 = vmatprep.subr.bf16.mxu0 0
      %1084 = vmatpush2.bf16.msra.mxu0 0
      %1085 = vmatprep.subr.bf16.mxu0 0
      %1086 = vmatpush2.bf16.msra.mxu0 0
      %1087 = vmatprep.subr.bf16.mxu0 0
      %1088 = vmatpush2.bf16.msra.mxu0 0
      %1089 = vmatprep.subr.bf16.mxu0 0
      %1090 = vmatpush2.bf16.msra.mxu0 0
      %1091 = vmatprep.subr.bf16.mxu0 0
      %1092 = vmatpush2.bf16.msra.mxu0 0
      %1093 = vmatprep.subr.bf16.mxu0 0
      %1094 = vmatpush2.bf16.msra.mxu0 0
      %1095 = vmatprep.subr.bf16.mxu0 0
      %1096 = vmatpush2.bf16.msra.mxu0 0
      %1097 = vmatprep.subr.bf16.mxu0 0
      %1098 = vmatpush2.bf16.msra.mxu0 0
      %1099 = vmatprep.mubr.bf16.mxu0 0
      %1100 = vmatmul.mubr.bf16.gmra.mxu0 %v1065
      %v1101 = vpop.f32.mrf.mxu0
      %v1102 = vadd.f32 0.0, %v1101
      %v1103 = vpop.f32.mrf.mxu0
      %v1104 = vpop.f32.mrf.mxu0
      %v1105 = vadd.f32 0.0, %v1104
      %v1106 = vpop.f32.mrf.mxu0
      %1107 = vdwg.mxu0
      %1108 = vrot.lane.b32.xlu0 %v865, 64
      %v1109 = vpop.permute.xlu0 %1108
      %1110 = vrot.lane.b32.xlu0 %v866, 64
      %v1111 = vpop.permute.xlu0 %1110
      %v1113 = vsel %vm868, %v1109, 0
      %v1116 = vsel %vm868, %v1111, 0
      %1118 = vmatprep.subr.bf16.mxu0 0
      %1119 = vmatpush1.bf16.xpose.msra.mxu0 0
      %1120 = vmatprep.subr.bf16.mxu0 0
      %1121 = vmatpush1.bf16.xpose.msra.mxu0 0
      %1122 = vmatprep.subr.bf16.mxu0 0
      %1123 = vmatpush1.bf16.xpose.msra.mxu0 0
      %1124 = vmatprep.subr.bf16.mxu0 0
      %1125 = vmatpush1.bf16.xpose.msra.mxu0 0
      %1126 = vmatprep.subr.bf16.mxu0 0
      %1127 = vmatpush1.bf16.xpose.msra.mxu0 0
      %1128 = vmatprep.subr.bf16.mxu0 0
      %1129 = vmatpush1.bf16.xpose.msra.mxu0 0
      %1130 = vmatprep.subr.bf16.mxu0 0
      %1131 = vmatpush1.bf16.xpose.msra.mxu0 0
      %1132 = vmatprep.subr.bf16.mxu0 0
      %1133 = vmatpush1.bf16.xpose.msra.mxu0 %v1116
      %1134 = vmatprep.subr.bf16.mxu0 0
      %1135 = vmatpush2.bf16.xpose.msra.mxu0 0
      %1136 = vmatprep.subr.bf16.mxu0 0
      %1137 = vmatpush2.bf16.xpose.msra.mxu0 0
      %1138 = vmatprep.subr.bf16.mxu0 0
      %1139 = vmatpush2.bf16.xpose.msra.mxu0 0
      %1140 = vmatprep.subr.bf16.mxu0 0
      %1141 = vmatpush2.bf16.xpose.msra.mxu0 0
      %1142 = vmatprep.subr.bf16.mxu0 0
      %1143 = vmatpush2.bf16.xpose.msra.mxu0 0
      %1144 = vmatprep.subr.bf16.mxu0 0
      %1145 = vmatpush2.bf16.xpose.msra.mxu0 0
      %1146 = vmatprep.subr.bf16.mxu0 0
      %1147 = vmatpush2.bf16.xpose.msra.mxu0 0
      %1148 = vmatprep.subr.bf16.mxu0 0
      %1149 = vmatpush2.bf16.xpose.msra.mxu0 0
      %1150 = vmatprep.mubr.bf16.mxu0 0
      %1151 = vmatmul.mubr.bf16.gmra.mxu0 %v1113
      %v1152 = vpop.f32.mrf.mxu0
      %v1153 = vadd.f32 0.0, %v1152
      %v1154 = vpop.f32.mrf.mxu0
      %v1155 = vpop.f32.mrf.mxu0
      %v1156 = vadd.f32 0.0, %v1155
      %v1157 = vpop.f32.mrf.mxu0
      %1158 = vdwg.mxu0
      %v1159 = vsel %vm916, %v1153, -inf
      %1160 = vmax.xlane.f32.xlu0 %v1159
      %v1161 = vpop.xlane.xlu0 %1160
      %v1162 = vsel %vm916, %v1156, -inf
      %1163 = vmax.xlane.f32.xlu0 %v1162
      %v1164 = vpop.xlane.xlu0 %1163
      %v1165 = vsub.f32 %v1153, %v1161
      %v1166 = vsub.f32 %v1156, %v1164
      %v1167 = vmul.f32 %v1165, 1.442695
      %v1168 = vpow.pop %v1167
      %v1169 = vmul.f32 %v1166, 1.442695
      %v1170 = vpow.pop %v1169
      %v1171 = vsel %vm916, %v1168, 0.0
      %1172 = vadd.xlane.f32.xlu0 %v1171
      %v1173 = vpop.xlane.xlu0 %1172
      %v1174 = vsel %vm916, %v1170, 0.0
      %1175 = vadd.xlane.f32.xlu0 %v1174
      %v1176 = vpop.xlane.xlu0 %1175
      %v1177 = vrcp.pop %v1173
      %v1178 = vrcp.pop %v1176
      %v1179 = vmul.f32 %v1168, %v1177
      %v1180 = vmul.f32 %v1170, %v1178
      %v1181 = vpack.c.bf16 %v1180, %v1179
      %1182 = vrot.lane.b32.xlu0 %v867, 64
      %v1183 = vpop.permute.xlu0 %1182
      %v1186 = vsel %vm916, %v1181, 0
      %1188 = vmatprep.subr.bf16.mxu0 0
      %1189 = vmatpush1.bf16.msra.mxu0 0
      %1190 = vmatprep.subr.bf16.mxu0 0
      %1191 = vmatpush1.bf16.msra.mxu0 0
      %1192 = vmatprep.subr.bf16.mxu0 0
      %1193 = vmatpush1.bf16.msra.mxu0 0
      %1194 = vmatprep.subr.bf16.mxu0 0
      %1195 = vmatpush1.bf16.msra.mxu0 0
      %1196 = vmatprep.subr.bf16.mxu0 0
      %1197 = vmatpush1.bf16.msra.mxu0 0
      %1198 = vmatprep.subr.bf16.mxu0 0
      %1199 = vmatpush1.bf16.msra.mxu0 0
      %1200 = vmatprep.subr.bf16.mxu0 0
      %1201 = vmatpush1.bf16.msra.mxu0 0
      %1202 = vmatprep.subr.bf16.mxu0 0
      %1203 = vmatpush1.bf16.msra.mxu0 %v1183
      %1204 = vmatprep.subr.bf16.mxu0 0
      %1205 = vmatpush2.bf16.msra.mxu0 0
      %1206 = vmatprep.subr.bf16.mxu0 0
      %1207 = vmatpush2.bf16.msra.mxu0 0
      %1208 = vmatprep.subr.bf16.mxu0 0
      %1209 = vmatpush2.bf16.msra.mxu0 0
      %1210 = vmatprep.subr.bf16.mxu0 0
      %1211 = vmatpush2.bf16.msra.mxu0 0
      %1212 = vmatprep.subr.bf16.mxu0 0
      %1213 = vmatpush2.bf16.msra.mxu0 0
      %1214 = vmatprep.subr.bf16.mxu0 0
      %1215 = vmatpush2.bf16.msra.mxu0 0
      %1216 = vmatprep.subr.bf16.mxu0 0
      %1217 = vmatpush2.bf16.msra.mxu0 0
      %1218 = vmatprep.subr.bf16.mxu0 0
      %1219 = vmatpush2.bf16.msra.mxu0 0
      %1220 = vmatprep.mubr.bf16.mxu0 0
      %1221 = vmatmul.mubr.bf16.gmra.mxu0 %v1186
      %v1222 = vpop.f32.mrf.mxu0
      %v1223 = vadd.f32 0.0, %v1222
      %v1224 = vpop.f32.mrf.mxu0
      %v1225 = vpop.f32.mrf.mxu0
      %v1226 = vadd.f32 0.0, %v1225
      %v1227 = vpop.f32.mrf.mxu0
      %1228 = vdwg.mxu0
      %1229 = vrot.lane.b32.xlu0 %v865, 32
      %v1230 = vpop.permute.xlu0 %1229
      %1231 = vrot.lane.b32.xlu0 %v866, 32
      %v1232 = vpop.permute.xlu0 %1231
      %v1234 = vsel %vm868, %v1230, 0
      %v1237 = vsel %vm868, %v1232, 0
      %1239 = vmatprep.subr.bf16.mxu0 0
      %1240 = vmatpush1.bf16.xpose.msra.mxu0 0
      %1241 = vmatprep.subr.bf16.mxu0 0
      %1242 = vmatpush1.bf16.xpose.msra.mxu0 0
      %1243 = vmatprep.subr.bf16.mxu0 0
      %1244 = vmatpush1.bf16.xpose.msra.mxu0 0
      %1245 = vmatprep.subr.bf16.mxu0 0
      %1246 = vmatpush1.bf16.xpose.msra.mxu0 0
      %1247 = vmatprep.subr.bf16.mxu0 0
      %1248 = vmatpush1.bf16.xpose.msra.mxu0 0
      %1249 = vmatprep.subr.bf16.mxu0 0
      %1250 = vmatpush1.bf16.xpose.msra.mxu0 0
      %1251 = vmatprep.subr.bf16.mxu0 0
      %1252 = vmatpush1.bf16.xpose.msra.mxu0 0
      %1253 = vmatprep.subr.bf16.mxu0 0
      %1254 = vmatpush1.bf16.xpose.msra.mxu0 %v1237
      %1255 = vmatprep.subr.bf16.mxu0 0
      %1256 = vmatpush2.bf16.xpose.msra.mxu0 0
      %1257 = vmatprep.subr.bf16.mxu0 0
      %1258 = vmatpush2.bf16.xpose.msra.mxu0 0
      %1259 = vmatprep.subr.bf16.mxu0 0
      %1260 = vmatpush2.bf16.xpose.msra.mxu0 0
      %1261 = vmatprep.subr.bf16.mxu0 0
      %1262 = vmatpush2.bf16.xpose.msra.mxu0 0
      %1263 = vmatprep.subr.bf16.mxu0 0
      %1264 = vmatpush2.bf16.xpose.msra.mxu0 0
      %1265 = vmatprep.subr.bf16.mxu0 0
      %1266 = vmatpush2.bf16.xpose.msra.mxu0 0
      %1267 = vmatprep.subr.bf16.mxu0 0
      %1268 = vmatpush2.bf16.xpose.msra.mxu0 0
      %1269 = vmatprep.subr.bf16.mxu0 0
      %1270 = vmatpush2.bf16.xpose.msra.mxu0 0
      %1271 = vmatprep.mubr.bf16.mxu0 0
      %1272 = vmatmul.mubr.bf16.gmra.mxu0 %v1234
      %v1273 = vpop.f32.mrf.mxu0
      %v1274 = vadd.f32 0.0, %v1273
      %v1275 = vpop.f32.mrf.mxu0
      %v1276 = vpop.f32.mrf.mxu0
      %v1277 = vadd.f32 0.0, %v1276
      %v1278 = vpop.f32.mrf.mxu0
      %1279 = vdwg.mxu0
      %v1280 = vsel %vm916, %v1274, -inf
      %1281 = vmax.xlane.f32.xlu0 %v1280
      %v1282 = vpop.xlane.xlu0 %1281
      %v1283 = vsel %vm916, %v1277, -inf
      %1284 = vmax.xlane.f32.xlu0 %v1283
      %v1285 = vpop.xlane.xlu0 %1284
      %v1286 = vsub.f32 %v1274, %v1282
      %v1287 = vsub.f32 %v1277, %v1285
      %v1288 = vmul.f32 %v1286, 1.442695
      %v1289 = vpow.pop %v1288
      %v1290 = vmul.f32 %v1287, 1.442695
      %v1291 = vpow.pop %v1290
      %v1292 = vsel %vm916, %v1289, 0.0
      %1293 = vadd.xlane.f32.xlu0 %v1292
      %v1294 = vpop.xlane.xlu0 %1293
      %v1295 = vsel %vm916, %v1291, 0.0
      %1296 = vadd.xlane.f32.xlu0 %v1295
      %v1297 = vpop.xlane.xlu0 %1296
      %v1298 = vrcp.pop %v1294
      %v1299 = vrcp.pop %v1297
      %v1300 = vmul.f32 %v1289, %v1298
      %v1301 = vmul.f32 %v1291, %v1299
      %v1302 = vpack.c.bf16 %v1301, %v1300
      %1303 = vrot.lane.b32.xlu0 %v867, 32
      %v1304 = vpop.permute.xlu0 %1303
      %v1307 = vsel %vm916, %v1302, 0
      %1309 = vmatprep.subr.bf16.mxu0 0
      %1310 = vmatpush1.bf16.msra.mxu0 0
      %1311 = vmatprep.subr.bf16.mxu0 0
      %1312 = vmatpush1.bf16.msra.mxu0 0
      %1313 = vmatprep.subr.bf16.mxu0 0
      %1314 = vmatpush1.bf16.msra.mxu0 0
      %1315 = vmatprep.subr.bf16.mxu0 0
      %1316 = vmatpush1.bf16.msra.mxu0 0
      %1317 = vmatprep.subr.bf16.mxu0 0
      %1318 = vmatpush1.bf16.msra.mxu0 0
      %1319 = vmatprep.subr.bf16.mxu0 0
      %1320 = vmatpush1.bf16.msra.mxu0 0
      %1321 = vmatprep.subr.bf16.mxu0 0
      %1322 = vmatpush1.bf16.msra.mxu0 0
      %1323 = vmatprep.subr.bf16.mxu0 0
      %1324 = vmatpush1.bf16.msra.mxu0 %v1304
      %1325 = vmatprep.subr.bf16.mxu0 0
      %1326 = vmatpush2.bf16.msra.mxu0 0
      %1327 = vmatprep.subr.bf16.mxu0 0
      %1328 = vmatpush2.bf16.msra.mxu0 0
      %1329 = vmatprep.subr.bf16.mxu0 0
      %1330 = vmatpush2.bf16.msra.mxu0 0
      %1331 = vmatprep.subr.bf16.mxu0 0
      %1332 = vmatpush2.bf16.msra.mxu0 0
      %1333 = vmatprep.subr.bf16.mxu0 0
      %1334 = vmatpush2.bf16.msra.mxu0 0
      %1335 = vmatprep.subr.bf16.mxu0 0
      %1336 = vmatpush2.bf16.msra.mxu0 0
      %1337 = vmatprep.subr.bf16.mxu0 0
      %1338 = vmatpush2.bf16.msra.mxu0 0
      %1339 = vmatprep.subr.bf16.mxu0 0
      %1340 = vmatpush2.bf16.msra.mxu0 0
      %1341 = vmatprep.mubr.bf16.mxu0 0
      %1342 = vmatmul.mubr.bf16.gmra.mxu0 %v1307
      %v1343 = vpop.f32.mrf.mxu0
      %v1344 = vadd.f32 0.0, %v1343
      %v1345 = vpop.f32.mrf.mxu0
      %v1346 = vpop.f32.mrf.mxu0
      %v1347 = vadd.f32 0.0, %v1346
      %v1348 = vpop.f32.mrf.mxu0
      %1349 = vdwg.mxu0
      %1352 = vrot.lane.b32.xlu0 %v1102, 32
      %v1353 = vpop.permute.xlu0 %1352
      %1354 = vrot.lane.b32.xlu0 %v1105, 32
      %v1355 = vpop.permute.xlu0 %1354
      %1360 = vrot.lane.b32.xlu0 %v1223, 64
      %v1361 = vpop.permute.xlu0 %1360
      %1362 = vrot.lane.b32.xlu0 %v1226, 64
      %v1363 = vpop.permute.xlu0 %1362
      %1368 = vrot.lane.b32.xlu0 %v1344, 96
      %v1369 = vpop.permute.xlu0 %1368
      %1370 = vrot.lane.b32.xlu0 %v1347, 96
      %v1371 = vpop.permute.xlu0 %1370
      %v1374 = vsel %vm868, %v978, %v1353
      %v1375 = vsel %vm868, %v981, %v1355
      %v1376 = vsel %vm556, %v1374, %v1361
      %v1377 = vsel %vm556, %v1375, %v1363
      %vm1378 = vcmask 785408
      %v1379 = vsel %vm1378, %v1376, %v1369
      %v1380 = vsel %vm1378, %v1377, %v1371
      %v1381 = vpack.c.bf16 %v1380, %v1379
      %v1382 = vld [vmem:[%s5] sm:$0xf]
      %v1383 = vld [vmem:[%s5 + $0x4] sm:$0xf]
      %v1384 = vld [vmem:[%s5 + $0x8] sm:$0xf]
      %v1385 = vld [vmem:[%s5 + $0xc] sm:$0xf]
      %v1386 = vld [vmem:[%s5 + $0x10] sm:$0xf]
      %v1387 = vld [vmem:[%s5 + $0x14] sm:$0xf]
      %v1388 = vld [vmem:[%s5 + $0x18] sm:$0xf]
      %v1389 = vld [vmem:[%s5 + $0x1c] sm:$0xf]
      %v1390 = vld [vmem:[%s5 + $0x20] sm:$0xf]
      %v1391 = vld [vmem:[%s5 + $0x24] sm:$0xf]
      %v1392 = vld [vmem:[%s5 + $0x28] sm:$0xf]
      %v1393 = vld [vmem:[%s5 + $0x2c] sm:$0xf]
      %v1394 = vld [vmem:[%s5 + $0x30] sm:$0xf]
      %v1395 = vld [vmem:[%s5 + $0x34] sm:$0xf]
      %v1396 = vld [vmem:[%s5 + $0x38] sm:$0xf]
      %v1397 = vld [vmem:[%s5 + $0x3c] sm:$0xf]
      %v1398 = vld [vmem:[%s6] sm:$0x1]
      %v1400 = vlaneseq
      %v1401 = vshrl.u32 %v1400, 7
      %v1402 = vsub.s32 0, %v1401
      %v1403 = vrot.slane %v1398, %v1402
      %v1421 = vunpack.c.l.b16 %v1382
      %v1422 = vunpack.c.l.b16 %v1383
      %v1423 = vunpack.c.l.b16 %v1384
      %v1424 = vunpack.c.l.b16 %v1385
      %v1425 = vunpack.c.l.b16 %v1386
      %v1426 = vunpack.c.l.b16 %v1387
      %v1427 = vunpack.c.l.b16 %v1388
      %v1428 = vunpack.c.l.b16 %v1389
      %v1429 = vunpack.c.l.b16 %v1390
      %v1430 = vunpack.c.l.b16 %v1391
      %v1431 = vunpack.c.l.b16 %v1392
      %v1432 = vunpack.c.l.b16 %v1393
      %v1433 = vunpack.c.l.b16 %v1394
      %v1434 = vunpack.c.l.b16 %v1395
      %v1435 = vunpack.c.l.b16 %v1396
      %v1436 = vunpack.c.l.b16 %v1397
      %v1437 = vpack.c.b16 %v1422, %v1421
      %v1438 = vpack.c.b16 %v1424, %v1423
      %v1439 = vpack.c.b16 %v1426, %v1425
      %v1440 = vpack.c.b16 %v1428, %v1427
      %v1441 = vpack.c.b16 %v1430, %v1429
      %v1442 = vpack.c.b16 %v1432, %v1431
      %v1443 = vpack.c.b16 %v1434, %v1433
      %v1444 = vpack.c.b16 %v1436, %v1435
      %1453 = vmatprep.subr.bf16.mxu0 0
      %1454 = vmatpush1.bf16.msra.mxu0 %v1444
      %1455 = vmatprep.subr.bf16.mxu0 0
      %1456 = vmatpush1.bf16.msra.mxu0 %v1443
      %1457 = vmatprep.subr.bf16.mxu0 0
      %1458 = vmatpush1.bf16.msra.mxu0 %v1442
      %1459 = vmatprep.subr.bf16.mxu0 0
      %1460 = vmatpush1.bf16.msra.mxu0 %v1441
      %1461 = vmatprep.subr.bf16.mxu0 0
      %1462 = vmatpush1.bf16.msra.mxu0 %v1440
      %1463 = vmatprep.subr.bf16.mxu0 0
      %1464 = vmatpush1.bf16.msra.mxu0 %v1439
      %1465 = vmatprep.subr.bf16.mxu0 0
      %1466 = vmatpush1.bf16.msra.mxu0 %v1438
      %1467 = vmatprep.subr.bf16.mxu0 0
      %1468 = vmatpush1.bf16.msra.mxu0 %v1437
      %1469 = vmatprep.subr.bf16.mxu0 0
      %1470 = vmatpush2.bf16.msra.mxu0 0
      %1471 = vmatprep.subr.bf16.mxu0 0
      %1472 = vmatpush2.bf16.msra.mxu0 0
      %1473 = vmatprep.subr.bf16.mxu0 0
      %1474 = vmatpush2.bf16.msra.mxu0 0
      %1475 = vmatprep.subr.bf16.mxu0 0
      %1476 = vmatpush2.bf16.msra.mxu0 0
      %1477 = vmatprep.subr.bf16.mxu0 0
      %1478 = vmatpush2.bf16.msra.mxu0 0
      %1479 = vmatprep.subr.bf16.mxu0 0
      %1480 = vmatpush2.bf16.msra.mxu0 0
      %1481 = vmatprep.subr.bf16.mxu0 0
      %1482 = vmatpush2.bf16.msra.mxu0 0
      %1483 = vmatprep.subr.bf16.mxu0 0
      %1484 = vmatpush2.bf16.msra.mxu0 0
      %1485 = vmatprep.mubr.bf16.mxu0 0
      %1486 = vmatmul.mubr.bf16.gmra.mxu0 %v1381
      %v1487 = vpop.f32.mrf.mxu0
      %v1488 = vadd.f32 %v1403, %v1487
      %v1489 = vpop.f32.mrf.mxu0
      %v1490 = vpop.f32.mrf.mxu0
      %v1491 = vadd.f32 %v1403, %v1490
      %v1492 = vpop.f32.mrf.mxu0
      %1493 = vdwg.mxu0
      %v1494 = vadd.f32 %v601, %v1488
      %v1495 = vadd.f32 %v602, %v1491
      %v1496 = vld [vmem:[%s7] sm:$0x1]
      %v1497 = vld [vmem:[%s8] sm:$0x1]
      %1498 = vadd.xlane.f32.xlu0 %v1494
      %v1499 = vpop.xlane.xlu0 %1498
      %1500 = vadd.xlane.f32.xlu0 %v1495
      %v1501 = vpop.xlane.xlu0 %1500
      %v1502 = vrcp.pop 128.0
      %v1503 = vmul.f32 %v1499, %v1502
      %v1504 = vmul.f32 %v1501, %v1502
      %v1505 = vsub.f32 %v1494, %v1503
      %v1506 = vsub.f32 %v1495, %v1504
      %v1507 = vmul.f32 %v1505, %v1505
      %v1508 = vmul.f32 %v1506, %v1506
      %1509 = vadd.xlane.f32.xlu0 %v1507
      %v1510 = vpop.xlane.xlu0 %1509
      %1511 = vadd.xlane.f32.xlu0 %v1508
      %v1512 = vpop.xlane.xlu0 %1511
      %v1513 = vmul.f32 %v1510, %v1502
      %v1514 = vmul.f32 %v1512, %v1502
      %v1515 = vadd.f32 %v1513, 1e-05
      %v1516 = vadd.f32 %v1514, 1e-05
      %v1517 = vrsqrt.pop %v1515
      %v1518 = vrsqrt.pop %v1516
      %v1519 = vmul.f32 %v1505, %v1517
      %v1520 = vmul.f32 %v1506, %v1518
      %v1522 = vlaneseq
      %v1523 = vshrl.u32 %v1522, 7
      %v1524 = vsub.s32 0, %v1523
      %v1525 = vrot.slane %v1496, %v1524
      %v1527 = vmul.f32 %v1519, %v1525
      %v1528 = vmul.f32 %v1520, %v1525
      %v1530 = vlaneseq
      %v1531 = vshrl.u32 %v1530, 7
      %v1532 = vsub.s32 0, %v1531
      %v1533 = vrot.slane %v1497, %v1532
      %v1535 = vadd.f32 %v1527, %v1533
      %v1536 = vadd.f32 %v1528, %v1533
      %v1537 = vpack.c.bf16 %v1536, %v1535
      %v1538 = vld [vmem:[%s9] sm:$0xf]
      %v1539 = vld [vmem:[%s9 + $0x4] sm:$0xf]
      %v1540 = vld [vmem:[%s9 + $0x8] sm:$0xf]
      %v1541 = vld [vmem:[%s9 + $0xc] sm:$0xf]
      %v1542 = vld [vmem:[%s9 + $0x10] sm:$0xf]
      %v1543 = vld [vmem:[%s9 + $0x14] sm:$0xf]
      %v1544 = vld [vmem:[%s9 + $0x18] sm:$0xf]
      %v1545 = vld [vmem:[%s9 + $0x1c] sm:$0xf]
      %v1546 = vld [vmem:[%s9 + $0x20] sm:$0xf]
      %v1547 = vld [vmem:[%s9 + $0x24] sm:$0xf]
      %v1548 = vld [vmem:[%s9 + $0x28] sm:$0xf]
      %v1549 = vld [vmem:[%s9 + $0x2c] sm:$0xf]
      %v1550 = vld [vmem:[%s9 + $0x30] sm:$0xf]
      %v1551 = vld [vmem:[%s9 + $0x34] sm:$0xf]
      %v1552 = vld [vmem:[%s9 + $0x38] sm:$0xf]
      %v1553 = vld [vmem:[%s9 + $0x3c] sm:$0xf]
      %v1554 = vld [vmem:[%s10] sm:$0x1]
      %v1556 = vlaneseq
      %v1557 = vshrl.u32 %v1556, 7
      %v1558 = vsub.s32 0, %v1557
      %v1559 = vrot.slane %v1554, %v1558
      %v1577 = vunpack.c.l.b16 %v1538
      %v1578 = vunpack.c.l.b16 %v1539
      %v1579 = vunpack.c.l.b16 %v1540
      %v1580 = vunpack.c.l.b16 %v1541
      %v1581 = vunpack.c.l.b16 %v1542
      %v1582 = vunpack.c.l.b16 %v1543
      %v1583 = vunpack.c.l.b16 %v1544
      %v1584 = vunpack.c.l.b16 %v1545
      %v1585 = vunpack.c.l.b16 %v1546
      %v1586 = vunpack.c.l.b16 %v1547
      %v1587 = vunpack.c.l.b16 %v1548
      %v1588 = vunpack.c.l.b16 %v1549
      %v1589 = vunpack.c.l.b16 %v1550
      %v1590 = vunpack.c.l.b16 %v1551
      %v1591 = vunpack.c.l.b16 %v1552
      %v1592 = vunpack.c.l.b16 %v1553
      %v1593 = vpack.c.b16 %v1578, %v1577
      %v1594 = vpack.c.b16 %v1580, %v1579
      %v1595 = vpack.c.b16 %v1582, %v1581
      %v1596 = vpack.c.b16 %v1584, %v1583
      %v1597 = vpack.c.b16 %v1586, %v1585
      %v1598 = vpack.c.b16 %v1588, %v1587
      %v1599 = vpack.c.b16 %v1590, %v1589
      %v1600 = vpack.c.b16 %v1592, %v1591
      %1609 = vmatprep.subr.bf16.mxu0 0
      %1610 = vmatpush1.bf16.msra.mxu0 %v1600
      %1611 = vmatprep.subr.bf16.mxu0 0
      %1612 = vmatpush1.bf16.msra.mxu0 %v1599
      %1613 = vmatprep.subr.bf16.mxu0 0
      %1614 = vmatpush1.bf16.msra.mxu0 %v1598
      %1615 = vmatprep.subr.bf16.mxu0 0
      %1616 = vmatpush1.bf16.msra.mxu0 %v1597
      %1617 = vmatprep.subr.bf16.mxu0 0
      %1618 = vmatpush1.bf16.msra.mxu0 %v1596
      %1619 = vmatprep.subr.bf16.mxu0 0
      %1620 = vmatpush1.bf16.msra.mxu0 %v1595
      %1621 = vmatprep.subr.bf16.mxu0 0
      %1622 = vmatpush1.bf16.msra.mxu0 %v1594
      %1623 = vmatprep.subr.bf16.mxu0 0
      %1624 = vmatpush1.bf16.msra.mxu0 %v1593
      %1625 = vmatprep.subr.bf16.mxu0 0
      %1626 = vmatpush2.bf16.msra.mxu0 0
      %1627 = vmatprep.subr.bf16.mxu0 0
      %1628 = vmatpush2.bf16.msra.mxu0 0
      %1629 = vmatprep.subr.bf16.mxu0 0
      %1630 = vmatpush2.bf16.msra.mxu0 0
      %1631 = vmatprep.subr.bf16.mxu0 0
      %1632 = vmatpush2.bf16.msra.mxu0 0
      %1633 = vmatprep.subr.bf16.mxu0 0
      %1634 = vmatpush2.bf16.msra.mxu0 0
      %1635 = vmatprep.subr.bf16.mxu0 0
      %1636 = vmatpush2.bf16.msra.mxu0 0
      %1637 = vmatprep.subr.bf16.mxu0 0
      %1638 = vmatpush2.bf16.msra.mxu0 0
      %1639 = vmatprep.subr.bf16.mxu0 0
      %1640 = vmatpush2.bf16.msra.mxu0 0
      %1641 = vmatprep.mubr.bf16.mxu0 0
      %1642 = vmatmul.mubr.bf16.gmra.mxu0 %v1537
      %v1643 = vpop.f32.mrf.mxu0
      %v1644 = vadd.f32 %v1559, %v1643
      %v1645 = vpop.f32.mrf.mxu0
      %v1646 = vpop.f32.mrf.mxu0
      %v1647 = vadd.f32 %v1559, %v1646
      %v1648 = vpop.f32.mrf.mxu0
      %1649 = vdwg.mxu0
      %v1650 = vmax.f32 %v1644, 0.0
      %v1651 = vmax.f32 %v1647, 0.0
      %v1652 = vadd.f32 %v1535, %v1650
      %v1653 = vadd.f32 %v1536, %v1651
      %v1654 = vld [vmem:[%s11] sm:$0x1]
      %v1655 = vld [vmem:[%s12] sm:$0x1]
      %1656 = vadd.xlane.f32.xlu0 %v1652
      %v1657 = vpop.xlane.xlu0 %1656
      %1658 = vadd.xlane.f32.xlu0 %v1653
      %v1659 = vpop.xlane.xlu0 %1658
      %v1660 = vmul.f32 %v1657, %v1502
      %v1661 = vmul.f32 %v1659, %v1502
      %v1662 = vsub.f32 %v1652, %v1660
      %v1663 = vsub.f32 %v1653, %v1661
      %v1664 = vmul.f32 %v1662, %v1662
      %v1665 = vmul.f32 %v1663, %v1663
      %1666 = vadd.xlane.f32.xlu0 %v1664
      %v1667 = vpop.xlane.xlu0 %1666
      %1668 = vadd.xlane.f32.xlu0 %v1665
      %v1669 = vpop.xlane.xlu0 %1668
      %v1670 = vmul.f32 %v1667, %v1502
      %v1671 = vmul.f32 %v1669, %v1502
      %v1672 = vadd.f32 %v1670, 1e-05
      %v1673 = vadd.f32 %v1671, 1e-05
      %v1674 = vrsqrt.pop %v1672
      %v1675 = vrsqrt.pop %v1673
      %v1676 = vmul.f32 %v1662, %v1674
      %v1677 = vmul.f32 %v1663, %v1675
      %v1679 = vlaneseq
      %v1680 = vshrl.u32 %v1679, 7
      %v1681 = vsub.s32 0, %v1680
      %v1682 = vrot.slane %v1654, %v1681
      %v1684 = vmul.f32 %v1676, %v1682
      %v1685 = vmul.f32 %v1677, %v1682
      %v1687 = vlaneseq
      %v1688 = vshrl.u32 %v1687, 7
      %v1689 = vsub.s32 0, %v1688
      %v1690 = vrot.slane %v1655, %v1689
      %v1692 = vadd.f32 %v1684, %v1690
      %v1693 = vadd.f32 %v1685, %v1690
      %v1694 = vpack.c.bf16 %v1693, %v1692
      %v1696 = vunpack.c.l.b16 %v1694
      %v1697 = vunpack.c.h.b16 %v1694
      %v1698 = vpack.c.b16 %v1696, %v1696
      %v1699 = vpack.c.b16 %v1697, %v1697
      %1702 = vst [vmem:[%s440] sm:$0xf] %v1698
      %1703 = vst [vmem:[%s440 + $0x4] sm:$0xf] %v1699
      %p1704 = scmp.lt.s32.totalorder %s24, 1
      %s1705 = scalar_select %p1704, %s24, 1
      %s1706 = smul.addr %s1705, 2
      %s1707 = smul.addr %s1706, 4
      %s1708 = scalar_lea.vmem %s13, %s1707
      // Predicated region
      $region73: #{image_caption_forward.2} parent=71 // pred_check
        %p1709 = pneg %p320
      $region74: #{image_caption_forward.2} parent=71 // pred_check_branch
        %1711 = sbr.rel (%p1709) target = $region76
      $region75: #{image_caption_forward.2} parent=71 // pred_region
        _
      $region76: #{image_caption_forward.2} parent=71 // pred_fallthru
        _
    $region72: #{image_caption_forward.2} parent=5 // pred_fallthru
      _
    %p1712 = scmp.le.s32.totalorder 2, %s19
    // Predicated region
    $region77: #{image_caption_forward.2} parent=5 // pred_check
      %p1713 = pneg %p1712
    $region78: #{image_caption_forward.2} parent=5 // pred_check_branch
      %1715 = sbr.rel (%p1713) target = $region80
    $region79: #{image_caption_forward.2} parent=5 // pred_region
      %s1716 = ssub.s32 %s19, 2
      // Predicated region
      $region81: #{image_caption_forward.2} parent=79 // pred_check
        %p1717 = pneg %p326
      $region82: #{image_caption_forward.2} parent=79 // pred_check_branch
        %1719 = sbr.rel (%p1717) target = $region84
      $region83: #{image_caption_forward.2} parent=79 // pred_region
        %p1720 = scmp.lt.s32.totalorder %s25, 1
        %s1721 = scalar_select %p1720, %s25, 1
        %s1722 = smul.addr %s1721, 2
        %s1723 = smul.addr %s1722, 4
        %s1724 = scalar_lea.vmem %s13, %s1723
      $region84: #{image_caption_forward.2} parent=79 // pred_fallthru
        _
    $region80: #{image_caption_forward.2} parent=5 // pred_fallthru
      _
  $region6: #{image_caption_forward.2} parent=0 // loop_footer
    %s23 = sadd.s32 1, %s19
  $region7: #{image_caption_forward.2} parent=0 // loop_footer_branch
    %18 = sbr.rel target = $region3
  $region8: #{image_caption_forward.2} parent=0 // loop_exit
    _

// kernel: image_caption_forward.3
$region0: #{image_caption_forward.3}
  #allocation0 [shape = 'u32[]', space=smem, size = 0x4, offset = 0x4, fixed_abs, tag = 'smem constant byte address 0x4 - core index']
  #allocation1 [shape = 'u32[144,128]{1,0:T(1,128)}', space=vmem, size = 0x12000, scoped, tag = 'internal scratch']
  %s0 = inlined_call_operand.vmem [shape: bf16[2,8,128], index: 0, kind: input, shape index: {}]
  %s1 = inlined_call_operand.vmem [shape: bf16[2,16,128], index: 1, kind: input, shape index: {}]
  %s2 = inlined_call_operand.vmem [shape: f32[2,1,8], index: 2, kind: input, shape index: {}]
  %s3 = inlined_call_operand.vmem [shape: bf16[128,384], index: 3, kind: input, shape index: {}]
  %s4 = inlined_call_operand.vmem [shape: f32[1,384], index: 4, kind: input, shape index: {}]
  %s5 = inlined_call_operand.vmem [shape: bf16[128,128], index: 5, kind: input, shape index: {}]
  %s6 = inlined_call_operand.vmem [shape: f32[1,128], index: 6, kind: input, shape index: {}]
  %s7 = inlined_call_operand.vmem [shape: f32[1,128], index: 7, kind: input, shape index: {}]
  %s8 = inlined_call_operand.vmem [shape: f32[1,128], index: 8, kind: input, shape index: {}]
  %s9 = inlined_call_operand.vmem [shape: bf16[128,128], index: 9, kind: input, shape index: {}]
  %s10 = inlined_call_operand.vmem [shape: f32[1,128], index: 10, kind: input, shape index: {}]
  %s11 = inlined_call_operand.vmem [shape: bf16[128,256], index: 11, kind: input, shape index: {}]
  %s12 = inlined_call_operand.vmem [shape: f32[1,256], index: 12, kind: input, shape index: {}]
  %s13 = inlined_call_operand.vmem [shape: bf16[128,128], index: 13, kind: input, shape index: {}]
  %s14 = inlined_call_operand.vmem [shape: f32[1,128], index: 14, kind: input, shape index: {}]
  %s15 = inlined_call_operand.vmem [shape: f32[1,128], index: 15, kind: input, shape index: {}]
  %s16 = inlined_call_operand.vmem [shape: f32[1,128], index: 16, kind: input, shape index: {}]
  %s17 = inlined_call_operand.vmem [shape: bf16[128,256], index: 17, kind: input, shape index: {}]
  %s18 = inlined_call_operand.vmem [shape: f32[1,256], index: 18, kind: input, shape index: {}]
  %s19 = inlined_call_operand.vmem [shape: bf16[256,128], index: 19, kind: input, shape index: {}]
  %s20 = inlined_call_operand.vmem [shape: f32[1,128], index: 20, kind: input, shape index: {}]
  %s21 = inlined_call_operand.vmem [shape: f32[1,128], index: 21, kind: input, shape index: {}]
  %s22 = inlined_call_operand.vmem [shape: f32[1,128], index: 22, kind: input, shape index: {}]
  %s23 = inlined_call_operand.vmem [shape: bf16[128,512], index: 23, kind: input, shape index: {}]
  %s24 = inlined_call_operand.vmem [shape: f32[1,512], index: 24, kind: input, shape index: {}]
  %s25 = inlined_call_operand.hbm [shape: f32[2,8,512], index: 25, kind: output, shape index: {}]
  %s26 = sld [smem:[#allocation0]]
  $region133: #{image_caption_forward.3} parent=0
    _
  %s28 = ssub.s32 1, %s26
  %s29 = scalar_select 0, %s28, %s26
  $region1: #{image_caption_forward.3} parent=0
    #allocation2 [shape = 'u8[32768]{0}', space=vmem, size = 0x8000, scoped, tag = 'output window, operand 0']
    #allocation3 [shape = 's32[2]{0}', space=sflag, size = 0x8, scoped, tag = 'scoped memory for image_caption_forward.3']
    %30 = vsyncpa [#allocation3], 0
    %s31 = scalar_lea.sflag [#allocation3], 1
    %32 = vsyncpa %s31, 0
    loop: start=0, step=1, limit=4
    $region2: #{image_caption_forward.3} parent=1 // loop_pre_header
      _
    $region3: #{image_caption_forward.3} parent=1 // loop_header
      %s34 = sphi 0, %s38
      %p35 = scmp.ge.s32.totalorder %s34, 4
      %s44 = sphi 0, %s46
      %s47 = sphi 0, %s44
      %s48 = sphi 0, %s47
      %s64 = sphi 0, %s48
      %s70 = sphi 0, %s72
      %s73 = sphi 0, %s70
      %s74 = sphi 0, %s73
      %s90 = sphi 0, %s74
      %s96 = sphi 0, %s98
      %s99 = sphi 0, %s96
      %s100 = sphi 0, %s99
      %s116 = sphi 0, %s100
      %s120 = sphi 0, %s120
      %s122 = sphi 0, %s120
      %s123 = sphi 0, %s122
      %s137 = sphi 0, %s123
      %s141 = sphi 0, %s141
      %s143 = sphi 0, %s141
      %s144 = sphi 0, %s143
      %s158 = sphi 0, %s144
      %s162 = sphi 0, %s162
      %s164 = sphi 0, %s162
      %s165 = sphi 0, %s164
      %s179 = sphi 0, %s165
      %s183 = sphi 0, %s183
      %s185 = sphi 0, %s183
      %s186 = sphi 0, %s185
      %s200 = sphi 0, %s186
      %s204 = sphi 0, %s204
      %s206 = sphi 0, %s204
      %s207 = sphi 0, %s206
      %s221 = sphi 0, %s207
      %s225 = sphi 0, %s225
      %s227 = sphi 0, %s225
      %s228 = sphi 0, %s227
      %s242 = sphi 0, %s228
      %s246 = sphi 0, %s246
      %s248 = sphi 0, %s246
      %s249 = sphi 0, %s248
      %s263 = sphi 0, %s249
      %s267 = sphi 0, %s267
      %s269 = sphi 0, %s267
      %s270 = sphi 0, %s269
      %s284 = sphi 0, %s270
      %s288 = sphi 0, %s288
      %s290 = sphi 0, %s288
      %s291 = sphi 0, %s290
      %s305 = sphi 0, %s291
      %s309 = sphi 0, %s309
      %s311 = sphi 0, %s309
      %s312 = sphi 0, %s311
      %s326 = sphi 0, %s312
      %s330 = sphi 0, %s330
      %s332 = sphi 0, %s330
      %s333 = sphi 0, %s332
      %s347 = sphi 0, %s333
      %s351 = sphi 0, %s351
      %s353 = sphi 0, %s351
      %s354 = sphi 0, %s353
      %s368 = sphi 0, %s354
      %s372 = sphi 0, %s372
      %s374 = sphi 0, %s372
      %s375 = sphi 0, %s374
      %s389 = sphi 0, %s375
      %s393 = sphi 0, %s393
      %s395 = sphi 0, %s393
      %s396 = sphi 0, %s395
      %s410 = sphi 0, %s396
      %s414 = sphi 0, %s414
      %s416 = sphi 0, %s414
      %s417 = sphi 0, %s416
      %s431 = sphi 0, %s417
      %s435 = sphi 0, %s435
      %s437 = sphi 0, %s435
      %s438 = sphi 0, %s437
      %s452 = sphi 0, %s438
      %s456 = sphi 0, %s456
      %s458 = sphi 0, %s456
      %s459 = sphi 0, %s458
      %s473 = sphi 0, %s459
      %s477 = sphi 0, %s477
      %s479 = sphi 0, %s477
      %s480 = sphi 0, %s479
      %s494 = sphi 0, %s480
      %s498 = sphi 0, %s498
      %s500 = sphi 0, %s498
      %s501 = sphi 0, %s500
      %s515 = sphi 0, %s501
      %s519 = sphi 0, %s519
      %s521 = sphi 0, %s519
      %s522 = sphi 0, %s521
      %s536 = sphi 0, %s522
      %s540 = sphi 0, %s540
      %s542 = sphi 0, %s540
      %s543 = sphi 0, %s542
      %s557 = sphi 0, %s543
      %s561 = sphi 0, %s561
      %s563 = sphi 0, %s561
      %s564 = sphi 0, %s563
      %s578 = sphi 0, %s564
      %s584 = sphi 0, %s586
      %s587 = sphi 0, %s584
      %s588 = sphi 0, %s587
      %s604 = sphi 0, %s588
    $region4: #{image_caption_forward.3} parent=1 // loop_header_branch
      %37 = sbr.rel (%p35) target = $region8
    $region5: #{image_caption_forward.3} parent=1 // loop_body
      %s39 = ssub.s32 %s34, 1
      %s40 = ssub.s32 %s34, 2
      %s41 = sadd.s32 %s34, 1
      %s42 = ssub.s32 %s34, %s41
      %p43 = scmp.eq.s32.totalorder %s42, 0
      %s45 = sadd.s32 %s44, 1
      %s46 = scalar_select %p43, %s44, %s45
      %p49 = pneg %p43
      %p50 = scmp.eq.s32.totalorder %s34, 1
      %p51 = por %p49, %p50
      %p52 = scmp.ne.s32.totalorder %s44, %s47
      %p53 = scmp.eq.s32.totalorder %s34, 0
      %p54 = por %p52, %p53
      %p55 = scmp.ne.s32.totalorder %s44, %s47
      %p56 = scmp.eq.s32.totalorder %s39, 1
      %p57 = por %p55, %p56
      %p58 = scmp.ne.s32.totalorder %s47, %s48
      %p59 = scmp.eq.s32.totalorder %s39, 0
      %p60 = por %p58, %p59
      %p61 = scmp.ne.s32.totalorder %s47, %s48
      %p62 = scmp.eq.s32.totalorder %s40, 1
      %p63 = por %p61, %p62
      %p65 = scmp.ne.s32.totalorder %s48, %s64
      %p66 = scmp.eq.s32.totalorder %s40, 0
      %p67 = por %p65, %p66
      %s68 = ssub.s32 %s34, %s41
      %p69 = scmp.eq.s32.totalorder %s68, 0
      %s71 = sadd.s32 %s70, 1
      %s72 = scalar_select %p69, %s70, %s71
      %p75 = pneg %p69
      %p76 = scmp.eq.s32.totalorder %s34, 1
      %p77 = por %p75, %p76
      %p78 = scmp.ne.s32.totalorder %s70, %s73
      %p79 = scmp.eq.s32.totalorder %s34, 0
      %p80 = por %p78, %p79
      %p81 = scmp.ne.s32.totalorder %s70, %s73
      %p82 = scmp.eq.s32.totalorder %s39, 1
      %p83 = por %p81, %p82
      %p84 = scmp.ne.s32.totalorder %s73, %s74
      %p85 = scmp.eq.s32.totalorder %s39, 0
      %p86 = por %p84, %p85
      %p87 = scmp.ne.s32.totalorder %s73, %s74
      %p88 = scmp.eq.s32.totalorder %s40, 1
      %p89 = por %p87, %p88
      %p91 = scmp.ne.s32.totalorder %s74, %s90
      %p92 = scmp.eq.s32.totalorder %s40, 0
      %p93 = por %p91, %p92
      %s94 = ssub.s32 %s34, %s41
      %p95 = scmp.eq.s32.totalorder %s94, 0
      %s97 = sadd.s32 %s96, 1
      %s98 = scalar_select %p95, %s96, %s97
      %p101 = pneg %p95
      %p102 = scmp.eq.s32.totalorder %s34, 1
      %p103 = por %p101, %p102
      %p104 = scmp.ne.s32.totalorder %s96, %s99
      %p105 = scmp.eq.s32.totalorder %s34, 0
      %p106 = por %p104, %p105
      %p107 = scmp.ne.s32.totalorder %s96, %s99
      %p108 = scmp.eq.s32.totalorder %s39, 1
      %p109 = por %p107, %p108
      %p110 = scmp.ne.s32.totalorder %s99, %s100
      %p111 = scmp.eq.s32.totalorder %s39, 0
      %p112 = por %p110, %p111
      %p113 = scmp.ne.s32.totalorder %s99, %s100
      %p114 = scmp.eq.s32.totalorder %s40, 1
      %p115 = por %p113, %p114
      %p117 = scmp.ne.s32.totalorder %s100, %s116
      %p118 = scmp.eq.s32.totalorder %s40, 0
      %p119 = por %p117, %p118
      %s121 = sadd.s32 %s120, 1
      %p124 = scmp.eq.s32.totalorder %s34, 1
      %p125 = scmp.ne.s32.totalorder %s120, %s122
      %p126 = scmp.eq.s32.totalorder %s34, 0
      %p127 = por %p125, %p126
      %p128 = scmp.ne.s32.totalorder %s120, %s122
      %p129 = scmp.eq.s32.totalorder %s39, 1
      %p130 = por %p128, %p129
      %p131 = scmp.ne.s32.totalorder %s122, %s123
      %p132 = scmp.eq.s32.totalorder %s39, 0
      %p133 = por %p131, %p132
      %p134 = scmp.ne.s32.totalorder %s122, %s123
      %p135 = scmp.eq.s32.totalorder %s40, 1
      %p136 = por %p134, %p135
      %p138 = scmp.ne.s32.totalorder %s123, %s137
      %p139 = scmp.eq.s32.totalorder %s40, 0
      %p140 = por %p138, %p139
      %s142 = sadd.s32 %s141, 1
      %p145 = scmp.eq.s32.totalorder %s34, 1
      %p146 = scmp.ne.s32.totalorder %s141, %s143
      %p147 = scmp.eq.s32.totalorder %s34, 0
      %p148 = por %p146, %p147
      %p149 = scmp.ne.s32.totalorder %s141, %s143
      %p150 = scmp.eq.s32.totalorder %s39, 1
      %p151 = por %p149, %p150
      %p152 = scmp.ne.s32.totalorder %s143, %s144
      %p153 = scmp.eq.s32.totalorder %s39, 0
      %p154 = por %p152, %p153
      %p155 = scmp.ne.s32.totalorder %s143, %s144
      %p156 = scmp.eq.s32.totalorder %s40, 1
      %p157 = por %p155, %p156
      %p159 = scmp.ne.s32.totalorder %s144, %s158
      %p160 = scmp.eq.s32.totalorder %s40, 0
      %p161 = por %p159, %p160
      %s163 = sadd.s32 %s162, 1
      %p166 = scmp.eq.s32.totalorder %s34, 1
      %p167 = scmp.ne.s32.totalorder %s162, %s164
      %p168 = scmp.eq.s32.totalorder %s34, 0
      %p169 = por %p167, %p168
      %p170 = scmp.ne.s32.totalorder %s162, %s164
      %p171 = scmp.eq.s32.totalorder %s39, 1
      %p172 = por %p170, %p171
      %p173 = scmp.ne.s32.totalorder %s164, %s165
      %p174 = scmp.eq.s32.totalorder %s39, 0
      %p175 = por %p173, %p174
      %p176 = scmp.ne.s32.totalorder %s164, %s165
      %p177 = scmp.eq.s32.totalorder %s40, 1
      %p178 = por %p176, %p177
      %p180 = scmp.ne.s32.totalorder %s165, %s179
      %p181 = scmp.eq.s32.totalorder %s40, 0
      %p182 = por %p180, %p181
      %s184 = sadd.s32 %s183, 1
      %p187 = scmp.eq.s32.totalorder %s34, 1
      %p188 = scmp.ne.s32.totalorder %s183, %s185
      %p189 = scmp.eq.s32.totalorder %s34, 0
      %p190 = por %p188, %p189
      %p191 = scmp.ne.s32.totalorder %s183, %s185
      %p192 = scmp.eq.s32.totalorder %s39, 1
      %p193 = por %p191, %p192
      %p194 = scmp.ne.s32.totalorder %s185, %s186
      %p195 = scmp.eq.s32.totalorder %s39, 0
      %p196 = por %p194, %p195
      %p197 = scmp.ne.s32.totalorder %s185, %s186
      %p198 = scmp.eq.s32.totalorder %s40, 1
      %p199 = por %p197, %p198
      %p201 = scmp.ne.s32.totalorder %s186, %s200
      %p202 = scmp.eq.s32.totalorder %s40, 0
      %p203 = por %p201, %p202
      %s205 = sadd.s32 %s204, 1
      %p208 = scmp.eq.s32.totalorder %s34, 1
      %p209 = scmp.ne.s32.totalorder %s204, %s206
      %p210 = scmp.eq.s32.totalorder %s34, 0
      %p211 = por %p209, %p210
      %p212 = scmp.ne.s32.totalorder %s204, %s206
      %p213 = scmp.eq.s32.totalorder %s39, 1
      %p214 = por %p212, %p213
      %p215 = scmp.ne.s32.totalorder %s206, %s207
      %p216 = scmp.eq.s32.totalorder %s39, 0
      %p217 = por %p215, %p216
      %p218 = scmp.ne.s32.totalorder %s206, %s207
      %p219 = scmp.eq.s32.totalorder %s40, 1
      %p220 = por %p218, %p219
      %p222 = scmp.ne.s32.totalorder %s207, %s221
      %p223 = scmp.eq.s32.totalorder %s40, 0
      %p224 = por %p222, %p223
      %s226 = sadd.s32 %s225, 1
      %p229 = scmp.eq.s32.totalorder %s34, 1
      %p230 = scmp.ne.s32.totalorder %s225, %s227
      %p231 = scmp.eq.s32.totalorder %s34, 0
      %p232 = por %p230, %p231
      %p233 = scmp.ne.s32.totalorder %s225, %s227
      %p234 = scmp.eq.s32.totalorder %s39, 1
      %p235 = por %p233, %p234
      %p236 = scmp.ne.s32.totalorder %s227, %s228
      %p237 = scmp.eq.s32.totalorder %s39, 0
      %p238 = por %p236, %p237
      %p239 = scmp.ne.s32.totalorder %s227, %s228
      %p240 = scmp.eq.s32.totalorder %s40, 1
      %p241 = por %p239, %p240
      %p243 = scmp.ne.s32.totalorder %s228, %s242
      %p244 = scmp.eq.s32.totalorder %s40, 0
      %p245 = por %p243, %p244
      %s247 = sadd.s32 %s246, 1
      %p250 = scmp.eq.s32.totalorder %s34, 1
      %p251 = scmp.ne.s32.totalorder %s246, %s248
      %p252 = scmp.eq.s32.totalorder %s34, 0
      %p253 = por %p251, %p252
      %p254 = scmp.ne.s32.totalorder %s246, %s248
      %p255 = scmp.eq.s32.totalorder %s39, 1
      %p256 = por %p254, %p255
      %p257 = scmp.ne.s32.totalorder %s248, %s249
      %p258 = scmp.eq.s32.totalorder %s39, 0
      %p259 = por %p257, %p258
      %p260 = scmp.ne.s32.totalorder %s248, %s249
      %p261 = scmp.eq.s32.totalorder %s40, 1
      %p262 = por %p260, %p261
      %p264 = scmp.ne.s32.totalorder %s249, %s263
      %p265 = scmp.eq.s32.totalorder %s40, 0
      %p266 = por %p264, %p265
      %s268 = sadd.s32 %s267, 1
      %p271 = scmp.eq.s32.totalorder %s34, 1
      %p272 = scmp.ne.s32.totalorder %s267, %s269
      %p273 = scmp.eq.s32.totalorder %s34, 0
      %p274 = por %p272, %p273
      %p275 = scmp.ne.s32.totalorder %s267, %s269
      %p276 = scmp.eq.s32.totalorder %s39, 1
      %p277 = por %p275, %p276
      %p278 = scmp.ne.s32.totalorder %s269, %s270
      %p279 = scmp.eq.s32.totalorder %s39, 0
      %p280 = por %p278, %p279
      %p281 = scmp.ne.s32.totalorder %s269, %s270
      %p282 = scmp.eq.s32.totalorder %s40, 1
      %p283 = por %p281, %p282
      %p285 = scmp.ne.s32.totalorder %s270, %s284
      %p286 = scmp.eq.s32.totalorder %s40, 0
      %p287 = por %p285, %p286
      %s289 = sadd.s32 %s288, 1
      %p292 = scmp.eq.s32.totalorder %s34, 1
      %p293 = scmp.ne.s32.totalorder %s288, %s290
      %p294 = scmp.eq.s32.totalorder %s34, 0
      %p295 = por %p293, %p294
      %p296 = scmp.ne.s32.totalorder %s288, %s290
      %p297 = scmp.eq.s32.totalorder %s39, 1
      %p298 = por %p296, %p297
      %p299 = scmp.ne.s32.totalorder %s290, %s291
      %p300 = scmp.eq.s32.totalorder %s39, 0
      %p301 = por %p299, %p300
      %p302 = scmp.ne.s32.totalorder %s290, %s291
      %p303 = scmp.eq.s32.totalorder %s40, 1
      %p304 = por %p302, %p303
      %p306 = scmp.ne.s32.totalorder %s291, %s305
      %p307 = scmp.eq.s32.totalorder %s40, 0
      %p308 = por %p306, %p307
      %s310 = sadd.s32 %s309, 1
      %p313 = scmp.eq.s32.totalorder %s34, 1
      %p314 = scmp.ne.s32.totalorder %s309, %s311
      %p315 = scmp.eq.s32.totalorder %s34, 0
      %p316 = por %p314, %p315
      %p317 = scmp.ne.s32.totalorder %s309, %s311
      %p318 = scmp.eq.s32.totalorder %s39, 1
      %p319 = por %p317, %p318
      %p320 = scmp.ne.s32.totalorder %s311, %s312
      %p321 = scmp.eq.s32.totalorder %s39, 0
      %p322 = por %p320, %p321
      %p323 = scmp.ne.s32.totalorder %s311, %s312
      %p324 = scmp.eq.s32.totalorder %s40, 1
      %p325 = por %p323, %p324
      %p327 = scmp.ne.s32.totalorder %s312, %s326
      %p328 = scmp.eq.s32.totalorder %s40, 0
      %p329 = por %p327, %p328
      %s331 = sadd.s32 %s330, 1
      %p334 = scmp.eq.s32.totalorder %s34, 1
      %p335 = scmp.ne.s32.totalorder %s330, %s332
      %p336 = scmp.eq.s32.totalorder %s34, 0
      %p337 = por %p335, %p336
      %p338 = scmp.ne.s32.totalorder %s330, %s332
      %p339 = scmp.eq.s32.totalorder %s39, 1
      %p340 = por %p338, %p339
      %p341 = scmp.ne.s32.totalorder %s332, %s333
      %p342 = scmp.eq.s32.totalorder %s39, 0
      %p343 = por %p341, %p342
      %p344 = scmp.ne.s32.totalorder %s332, %s333
      %p345 = scmp.eq.s32.totalorder %s40, 1
      %p346 = por %p344, %p345
      %p348 = scmp.ne.s32.totalorder %s333, %s347
      %p349 = scmp.eq.s32.totalorder %s40, 0
      %p350 = por %p348, %p349
      %s352 = sadd.s32 %s351, 1
      %p355 = scmp.eq.s32.totalorder %s34, 1
      %p356 = scmp.ne.s32.totalorder %s351, %s353
      %p357 = scmp.eq.s32.totalorder %s34, 0
      %p358 = por %p356, %p357
      %p359 = scmp.ne.s32.totalorder %s351, %s353
      %p360 = scmp.eq.s32.totalorder %s39, 1
      %p361 = por %p359, %p360
      %p362 = scmp.ne.s32.totalorder %s353, %s354
      %p363 = scmp.eq.s32.totalorder %s39, 0
      %p364 = por %p362, %p363
      %p365 = scmp.ne.s32.totalorder %s353, %s354
      %p366 = scmp.eq.s32.totalorder %s40, 1
      %p367 = por %p365, %p366
      %p369 = scmp.ne.s32.totalorder %s354, %s368
      %p370 = scmp.eq.s32.totalorder %s40, 0
      %p371 = por %p369, %p370
      %s373 = sadd.s32 %s372, 1
      %p376 = scmp.eq.s32.totalorder %s34, 1
      %p377 = scmp.ne.s32.totalorder %s372, %s374
      %p378 = scmp.eq.s32.totalorder %s34, 0
      %p379 = por %p377, %p378
      %p380 = scmp.ne.s32.totalorder %s372, %s374
      %p381 = scmp.eq.s32.totalorder %s39, 1
      %p382 = por %p380, %p381
      %p383 = scmp.ne.s32.totalorder %s374, %s375
      %p384 = scmp.eq.s32.totalorder %s39, 0
      %p385 = por %p383, %p384
      %p386 = scmp.ne.s32.totalorder %s374, %s375
      %p387 = scmp.eq.s32.totalorder %s40, 1
      %p388 = por %p386, %p387
      %p390 = scmp.ne.s32.totalorder %s375, %s389
      %p391 = scmp.eq.s32.totalorder %s40, 0
      %p392 = por %p390, %p391
      %s394 = sadd.s32 %s393, 1
      %p397 = scmp.eq.s32.totalorder %s34, 1
      %p398 = scmp.ne.s32.totalorder %s393, %s395
      %p399 = scmp.eq.s32.totalorder %s34, 0
      %p400 = por %p398, %p399
      %p401 = scmp.ne.s32.totalorder %s393, %s395
      %p402 = scmp.eq.s32.totalorder %s39, 1
      %p403 = por %p401, %p402
      %p404 = scmp.ne.s32.totalorder %s395, %s396
      %p405 = scmp.eq.s32.totalorder %s39, 0
      %p406 = por %p404, %p405
      %p407 = scmp.ne.s32.totalorder %s395, %s396
      %p408 = scmp.eq.s32.totalorder %s40, 1
      %p409 = por %p407, %p408
      %p411 = scmp.ne.s32.totalorder %s396, %s410
      %p412 = scmp.eq.s32.totalorder %s40, 0
      %p413 = por %p411, %p412
      %s415 = sadd.s32 %s414, 1
      %p418 = scmp.eq.s32.totalorder %s34, 1
      %p419 = scmp.ne.s32.totalorder %s414, %s416
      %p420 = scmp.eq.s32.totalorder %s34, 0
      %p421 = por %p419, %p420
      %p422 = scmp.ne.s32.totalorder %s414, %s416
      %p423 = scmp.eq.s32.totalorder %s39, 1
      %p424 = por %p422, %p423
      %p425 = scmp.ne.s32.totalorder %s416, %s417
      %p426 = scmp.eq.s32.totalorder %s39, 0
      %p427 = por %p425, %p426
      %p428 = scmp.ne.s32.totalorder %s416, %s417
      %p429 = scmp.eq.s32.totalorder %s40, 1
      %p430 = por %p428, %p429
      %p432 = scmp.ne.s32.totalorder %s417, %s431
      %p433 = scmp.eq.s32.totalorder %s40, 0
      %p434 = por %p432, %p433
      %s436 = sadd.s32 %s435, 1
      %p439 = scmp.eq.s32.totalorder %s34, 1
      %p440 = scmp.ne.s32.totalorder %s435, %s437
      %p441 = scmp.eq.s32.totalorder %s34, 0
      %p442 = por %p440, %p441
      %p443 = scmp.ne.s32.totalorder %s435, %s437
      %p444 = scmp.eq.s32.totalorder %s39, 1
      %p445 = por %p443, %p444
      %p446 = scmp.ne.s32.totalorder %s437, %s438
      %p447 = scmp.eq.s32.totalorder %s39, 0
      %p448 = por %p446, %p447
      %p449 = scmp.ne.s32.totalorder %s437, %s438
      %p450 = scmp.eq.s32.totalorder %s40, 1
      %p451 = por %p449, %p450
      %p453 = scmp.ne.s32.totalorder %s438, %s452
      %p454 = scmp.eq.s32.totalorder %s40, 0
      %p455 = por %p453, %p454
      %s457 = sadd.s32 %s456, 1
      %p460 = scmp.eq.s32.totalorder %s34, 1
      %p461 = scmp.ne.s32.totalorder %s456, %s458
      %p462 = scmp.eq.s32.totalorder %s34, 0
      %p463 = por %p461, %p462
      %p464 = scmp.ne.s32.totalorder %s456, %s458
      %p465 = scmp.eq.s32.totalorder %s39, 1
      %p466 = por %p464, %p465
      %p467 = scmp.ne.s32.totalorder %s458, %s459
      %p468 = scmp.eq.s32.totalorder %s39, 0
      %p469 = por %p467, %p468
      %p470 = scmp.ne.s32.totalorder %s458, %s459
      %p471 = scmp.eq.s32.totalorder %s40, 1
      %p472 = por %p470, %p471
      %p474 = scmp.ne.s32.totalorder %s459, %s473
      %p475 = scmp.eq.s32.totalorder %s40, 0
      %p476 = por %p474, %p475
      %s478 = sadd.s32 %s477, 1
      %p481 = scmp.eq.s32.totalorder %s34, 1
      %p482 = scmp.ne.s32.totalorder %s477, %s479
      %p483 = scmp.eq.s32.totalorder %s34, 0
      %p484 = por %p482, %p483
      %p485 = scmp.ne.s32.totalorder %s477, %s479
      %p486 = scmp.eq.s32.totalorder %s39, 1
      %p487 = por %p485, %p486
      %p488 = scmp.ne.s32.totalorder %s479, %s480
      %p489 = scmp.eq.s32.totalorder %s39, 0
      %p490 = por %p488, %p489
      %p491 = scmp.ne.s32.totalorder %s479, %s480
      %p492 = scmp.eq.s32.totalorder %s40, 1
      %p493 = por %p491, %p492
      %p495 = scmp.ne.s32.totalorder %s480, %s494
      %p496 = scmp.eq.s32.totalorder %s40, 0
      %p497 = por %p495, %p496
      %s499 = sadd.s32 %s498, 1
      %p502 = scmp.eq.s32.totalorder %s34, 1
      %p503 = scmp.ne.s32.totalorder %s498, %s500
      %p504 = scmp.eq.s32.totalorder %s34, 0
      %p505 = por %p503, %p504
      %p506 = scmp.ne.s32.totalorder %s498, %s500
      %p507 = scmp.eq.s32.totalorder %s39, 1
      %p508 = por %p506, %p507
      %p509 = scmp.ne.s32.totalorder %s500, %s501
      %p510 = scmp.eq.s32.totalorder %s39, 0
      %p511 = por %p509, %p510
      %p512 = scmp.ne.s32.totalorder %s500, %s501
      %p513 = scmp.eq.s32.totalorder %s40, 1
      %p514 = por %p512, %p513
      %p516 = scmp.ne.s32.totalorder %s501, %s515
      %p517 = scmp.eq.s32.totalorder %s40, 0
      %p518 = por %p516, %p517
      %s520 = sadd.s32 %s519, 1
      %p523 = scmp.eq.s32.totalorder %s34, 1
      %p524 = scmp.ne.s32.totalorder %s519, %s521
      %p525 = scmp.eq.s32.totalorder %s34, 0
      %p526 = por %p524, %p525
      %p527 = scmp.ne.s32.totalorder %s519, %s521
      %p528 = scmp.eq.s32.totalorder %s39, 1
      %p529 = por %p527, %p528
      %p530 = scmp.ne.s32.totalorder %s521, %s522
      %p531 = scmp.eq.s32.totalorder %s39, 0
      %p532 = por %p530, %p531
      %p533 = scmp.ne.s32.totalorder %s521, %s522
      %p534 = scmp.eq.s32.totalorder %s40, 1
      %p535 = por %p533, %p534
      %p537 = scmp.ne.s32.totalorder %s522, %s536
      %p538 = scmp.eq.s32.totalorder %s40, 0
      %p539 = por %p537, %p538
      %s541 = sadd.s32 %s540, 1
      %p544 = scmp.eq.s32.totalorder %s34, 1
      %p545 = scmp.ne.s32.totalorder %s540, %s542
      %p546 = scmp.eq.s32.totalorder %s34, 0
      %p547 = por %p545, %p546
      %p548 = scmp.ne.s32.totalorder %s540, %s542
      %p549 = scmp.eq.s32.totalorder %s39, 1
      %p550 = por %p548, %p549
      %p551 = scmp.ne.s32.totalorder %s542, %s543
      %p552 = scmp.eq.s32.totalorder %s39, 0
      %p553 = por %p551, %p552
      %p554 = scmp.ne.s32.totalorder %s542, %s543
      %p555 = scmp.eq.s32.totalorder %s40, 1
      %p556 = por %p554, %p555
      %p558 = scmp.ne.s32.totalorder %s543, %s557
      %p559 = scmp.eq.s32.totalorder %s40, 0
      %p560 = por %p558, %p559
      %s562 = sadd.s32 %s561, 1
      %p565 = scmp.eq.s32.totalorder %s34, 1
      %p566 = scmp.ne.s32.totalorder %s561, %s563
      %p567 = scmp.eq.s32.totalorder %s34, 0
      %p568 = por %p566, %p567
      %p569 = scmp.ne.s32.totalorder %s561, %s563
      %p570 = scmp.eq.s32.totalorder %s39, 1
      %p571 = por %p569, %p570
      %p572 = scmp.ne.s32.totalorder %s563, %s564
      %p573 = scmp.eq.s32.totalorder %s39, 0
      %p574 = por %p572, %p573
      %p575 = scmp.ne.s32.totalorder %s563, %s564
      %p576 = scmp.eq.s32.totalorder %s40, 1
      %p577 = por %p575, %p576
      %p579 = scmp.ne.s32.totalorder %s564, %s578
      %p580 = scmp.eq.s32.totalorder %s40, 0
      %p581 = por %p579, %p580
      %s582 = ssub.s32 %s34, %s41
      %p583 = scmp.eq.s32.totalorder %s582, 0
      %s585 = sadd.s32 %s584, 1
      %s586 = scalar_select %p583, %s584, %s585
      %p589 = pneg %p583
      %p590 = scmp.eq.s32.totalorder %s34, 1
      %p591 = por %p589, %p590
      %p592 = scmp.ne.s32.totalorder %s584, %s587
      %p593 = scmp.eq.s32.totalorder %s34, 0
      %p594 = por %p592, %p593
      %p595 = scmp.ne.s32.totalorder %s584, %s587
      %p596 = scmp.eq.s32.totalorder %s39, 1
      %p597 = por %p595, %p596
      %p598 = scmp.ne.s32.totalorder %s587, %s588
      %p599 = scmp.eq.s32.totalorder %s39, 0
      %p600 = por %p598, %p599
      %p601 = scmp.ne.s32.totalorder %s587, %s588
      %p602 = scmp.eq.s32.totalorder %s40, 1
      %p603 = por %p601, %p602
      %p605 = scmp.ne.s32.totalorder %s588, %s604
      %p606 = scmp.eq.s32.totalorder %s40, 0
      %p607 = por %p605, %p606
      %p608 = scmp.le.s32.totalorder 1, %s34
      %p609 = scmp.lt.s32.totalorder %s34, 3
      %p610 = pnand %p608, %p609
      %p611 = pneg %p610
      // Predicated region
      $region9: #{image_caption_forward.3} parent=5 // pred_check
        _
      $region10: #{image_caption_forward.3} parent=5 // pred_check_branch
        %613 = sbr.rel (%p610) target = $region12
      $region11: #{image_caption_forward.3} parent=5 // pred_region
        %s614 = ssub.s32 %s34, 1
        // Predicated region
        $region13: #{image_caption_forward.3} parent=11 // pred_check
          %p615 = pneg %p133
        $region14: #{image_caption_forward.3} parent=11 // pred_check_branch
          %617 = sbr.rel (%p615) target = $region16
        $region15: #{image_caption_forward.3} parent=11 // pred_region
          _
        $region16: #{image_caption_forward.3} parent=11 // pred_fallthru
          _
        // Predicated region
        $region17: #{image_caption_forward.3} parent=11 // pred_check
          %p618 = pneg %p154
        $region18: #{image_caption_forward.3} parent=11 // pred_check_branch
          %620 = sbr.rel (%p618) target = $region20
        $region19: #{image_caption_forward.3} parent=11 // pred_region
          _
        $region20: #{image_caption_forward.3} parent=11 // pred_fallthru
          _
        // Predicated region
        $region21: #{image_caption_forward.3} parent=11 // pred_check
          %p621 = pneg %p175
        $region22: #{image_caption_forward.3} parent=11 // pred_check_branch
          %623 = sbr.rel (%p621) target = $region24
        $region23: #{image_caption_forward.3} parent=11 // pred_region
          _
        $region24: #{image_caption_forward.3} parent=11 // pred_fallthru
          _
        // Predicated region
        $region25: #{image_caption_forward.3} parent=11 // pred_check
          %p624 = pneg %p196
        $region26: #{image_caption_forward.3} parent=11 // pred_check_branch
          %626 = sbr.rel (%p624) target = $region28
        $region27: #{image_caption_forward.3} parent=11 // pred_region
          _
        $region28: #{image_caption_forward.3} parent=11 // pred_fallthru
          _
        // Predicated region
        $region29: #{image_caption_forward.3} parent=11 // pred_check
          %p627 = pneg %p217
        $region30: #{image_caption_forward.3} parent=11 // pred_check_branch
          %629 = sbr.rel (%p627) target = $region32
        $region31: #{image_caption_forward.3} parent=11 // pred_region
          _
        $region32: #{image_caption_forward.3} parent=11 // pred_fallthru
          _
        // Predicated region
        $region33: #{image_caption_forward.3} parent=11 // pred_check
          %p630 = pneg %p238
        $region34: #{image_caption_forward.3} parent=11 // pred_check_branch
          %632 = sbr.rel (%p630) target = $region36
        $region35: #{image_caption_forward.3} parent=11 // pred_region
          _
        $region36: #{image_caption_forward.3} parent=11 // pred_fallthru
          _
        // Predicated region
        $region37: #{image_caption_forward.3} parent=11 // pred_check
          %p633 = pneg %p259
        $region38: #{image_caption_forward.3} parent=11 // pred_check_branch
          %635 = sbr.rel (%p633) target = $region40
        $region39: #{image_caption_forward.3} parent=11 // pred_region
          _
        $region40: #{image_caption_forward.3} parent=11 // pred_fallthru
          _
        // Predicated region
        $region41: #{image_caption_forward.3} parent=11 // pred_check
          %p636 = pneg %p280
        $region42: #{image_caption_forward.3} parent=11 // pred_check_branch
          %638 = sbr.rel (%p636) target = $region44
        $region43: #{image_caption_forward.3} parent=11 // pred_region
          _
        $region44: #{image_caption_forward.3} parent=11 // pred_fallthru
          _
        // Predicated region
        $region45: #{image_caption_forward.3} parent=11 // pred_check
          %p639 = pneg %p301
        $region46: #{image_caption_forward.3} parent=11 // pred_check_branch
          %641 = sbr.rel (%p639) target = $region48
        $region47: #{image_caption_forward.3} parent=11 // pred_region
          _
        $region48: #{image_caption_forward.3} parent=11 // pred_fallthru
          _
        // Predicated region
        $region49: #{image_caption_forward.3} parent=11 // pred_check
          %p642 = pneg %p322
        $region50: #{image_caption_forward.3} parent=11 // pred_check_branch
          %644 = sbr.rel (%p642) target = $region52
        $region51: #{image_caption_forward.3} parent=11 // pred_region
          _
        $region52: #{image_caption_forward.3} parent=11 // pred_fallthru
          _
        // Predicated region
        $region53: #{image_caption_forward.3} parent=11 // pred_check
          %p645 = pneg %p343
        $region54: #{image_caption_forward.3} parent=11 // pred_check_branch
          %647 = sbr.rel (%p645) target = $region56
        $region55: #{image_caption_forward.3} parent=11 // pred_region
          _
        $region56: #{image_caption_forward.3} parent=11 // pred_fallthru
          _
        // Predicated region
        $region57: #{image_caption_forward.3} parent=11 // pred_check
          %p648 = pneg %p364
        $region58: #{image_caption_forward.3} parent=11 // pred_check_branch
          %650 = sbr.rel (%p648) target = $region60
        $region59: #{image_caption_forward.3} parent=11 // pred_region
          _
        $region60: #{image_caption_forward.3} parent=11 // pred_fallthru
          _
        // Predicated region
        $region61: #{image_caption_forward.3} parent=11 // pred_check
          %p651 = pneg %p385
        $region62: #{image_caption_forward.3} parent=11 // pred_check_branch
          %653 = sbr.rel (%p651) target = $region64
        $region63: #{image_caption_forward.3} parent=11 // pred_region
          _
        $region64: #{image_caption_forward.3} parent=11 // pred_fallthru
          _
        // Predicated region
        $region65: #{image_caption_forward.3} parent=11 // pred_check
          %p654 = pneg %p406
        $region66: #{image_caption_forward.3} parent=11 // pred_check_branch
          %656 = sbr.rel (%p654) target = $region68
        $region67: #{image_caption_forward.3} parent=11 // pred_region
          _
        $region68: #{image_caption_forward.3} parent=11 // pred_fallthru
          _
        // Predicated region
        $region69: #{image_caption_forward.3} parent=11 // pred_check
          %p657 = pneg %p427
        $region70: #{image_caption_forward.3} parent=11 // pred_check_branch
          %659 = sbr.rel (%p657) target = $region72
        $region71: #{image_caption_forward.3} parent=11 // pred_region
          _
        $region72: #{image_caption_forward.3} parent=11 // pred_fallthru
          _
        // Predicated region
        $region73: #{image_caption_forward.3} parent=11 // pred_check
          %p660 = pneg %p448
        $region74: #{image_caption_forward.3} parent=11 // pred_check_branch
          %662 = sbr.rel (%p660) target = $region76
        $region75: #{image_caption_forward.3} parent=11 // pred_region
          _
        $region76: #{image_caption_forward.3} parent=11 // pred_fallthru
          _
        // Predicated region
        $region77: #{image_caption_forward.3} parent=11 // pred_check
          %p663 = pneg %p469
        $region78: #{image_caption_forward.3} parent=11 // pred_check_branch
          %665 = sbr.rel (%p663) target = $region80
        $region79: #{image_caption_forward.3} parent=11 // pred_region
          _
        $region80: #{image_caption_forward.3} parent=11 // pred_fallthru
          _
        // Predicated region
        $region81: #{image_caption_forward.3} parent=11 // pred_check
          %p666 = pneg %p490
        $region82: #{image_caption_forward.3} parent=11 // pred_check_branch
          %668 = sbr.rel (%p666) target = $region84
        $region83: #{image_caption_forward.3} parent=11 // pred_region
          _
        $region84: #{image_caption_forward.3} parent=11 // pred_fallthru
          _
        // Predicated region
        $region85: #{image_caption_forward.3} parent=11 // pred_check
          %p669 = pneg %p511
        $region86: #{image_caption_forward.3} parent=11 // pred_check_branch
          %671 = sbr.rel (%p669) target = $region88
        $region87: #{image_caption_forward.3} parent=11 // pred_region
          _
        $region88: #{image_caption_forward.3} parent=11 // pred_fallthru
          _
        // Predicated region
        $region89: #{image_caption_forward.3} parent=11 // pred_check
          %p672 = pneg %p532
        $region90: #{image_caption_forward.3} parent=11 // pred_check_branch
          %674 = sbr.rel (%p672) target = $region92
        $region91: #{image_caption_forward.3} parent=11 // pred_region
          _
        $region92: #{image_caption_forward.3} parent=11 // pred_fallthru
          _
        // Predicated region
        $region93: #{image_caption_forward.3} parent=11 // pred_check
          %p675 = pneg %p553
        $region94: #{image_caption_forward.3} parent=11 // pred_check_branch
          %677 = sbr.rel (%p675) target = $region96
        $region95: #{image_caption_forward.3} parent=11 // pred_region
          _
        $region96: #{image_caption_forward.3} parent=11 // pred_fallthru
          _
        // Predicated region
        $region97: #{image_caption_forward.3} parent=11 // pred_check
          %p678 = pneg %p574
        $region98: #{image_caption_forward.3} parent=11 // pred_check_branch
          %680 = sbr.rel (%p678) target = $region100
        $region99: #{image_caption_forward.3} parent=11 // pred_region
          _
        $region100: #{image_caption_forward.3} parent=11 // pred_fallthru
          _
      $region12: #{image_caption_forward.3} parent=5 // pred_fallthru
        _
      %p681 = scmp.lt.s32.totalorder %s34, 2
      // Predicated region
      $region101: #{image_caption_forward.3} parent=5 // pred_check
        %p682 = pneg %p681
      $region102: #{image_caption_forward.3} parent=5 // pred_check_branch
        %684 = sbr.rel (%p682) target = $region104
      $region103: #{image_caption_forward.3} parent=5 // pred_region
        // Predicated region
        $region105: #{image_caption_forward.3} parent=103 // pred_check
          %p685 = pneg %p54
        $region106: #{image_caption_forward.3} parent=103 // pred_check_branch
          %687 = sbr.rel (%p685) target = $region108
        $region107: #{image_caption_forward.3} parent=103 // pred_region
          %p688 = scmp.lt.s32.totalorder %s34, 1
          %s689 = scalar_select %p688, %s34, 1
          %s690 = smul.addr %s689, 4
          %s691 = scalar_lea.vmem %s0, %s690
        $region108: #{image_caption_forward.3} parent=103 // pred_fallthru
          _
        // Predicated region
        $region109: #{image_caption_forward.3} parent=103 // pred_check
          %p692 = pneg %p80
        $region110: #{image_caption_forward.3} parent=103 // pred_check_branch
          %694 = sbr.rel (%p692) target = $region112
        $region111: #{image_caption_forward.3} parent=103 // pred_region
          %p695 = scmp.lt.s32.totalorder %s34, 1
          %s696 = scalar_select %p695, %s34, 1
          %s697 = smul.addr %s696, 2
          %s698 = smul.addr %s697, 4
          %s699 = scalar_lea.vmem %s1, %s698
        $region112: #{image_caption_forward.3} parent=103 // pred_fallthru
          _
        // Predicated region
        $region113: #{image_caption_forward.3} parent=103 // pred_check
          %p700 = pneg %p106
        $region114: #{image_caption_forward.3} parent=103 // pred_check_branch
          %702 = sbr.rel (%p700) target = $region116
        $region115: #{image_caption_forward.3} parent=103 // pred_region
          %p703 = scmp.lt.s32.totalorder %s34, 1
          %s704 = scalar_select %p703, %s34, 1
          %s705 = scalar_lea.vmem %s2, %s704
        $region116: #{image_caption_forward.3} parent=103 // pred_fallthru
          _
      $region104: #{image_caption_forward.3} parent=5 // pred_fallthru
        _
      %p706 = scmp.le.s32.totalorder 1, %s34
      %p707 = scmp.lt.s32.totalorder %s34, 3
      %p708 = pnand %p706, %p707
      %p709 = pneg %p708
      // Predicated region
      $region117: #{image_caption_forward.3} parent=5 // pred_check
        _
      $region118: #{image_caption_forward.3} parent=5 // pred_check_branch
        %711 = sbr.rel (%p708) target = $region120
      $region119: #{image_caption_forward.3} parent=5 // pred_region
        %s712 = ssub.s32 %s34, 1
        %p713 = scmp.lt.s32.totalorder %s39, 1
        %s714 = scalar_select %p713, %s39, 1
        %s715 = smul.addr %s714, 4
        %s716 = scalar_lea.vmem %s0, %s715
        %p717 = pneg %p60
        %p718 = pneg %p57
        %p719 = scmp.lt.s32.totalorder %s39, 1
        %s720 = scalar_select %p719, %s39, 1
        %s721 = smul.addr %s720, 2
        %s722 = smul.addr %s721, 4
        %s723 = scalar_lea.vmem %s1, %s722
        %p724 = pneg %p86
        %p725 = pneg %p83
        %p726 = scmp.lt.s32.totalorder %s39, 1
        %s727 = scalar_select %p726, %s39, 1
        %s728 = scalar_lea.vmem %s2, %s727
        %p729 = pneg %p112
        %p730 = pneg %p109
        %p731 = pneg %p133
        %p732 = pneg %p130
        %p733 = pneg %p154
        %p734 = pneg %p151
        %p735 = pneg %p175
        %p736 = pneg %p172
        %p737 = pneg %p196
        %p738 = pneg %p193
        %p739 = pneg %p217
        %p740 = pneg %p214
        %p741 = pneg %p238
        %p742 = pneg %p235
        %p743 = pneg %p259
        %p744 = pneg %p256
        %p745 = pneg %p280
        %p746 = pneg %p277
        %p747 = pneg %p301
        %p748 = pneg %p298
        %p749 = pneg %p322
        %p750 = pneg %p319
        %p751 = pneg %p343
        %p752 = pneg %p340
        %p753 = pneg %p364
        %p754 = pneg %p361
        %p755 = pneg %p385
        %p756 = pneg %p382
        %p757 = pneg %p406
        %p758 = pneg %p403
        %p759 = pneg %p427
        %p760 = pneg %p424
        %p761 = pneg %p448
        %p762 = pneg %p445
        %p763 = pneg %p469
        %p764 = pneg %p466
        %p765 = pneg %p490
        %p766 = pneg %p487
        %p767 = pneg %p511
        %p768 = pneg %p508
        %p769 = pneg %p532
        %p770 = pneg %p529
        %p771 = pneg %p553
        %p772 = pneg %p550
        %p773 = pneg %p574
        %p774 = pneg %p571
        %p775 = pneg %p600
        %p776 = pneg %p597
        %s777 = sand.u32 %s587, 1
        %s778 = scalar_lea.sflag [#allocation3], %s777
        %s779 = sand.u32 %s587, 1
        %s780 = smul.addr %s779, 32
        %s781 = scalar_lea.vmem [#allocation2], %s780
        %p782 = scmp.lt.s32.totalorder %s39, 1
        %s783 = scalar_select %p782, %s39, 1
        %s784 = smul.addr %s783, 4
        %s785 = scalar_lea.vmem %s0, %s784
        %p786 = scmp.lt.s32.totalorder %s39, 1
        %s787 = scalar_select %p786, %s39, 1
        %s788 = smul.addr %s787, 2
        %s789 = smul.addr %s788, 4
        %s790 = scalar_lea.vmem %s1, %s789
        %p791 = scmp.lt.s32.totalorder %s39, 1
        %s792 = scalar_select %p791, %s39, 1
        %s793 = scalar_lea.vmem %s2, %s792
        %v795 = vld [vmem:[%s785] sm:$0xf]
        %v796 = vunpack.c.l.bf16 %v795
        %v797 = vld [vmem:[%s790] sm:$0xf]
        %v798 = vld [vmem:[%s790 + $0x4] sm:$0xf]
        %v799 = vlaneseq
        %v800 = vshrl.u32 %v799, 7
        %v801 = vlaneseq
        %v802 = vand.u32 %v801, 127
        %vm803 = vcmp.ge.s32.totalorder %v800, %v802
        %v804 = vsel %vm803, 0.0, -1e+09
        %v805 = vld [vmem:[%s793] sm:$0x1]
        %v807 = vlaneseq
        %v808 = vshrl.u32 %v807, 7
        %v809 = vsub.s32 0, %v808
        %v810 = vrot.slane %v805, %v809
        %v812 = vadd.f32 %v804, %v810
        %v813 = vld [vmem:[%s3] sm:$0xff]
        %v814 = vld [vmem:[%s3 + $0x8] sm:$0xf]
        %v815 = vld [vmem:[%s3 + $0xc] sm:$0xff]
        %v816 = vld [vmem:[%s3 + $0x14] sm:$0xf]
        %v817 = vld [vmem:[%s3 + $0x18] sm:$0xff]
        %v818 = vld [vmem:[%s3 + $0x20] sm:$0xf]
        %v819 = vld [vmem:[%s3 + $0x24] sm:$0xff]
        %v820 = vld [vmem:[%s3 + $0x2c] sm:$0xf]
        %v821 = vld [vmem:[%s3 + $0x30] sm:$0xff]
        %v822 = vld [vmem:[%s3 + $0x38] sm:$0xf]
        %v823 = vld [vmem:[%s3 + $0x3c] sm:$0xff]
        %v824 = vld [vmem:[%s3 + $0x44] sm:$0xf]
        %v825 = vld [vmem:[%s3 + $0x48] sm:$0xff]
        %v826 = vld [vmem:[%s3 + $0x50] sm:$0xf]
        %v827 = vld [vmem:[%s3 + $0x54] sm:$0xff]
        %v828 = vld [vmem:[%s3 + $0x5c] sm:$0xf]
        %v829 = vld [vmem:[%s3 + $0x60] sm:$0xff]
        %v830 = vld [vmem:[%s3 + $0x68] sm:$0xf]
        %v831 = vld [vmem:[%s3 + $0x6c] sm:$0xff]
        %v832 = vld [vmem:[%s3 + $0x74] sm:$0xf]
        %v833 = vld [vmem:[%s3 + $0x78] sm:$0xff]
        %v834 = vld [vmem:[%s3 + $0x80] sm:$0xf]
        %v835 = vld [vmem:[%s3 + $0x84] sm:$0xff]
        %v836 = vld [vmem:[%s3 + $0x8c] sm:$0xf]
        %v837 = vld [vmem:[%s3 + $0x90] sm:$0xff]
        %v838 = vld [vmem:[%s3 + $0x98] sm:$0xf]
        %v839 = vld [vmem:[%s3 + $0x9c] sm:$0xff]
        %v840 = vld [vmem:[%s3 + $0xa4] sm:$0xf]
        %v841 = vld [vmem:[%s3 + $0xa8] sm:$0xff]
        %v842 = vld [vmem:[%s3 + $0xb0] sm:$0xf]
        %v843 = vld [vmem:[%s3 + $0xb4] sm:$0xff]
        %v844 = vld [vmem:[%s3 + $0xbc] sm:$0xf]
        %v845 = vld [vmem:[%s4] sm:$0x7]
        %v847 = vlaneseq
        %v848 = vshrl.u32 %v847, 7
        %v849 = vsub.s32 0, %v848
        %v850 = vrot.slane %v845, %v849
        %v851 = vlaneseq
        %v852 = vshrl.u32 %v851, 7
        %v853 = vsub.s32 1, %v852
        %v854 = vrot.slane %v845, %v853
        %v855 = vlaneseq
        %v856 = vshrl.u32 %v855, 7
        %v857 = vsub.s32 2, %v856
        %v858 = vrot.slane %v845, %v857
        %v894 = vunpack.c.l.b16 %v813
        %v895 = vunpack.c.h.b16 %v813
        %v896 = vunpack.c.l.b16 %v814
        %v897 = vunpack.c.l.b16 %v815
        %v898 = vunpack.c.h.b16 %v815
        %v899 = vunpack.c.l.b16 %v816
        %v900 = vunpack.c.l.b16 %v817
        %v901 = vunpack.c.h.b16 %v817
        %v902 = vunpack.c.l.b16 %v818
        %v903 = vunpack.c.l.b16 %v819
        %v904 = vunpack.c.h.b16 %v819
        %v905 = vunpack.c.l.b16 %v820
        %v906 = vunpack.c.l.b16 %v821
        %v907 = vunpack.c.h.b16 %v821
        %v908 = vunpack.c.l.b16 %v822
        %v909 = vunpack.c.l.b16 %v823
        %v910 = vunpack.c.h.b16 %v823
        %v911 = vunpack.c.l.b16 %v824
        %v912 = vunpack.c.l.b16 %v825
        %v913 = vunpack.c.h.b16 %v825
        %v914 = vunpack.c.l.b16 %v826
        %v915 = vunpack.c.l.b16 %v827
        %v916 = vunpack.c.h.b16 %v827
        %v917 = vunpack.c.l.b16 %v828
        %v918 = vunpack.c.l.b16 %v829
        %v919 = vunpack.c.h.b16 %v829
        %v920 = vunpack.c.l.b16 %v830
        %v921 = vunpack.c.l.b16 %v831
        %v922 = vunpack.c.h.b16 %v831
        %v923 = vunpack.c.l.b16 %v832
        %v924 = vunpack.c.l.b16 %v833
        %v925 = vunpack.c.h.b16 %v833
        %v926 = vunpack.c.l.b16 %v834
        %v927 = vunpack.c.l.b16 %v835
        %v928 = vunpack.c.h.b16 %v835
        %v929 = vunpack.c.l.b16 %v836
        %v930 = vunpack.c.l.b16 %v837
        %v931 = vunpack.c.h.b16 %v837
        %v932 = vunpack.c.l.b16 %v838
        %v933 = vunpack.c.l.b16 %v839
        %v934 = vunpack.c.h.b16 %v839
        %v935 = vunpack.c.l.b16 %v840
        %v936 = vunpack.c.l.b16 %v841
        %v937 = vunpack.c.h.b16 %v841
        %v938 = vunpack.c.l.b16 %v842
        %v939 = vunpack.c.l.b16 %v843
        %v940 = vunpack.c.h.b16 %v843
        %v941 = vunpack.c.l.b16 %v844
        %v942 = vpack.c.b16 %v897, %v894
        %v943 = vpack.c.b16 %v898, %v895
        %v944 = vpack.c.b16 %v899, %v896
        %v945 = vpack.c.b16 %v903, %v900
        %v946 = vpack.c.b16 %v904, %v901
        %v947 = vpack.c.b16 %v905, %v902
        %v948 = vpack.c.b16 %v909, %v906
        %v949 = vpack.c.b16 %v910, %v907
        %v950 = vpack.c.b16 %v911, %v908
        %v951 = vpack.c.b16 %v915, %v912
        %v952 = vpack.c.b16 %v916, %v913
        %v953 = vpack.c.b16 %v917, %v914
        %v954 = vpack.c.b16 %v921, %v918
        %v955 = vpack.c.b16 %v922, %v919
        %v956 = vpack.c.b16 %v923, %v920
        %v957 = vpack.c.b16 %v927, %v924
        %v958 = vpack.c.b16 %v928, %v925
        %v959 = vpack.c.b16 %v929, %v926
        %v960 = vpack.c.b16 %v933, %v930
        %v961 = vpack.c.b16 %v934, %v931
        %v962 = vpack.c.b16 %v935, %v932
        %v963 = vpack.c.b16 %v939, %v936
        %v964 = vpack.c.b16 %v940, %v937
        %v965 = vpack.c.b16 %v941, %v938
        %990 = vmatprep.subr.bf16.mxu0 %v964
        %991 = vmatpush1.bf16.msra.mxu0 %v963
        %992 = vmatprep.subr.bf16.mxu0 %v961
        %993 = vmatpush1.bf16.msra.mxu0 %v960
        %994 = vmatprep.subr.bf16.mxu0 %v958
        %995 = vmatpush1.bf16.msra.mxu0 %v957
        %996 = vmatprep.subr.bf16.mxu0 %v955
        %997 = vmatpush1.bf16.msra.mxu0 %v954
        %998 = vmatprep.subr.bf16.mxu0 %v952
        %999 = vmatpush1.bf16.msra.mxu0 %v951
        %1000 = vmatprep.subr.bf16.mxu0 %v949
        %1001 = vmatpush1.bf16.msra.mxu0 %v948
        %1002 = vmatprep.subr.bf16.mxu0 %v946
        %1003 = vmatpush1.bf16.msra.mxu0 %v945
        %1004 = vmatprep.subr.bf16.mxu0 %v943
        %1005 = vmatpush1.bf16.msra.mxu0 %v942
        %1006 = vmatprep.subr.bf16.mxu0 0
        %1007 = vmatpush2.bf16.msra.mxu0 0
        %1008 = vmatprep.subr.bf16.mxu0 0
        %1009 = vmatpush2.bf16.msra.mxu0 0
        %1010 = vmatprep.subr.bf16.mxu0 0
        %1011 = vmatpush2.bf16.msra.mxu0 0
        %1012 = vmatprep.subr.bf16.mxu0 0
        %1013 = vmatpush2.bf16.msra.mxu0 0
        %1014 = vmatprep.subr.bf16.mxu0 0
        %1015 = vmatpush2.bf16.msra.mxu0 0
        %1016 = vmatprep.subr.bf16.mxu0 0
        %1017 = vmatpush2.bf16.msra.mxu0 0
        %1018 = vmatprep.subr.bf16.mxu0 0
        %1019 = vmatpush2.bf16.msra.mxu0 0
        %1020 = vmatprep.subr.bf16.mxu0 0
        %1021 = vmatpush2.bf16.msra.mxu0 0
        %1022 = vmatprep.mubr.bf16.mxu0 0
        %1023 = vmatmul.mubr.bf16.gmra.mxu0 %v795
        %v1024 = vpop.f32.mrf.mxu0
        %v1025 = vadd.f32 %v850, %v1024
        %v1026 = vpop.f32.mrf.mxu0
        %v1027 = vadd.f32 %v854, %v1026
        %v1028 = vpop.f32.mrf.mxu0
        %v1029 = vpop.f32.mrf.mxu0
        %1030 = vdwg.mxu0
        %1031 = vmatprep.subr.bf16.mxu0 0
        %1032 = vmatpush1.bf16.msra.mxu0 %v965
        %1033 = vmatprep.subr.bf16.mxu0 0
        %1034 = vmatpush1.bf16.msra.mxu0 %v962
        %1035 = vmatprep.subr.bf16.mxu0 0
        %1036 = vmatpush1.bf16.msra.mxu0 %v959
        %1037 = vmatprep.subr.bf16.mxu0 0
        %1038 = vmatpush1.bf16.msra.mxu0 %v956
        %1039 = vmatprep.subr.bf16.mxu0 0
        %1040 = vmatpush1.bf16.msra.mxu0 %v953
        %1041 = vmatprep.subr.bf16.mxu0 0
        %1042 = vmatpush1.bf16.msra.mxu0 %v950
        %1043 = vmatprep.subr.bf16.mxu0 0
        %1044 = vmatpush1.bf16.msra.mxu0 %v947
        %1045 = vmatprep.subr.bf16.mxu0 0
        %1046 = vmatpush1.bf16.msra.mxu0 %v944
        %1047 = vmatprep.subr.bf16.mxu0 0
        %1048 = vmatpush2.bf16.msra.mxu0 0
        %1049 = vmatprep.subr.bf16.mxu0 0
        %1050 = vmatpush2.bf16.msra.mxu0 0
        %1051 = vmatprep.subr.bf16.mxu0 0
        %1052 = vmatpush2.bf16.msra.mxu0 0
        %1053 = vmatprep.subr.bf16.mxu0 0
        %1054 = vmatpush2.bf16.msra.mxu0 0
        %1055 = vmatprep.subr.bf16.mxu0 0
        %1056 = vmatpush2.bf16.msra.mxu0 0
        %1057 = vmatprep.subr.bf16.mxu0 0
        %1058 = vmatpush2.bf16.msra.mxu0 0
        %1059 = vmatprep.subr.bf16.mxu0 0
        %1060 = vmatpush2.bf16.msra.mxu0 0
        %1061 = vmatprep.subr.bf16.mxu0 0
        %1062 = vmatpush2.bf16.msra.mxu0 0
        %1063 = vmatprep.mubr.bf16.mxu0 0
        %1064 = vmatmul.mubr.bf16.gmra.mxu0 %v795
        %v1065 = vpop.f32.mrf.mxu0
        %v1066 = vadd.f32 %v858, %v1065
        %v1067 = vpop.f32.mrf.mxu0
        %v1068 = vpop.f32.mrf.mxu0
        %v1069 = vpop.f32.mrf.mxu0
        %1070 = vdwg.mxu0
        %v1071 = vpack.c.bf16 %v1025, %v1025
        %v1072 = vpack.c.bf16 %v1027, %v1027
        %v1073 = vpack.c.bf16 %v1066, %v1066
        %vm1074 = vcmask 261120
        %v1076 = vsel %vm1074, %v1071, 0
        %v1079 = vsel %vm1074, %v1072, 0
        %1081 = vmatprep.subr.bf16.mxu0 0
        %1082 = vmatpush1.bf16.xpose.msra.mxu0 0
        %1083 = vmatprep.subr.bf16.mxu0 0
        %1084 = vmatpush1.bf16.xpose.msra.mxu0 0
        %1085 = vmatprep.subr.bf16.mxu0 0
        %1086 = vmatpush1.bf16.xpose.msra.mxu0 0
        %1087 = vmatprep.subr.bf16.mxu0 0
        %1088 = vmatpush1.bf16.xpose.msra.mxu0 0
        %1089 = vmatprep.subr.bf16.mxu0 0
        %1090 = vmatpush1.bf16.xpose.msra.mxu0 0
        %1091 = vmatprep.subr.bf16.mxu0 0
        %1092 = vmatpush1.bf16.xpose.msra.mxu0 0
        %1093 = vmatprep.subr.bf16.mxu0 0
        %1094 = vmatpush1.bf16.xpose.msra.mxu0 0
        %1095 = vmatprep.subr.bf16.mxu0 0
        %1096 = vmatpush1.bf16.xpose.msra.mxu0 %v1079
        %1097 = vmatprep.subr.bf16.mxu0 0
        %1098 = vmatpush2.bf16.xpose.msra.mxu0 0
        %1099 = vmatprep.subr.bf16.mxu0 0
        %1100 = vmatpush2.bf16.xpose.msra.mxu0 0
        %1101 = vmatprep.subr.bf16.mxu0 0
        %1102 = vmatpush2.bf16.xpose.msra.mxu0 0
        %1103 = vmatprep.subr.bf16.mxu0 0
        %1104 = vmatpush2.bf16.xpose.msra.mxu0 0
        %1105 = vmatprep.subr.bf16.mxu0 0
        %1106 = vmatpush2.bf16.xpose.msra.mxu0 0
        %1107 = vmatprep.subr.bf16.mxu0 0
        %1108 = vmatpush2.bf16.xpose.msra.mxu0 0
        %1109 = vmatprep.subr.bf16.mxu0 0
        %1110 = vmatpush2.bf16.xpose.msra.mxu0 0
        %1111 = vmatprep.subr.bf16.mxu0 0
        %1112 = vmatpush2.bf16.xpose.msra.mxu0 0
        %1113 = vmatprep.mubr.bf16.mxu0 0
        %1114 = vmatmul.mubr.bf16.gmra.mxu0 %v1076
        %v1115 = vpop.f32.mrf.mxu0
        %v1116 = vadd.f32 %v812, %v1115
        %v1117 = vpop.f32.mrf.mxu0
        %v1118 = vpop.f32.mrf.mxu0
        %v1119 = vpop.f32.mrf.mxu0
        %1120 = vdwg.mxu0
        %vm1121 = vcmask 64512
        %v1122 = vsel %vm1121, %v1116, -inf
        %1123 = vmax.xlane.f32.xlu0 %v1122
        %v1124 = vpop.xlane.xlu0 %1123
        %v1125 = vsub.f32 %v1116, %v1124
        %v1126 = vmul.f32 %v1125, 1.442695
        %v1127 = vpow.pop %v1126
        %v1128 = vsel %vm1121, %v1127, 0.0
        %1129 = vadd.xlane.f32.xlu0 %v1128
        %v1130 = vpop.xlane.xlu0 %1129
        %v1131 = vrcp.pop %v1130
        %v1132 = vmul.f32 %v1127, %v1131
        %v1133 = vpack.c.bf16 %v1132, %v1132
        %v1135 = vsel %vm1121, %v1133, 0
        %vm1137 = vcmask 1043456
        %v1139 = vsel %vm1137, %v1073, 0
        %1141 = vmatprep.subr.bf16.mxu0 0
        %1142 = vmatpush1.bf16.msra.mxu0 0
        %1143 = vmatprep.subr.bf16.mxu0 0
        %1144 = vmatpush1.bf16.msra.mxu0 0
        %1145 = vmatprep.subr.bf16.mxu0 0
        %1146 = vmatpush1.bf16.msra.mxu0 0
        %1147 = vmatprep.subr.bf16.mxu0 0
        %1148 = vmatpush1.bf16.msra.mxu0 0
        %1149 = vmatprep.subr.bf16.mxu0 0
        %1150 = vmatpush1.bf16.msra.mxu0 0
        %1151 = vmatprep.subr.bf16.mxu0 0
        %1152 = vmatpush1.bf16.msra.mxu0 0
        %1153 = vmatprep.subr.bf16.mxu0 0
        %1154 = vmatpush1.bf16.msra.mxu0 0
        %1155 = vmatprep.subr.bf16.mxu0 0
        %1156 = vmatpush1.bf16.msra.mxu0 %v1139
        %1157 = vmatprep.subr.bf16.mxu0 0
        %1158 = vmatpush2.bf16.msra.mxu0 0
        %1159 = vmatprep.subr.bf16.mxu0 0
        %1160 = vmatpush2.bf16.msra.mxu0 0
        %1161 = vmatprep.subr.bf16.mxu0 0
        %1162 = vmatpush2.bf16.msra.mxu0 0
        %1163 = vmatprep.subr.bf16.mxu0 0
        %1164 = vmatpush2.bf16.msra.mxu0 0
        %1165 = vmatprep.subr.bf16.mxu0 0
        %1166 = vmatpush2.bf16.msra.mxu0 0
        %1167 = vmatprep.subr.bf16.mxu0 0
        %1168 = vmatpush2.bf16.msra.mxu0 0
        %1169 = vmatprep.subr.bf16.mxu0 0
        %1170 = vmatpush2.bf16.msra.mxu0 0
        %1171 = vmatprep.subr.bf16.mxu0 0
        %1172 = vmatpush2.bf16.msra.mxu0 0
        %1173 = vmatprep.mubr.bf16.mxu0 0
        %1174 = vmatmul.mubr.bf16.gmra.mxu0 %v1135
        %v1175 = vpop.f32.mrf.mxu0
        %v1176 = vadd.f32 0.0, %v1175
        %v1177 = vpop.f32.mrf.mxu0
        %v1178 = vpop.f32.mrf.mxu0
        %v1179 = vpop.f32.mrf.mxu0
        %1180 = vdwg.mxu0
        %1182 = vrot.lane.b32.xlu0 %v1071, 96
        %v1183 = vpop.permute.xlu0 %1182
        %1185 = vrot.lane.b32.xlu0 %v1072, 96
        %v1186 = vpop.permute.xlu0 %1185
        %v1188 = vsel %vm1074, %v1183, 0
        %v1191 = vsel %vm1074, %v1186, 0
        %1193 = vmatprep.subr.bf16.mxu0 0
        %1194 = vmatpush1.bf16.xpose.msra.mxu0 0
        %1195 = vmatprep.subr.bf16.mxu0 0
        %1196 = vmatpush1.bf16.xpose.msra.mxu0 0
        %1197 = vmatprep.subr.bf16.mxu0 0
        %1198 = vmatpush1.bf16.xpose.msra.mxu0 0
        %1199 = vmatprep.subr.bf16.mxu0 0
        %1200 = vmatpush1.bf16.xpose.msra.mxu0 0
        %1201 = vmatprep.subr.bf16.mxu0 0
        %1202 = vmatpush1.bf16.xpose.msra.mxu0 0
        %1203 = vmatprep.subr.bf16.mxu0 0
        %1204 = vmatpush1.bf16.xpose.msra.mxu0 0
        %1205 = vmatprep.subr.bf16.mxu0 0
        %1206 = vmatpush1.bf16.xpose.msra.mxu0 0
        %1207 = vmatprep.subr.bf16.mxu0 0
        %1208 = vmatpush1.bf16.xpose.msra.mxu0 %v1191
        %1209 = vmatprep.subr.bf16.mxu0 0
        %1210 = vmatpush2.bf16.xpose.msra.mxu0 0
        %1211 = vmatprep.subr.bf16.mxu0 0
        %1212 = vmatpush2.bf16.xpose.msra.mxu0 0
        %1213 = vmatprep.subr.bf16.mxu0 0
        %1214 = vmatpush2.bf16.xpose.msra.mxu0 0
        %1215 = vmatprep.subr.bf16.mxu0 0
        %1216 = vmatpush2.bf16.xpose.msra.mxu0 0
        %1217 = vmatprep.subr.bf16.mxu0 0
        %1218 = vmatpush2.bf16.xpose.msra.mxu0 0
        %1219 = vmatprep.subr.bf16.mxu0 0
        %1220 = vmatpush2.bf16.xpose.msra.mxu0 0
        %1221 = vmatprep.subr.bf16.mxu0 0
        %1222 = vmatpush2.bf16.xpose.msra.mxu0 0
        %1223 = vmatprep.subr.bf16.mxu0 0
        %1224 = vmatpush2.bf16.xpose.msra.mxu0 0
        %1225 = vmatprep.mubr.bf16.mxu0 0
        %1226 = vmatmul.mubr.bf16.gmra.mxu0 %v1188
        %v1227 = vpop.f32.mrf.mxu0
        %v1228 = vadd.f32 %v812, %v1227
        %v1229 = vpop.f32.mrf.mxu0
        %v1230 = vpop.f32.mrf.mxu0
        %v1231 = vpop.f32.mrf.mxu0
        %1232 = vdwg.mxu0
        %v1233 = vsel %vm1121, %v1228, -inf
        %1234 = vmax.xlane.f32.xlu0 %v1233
        %v1235 = vpop.xlane.xlu0 %1234
        %v1236 = vsub.f32 %v1228, %v1235
        %v1237 = vmul.f32 %v1236, 1.442695
        %v1238 = vpow.pop %v1237
        %v1239 = vsel %vm1121, %v1238, 0.0
        %1240 = vadd.xlane.f32.xlu0 %v1239
        %v1241 = vpop.xlane.xlu0 %1240
        %v1242 = vrcp.pop %v1241
        %v1243 = vmul.f32 %v1238, %v1242
        %v1244 = vpack.c.bf16 %v1243, %v1243
        %1246 = vrot.lane.b32.xlu0 %v1073, 96
        %v1247 = vpop.permute.xlu0 %1246
        %v1249 = vsel %vm1121, %v1244, 0
        %v1252 = vsel %vm1137, %v1247, 0
        %1254 = vmatprep.subr.bf16.mxu0 0
        %1255 = vmatpush1.bf16.msra.mxu0 0
        %1256 = vmatprep.subr.bf16.mxu0 0
        %1257 = vmatpush1.bf16.msra.mxu0 0
        %1258 = vmatprep.subr.bf16.mxu0 0
        %1259 = vmatpush1.bf16.msra.mxu0 0
        %1260 = vmatprep.subr.bf16.mxu0 0
        %1261 = vmatpush1.bf16.msra.mxu0 0
        %1262 = vmatprep.subr.bf16.mxu0 0
        %1263 = vmatpush1.bf16.msra.mxu0 0
        %1264 = vmatprep.subr.bf16.mxu0 0
        %1265 = vmatpush1.bf16.msra.mxu0 0
        %1266 = vmatprep.subr.bf16.mxu0 0
        %1267 = vmatpush1.bf16.msra.mxu0 0
        %1268 = vmatprep.subr.bf16.mxu0 0
        %1269 = vmatpush1.bf16.msra.mxu0 %v1252
        %1270 = vmatprep.subr.bf16.mxu0 0
        %1271 = vmatpush2.bf16.msra.mxu0 0
        %1272 = vmatprep.subr.bf16.mxu0 0
        %1273 = vmatpush2.bf16.msra.mxu0 0
        %1274 = vmatprep.subr.bf16.mxu0 0
        %1275 = vmatpush2.bf16.msra.mxu0 0
        %1276 = vmatprep.subr.bf16.mxu0 0
        %1277 = vmatpush2.bf16.msra.mxu0 0
        %1278 = vmatprep.subr.bf16.mxu0 0
        %1279 = vmatpush2.bf16.msra.mxu0 0
        %1280 = vmatprep.subr.bf16.mxu0 0
        %1281 = vmatpush2.bf16.msra.mxu0 0
        %1282 = vmatprep.subr.bf16.mxu0 0
        %1283 = vmatpush2.bf16.msra.mxu0 0
        %1284 = vmatprep.subr.bf16.mxu0 0
        %1285 = vmatpush2.bf16.msra.mxu0 0
        %1286 = vmatprep.mubr.bf16.mxu0 0
        %1287 = vmatmul.mubr.bf16.gmra.mxu0 %v1249
        %v1288 = vpop.f32.mrf.mxu0
        %v1289 = vadd.f32 0.0, %v1288
        %v1290 = vpop.f32.mrf.mxu0
        %v1291 = vpop.f32.mrf.mxu0
        %v1292 = vpop.f32.mrf.mxu0
        %1293 = vdwg.mxu0
        %1294 = vrot.lane.b32.xlu0 %v1071, 64
        %v1295 = vpop.permute.xlu0 %1294
        %1296 = vrot.lane.b32.xlu0 %v1072, 64
        %v1297 = vpop.permute.xlu0 %1296
        %v1299 = vsel %vm1074, %v1295, 0
        %v1302 = vsel %vm1074, %v1297, 0
        %1304 = vmatprep.subr.bf16.mxu0 0
        %1305 = vmatpush1.bf16.xpose.msra.mxu0 0
        %1306 = vmatprep.subr.bf16.mxu0 0
        %1307 = vmatpush1.bf16.xpose.msra.mxu0 0
        %1308 = vmatprep.subr.bf16.mxu0 0
        %1309 = vmatpush1.bf16.xpose.msra.mxu0 0
        %1310 = vmatprep.subr.bf16.mxu0 0
        %1311 = vmatpush1.bf16.xpose.msra.mxu0 0
        %1312 = vmatprep.subr.bf16.mxu0 0
        %1313 = vmatpush1.bf16.xpose.msra.mxu0 0
        %1314 = vmatprep.subr.bf16.mxu0 0
        %1315 = vmatpush1.bf16.xpose.msra.mxu0 0
        %1316 = vmatprep.subr.bf16.mxu0 0
        %1317 = vmatpush1.bf16.xpose.msra.mxu0 0
        %1318 = vmatprep.subr.bf16.mxu0 0
        %1319 = vmatpush1.bf16.xpose.msra.mxu0 %v1302
        %1320 = vmatprep.subr.bf16.mxu0 0
        %1321 = vmatpush2.bf16.xpose.msra.mxu0 0
        %1322 = vmatprep.subr.bf16.mxu0 0
        %1323 = vmatpush2.bf16.xpose.msra.mxu0 0
        %1324 = vmatprep.subr.bf16.mxu0 0
        %1325 = vmatpush2.bf16.xpose.msra.mxu0 0
        %1326 = vmatprep.subr.bf16.mxu0 0
        %1327 = vmatpush2.bf16.xpose.msra.mxu0 0
        %1328 = vmatprep.subr.bf16.mxu0 0
        %1329 = vmatpush2.bf16.xpose.msra.mxu0 0
        %1330 = vmatprep.subr.bf16.mxu0 0
        %1331 = vmatpush2.bf16.xpose.msra.mxu0 0
        %1332 = vmatprep.subr.bf16.mxu0 0
        %1333 = vmatpush2.bf16.xpose.msra.mxu0 0
        %1334 = vmatprep.subr.bf16.mxu0 0
        %1335 = vmatpush2.bf16.xpose.msra.mxu0 0
        %1336 = vmatprep.mubr.bf16.mxu0 0
        %1337 = vmatmul.mubr.bf16.gmra.mxu0 %v1299
        %v1338 = vpop.f32.mrf.mxu0
        %v1339 = vadd.f32 %v812, %v1338
        %v1340 = vpop.f32.mrf.mxu0
        %v1341 = vpop.f32.mrf.mxu0
        %v1342 = vpop.f32.mrf.mxu0
        %1343 = vdwg.mxu0
        %v1344 = vsel %vm1121, %v1339, -inf
        %1345 = vmax.xlane.f32.xlu0 %v1344
        %v1346 = vpop.xlane.xlu0 %1345
        %v1347 = vsub.f32 %v1339, %v1346
        %v1348 = vmul.f32 %v1347, 1.442695
        %v1349 = vpow.pop %v1348
        %v1350 = vsel %vm1121, %v1349, 0.0
        %1351 = vadd.xlane.f32.xlu0 %v1350
        %v1352 = vpop.xlane.xlu0 %1351
        %v1353 = vrcp.pop %v1352
        %v1354 = vmul.f32 %v1349, %v1353
        %v1355 = vpack.c.bf16 %v1354, %v1354
        %1356 = vrot.lane.b32.xlu0 %v1073, 64
        %v1357 = vpop.permute.xlu0 %1356
        %v1359 = vsel %vm1121, %v1355, 0
        %v1362 = vsel %vm1137, %v1357, 0
        %1364 = vmatprep.subr.bf16.mxu0 0
        %1365 = vmatpush1.bf16.msra.mxu0 0
        %1366 = vmatprep.subr.bf16.mxu0 0
        %1367 = vmatpush1.bf16.msra.mxu0 0
        %1368 = vmatprep.subr.bf16.mxu0 0
        %1369 = vmatpush1.bf16.msra.mxu0 0
        %1370 = vmatprep.subr.bf16.mxu0 0
        %1371 = vmatpush1.bf16.msra.mxu0 0
        %1372 = vmatprep.subr.bf16.mxu0 0
        %1373 = vmatpush1.bf16.msra.mxu0 0
        %1374 = vmatprep.subr.bf16.mxu0 0
        %1375 = vmatpush1.bf16.msra.mxu0 0
        %1376 = vmatprep.subr.bf16.mxu0 0
        %1377 = vmatpush1.bf16.msra.mxu0 0
        %1378 = vmatprep.subr.bf16.mxu0 0
        %1379 = vmatpush1.bf16.msra.mxu0 %v1362
        %1380 = vmatprep.subr.bf16.mxu0 0
        %1381 = vmatpush2.bf16.msra.mxu0 0
        %1382 = vmatprep.subr.bf16.mxu0 0
        %1383 = vmatpush2.bf16.msra.mxu0 0
        %1384 = vmatprep.subr.bf16.mxu0 0
        %1385 = vmatpush2.bf16.msra.mxu0 0
        %1386 = vmatprep.subr.bf16.mxu0 0
        %1387 = vmatpush2.bf16.msra.mxu0 0
        %1388 = vmatprep.subr.bf16.mxu0 0
        %1389 = vmatpush2.bf16.msra.mxu0 0
        %1390 = vmatprep.subr.bf16.mxu0 0
        %1391 = vmatpush2.bf16.msra.mxu0 0
        %1392 = vmatprep.subr.bf16.mxu0 0
        %1393 = vmatpush2.bf16.msra.mxu0 0
        %1394 = vmatprep.subr.bf16.mxu0 0
        %1395 = vmatpush2.bf16.msra.mxu0 0
        %1396 = vmatprep.mubr.bf16.mxu0 0
        %1397 = vmatmul.mubr.bf16.gmra.mxu0 %v1359
        %v1398 = vpop.f32.mrf.mxu0
        %v1399 = vadd.f32 0.0, %v1398
        %v1400 = vpop.f32.mrf.mxu0
        %v1401 = vpop.f32.mrf.mxu0
        %v1402 = vpop.f32.mrf.mxu0
        %1403 = vdwg.mxu0
        %1404 = vrot.lane.b32.xlu0 %v1071, 32
        %v1405 = vpop.permute.xlu0 %1404
        %1406 = vrot.lane.b32.xlu0 %v1072, 32
        %v1407 = vpop.permute.xlu0 %1406
        %v1409 = vsel %vm1074, %v1405, 0
        %v1412 = vsel %vm1074, %v1407, 0
        %1414 = vmatprep.subr.bf16.mxu0 0
        %1415 = vmatpush1.bf16.xpose.msra.mxu0 0
        %1416 = vmatprep.subr.bf16.mxu0 0
        %1417 = vmatpush1.bf16.xpose.msra.mxu0 0
        %1418 = vmatprep.subr.bf16.mxu0 0
        %1419 = vmatpush1.bf16.xpose.msra.mxu0 0
        %1420 = vmatprep.subr.bf16.mxu0 0
        %1421 = vmatpush1.bf16.xpose.msra.mxu0 0
        %1422 = vmatprep.subr.bf16.mxu0 0
        %1423 = vmatpush1.bf16.xpose.msra.mxu0 0
        %1424 = vmatprep.subr.bf16.mxu0 0
        %1425 = vmatpush1.bf16.xpose.msra.mxu0 0
        %1426 = vmatprep.subr.bf16.mxu0 0
        %1427 = vmatpush1.bf16.xpose.msra.mxu0 0
        %1428 = vmatprep.subr.bf16.mxu0 0
        %1429 = vmatpush1.bf16.xpose.msra.mxu0 %v1412
        %1430 = vmatprep.subr.bf16.mxu0 0
        %1431 = vmatpush2.bf16.xpose.msra.mxu0 0
        %1432 = vmatprep.subr.bf16.mxu0 0
        %1433 = vmatpush2.bf16.xpose.msra.mxu0 0
        %1434 = vmatprep.subr.bf16.mxu0 0
        %1435 = vmatpush2.bf16.xpose.msra.mxu0 0
        %1436 = vmatprep.subr.bf16.mxu0 0
        %1437 = vmatpush2.bf16.xpose.msra.mxu0 0
        %1438 = vmatprep.subr.bf16.mxu0 0
        %1439 = vmatpush2.bf16.xpose.msra.mxu0 0
        %1440 = vmatprep.subr.bf16.mxu0 0
        %1441 = vmatpush2.bf16.xpose.msra.mxu0 0
        %1442 = vmatprep.subr.bf16.mxu0 0
        %1443 = vmatpush2.bf16.xpose.msra.mxu0 0
        %1444 = vmatprep.subr.bf16.mxu0 0
        %1445 = vmatpush2.bf16.xpose.msra.mxu0 0
        %1446 = vmatprep.mubr.bf16.mxu0 0
        %1447 = vmatmul.mubr.bf16.gmra.mxu0 %v1409
        %v1448 = vpop.f32.mrf.mxu0
        %v1449 = vadd.f32 %v812, %v1448
        %v1450 = vpop.f32.mrf.mxu0
        %v1451 = vpop.f32.mrf.mxu0
        %v1452 = vpop.f32.mrf.mxu0
        %1453 = vdwg.mxu0
        %v1454 = vsel %vm1121, %v1449, -inf
        %1455 = vmax.xlane.f32.xlu0 %v1454
        %v1456 = vpop.xlane.xlu0 %1455
        %v1457 = vsub.f32 %v1449, %v1456
        %v1458 = vmul.f32 %v1457, 1.442695
        %v1459 = vpow.pop %v1458
        %v1460 = vsel %vm1121, %v1459, 0.0
        %1461 = vadd.xlane.f32.xlu0 %v1460
        %v1462 = vpop.xlane.xlu0 %1461
        %v1463 = vrcp.pop %v1462
        %v1464 = vmul.f32 %v1459, %v1463
        %v1465 = vpack.c.bf16 %v1464, %v1464
        %1466 = vrot.lane.b32.xlu0 %v1073, 32
        %v1467 = vpop.permute.xlu0 %1466
        %v1469 = vsel %vm1121, %v1465, 0
        %v1472 = vsel %vm1137, %v1467, 0
        %1474 = vmatprep.subr.bf16.mxu0 0
        %1475 = vmatpush1.bf16.msra.mxu0 0
        %1476 = vmatprep.subr.bf16.mxu0 0
        %1477 = vmatpush1.bf16.msra.mxu0 0
        %1478 = vmatprep.subr.bf16.mxu0 0
        %1479 = vmatpush1.bf16.msra.mxu0 0
        %1480 = vmatprep.subr.bf16.mxu0 0
        %1481 = vmatpush1.bf16.msra.mxu0 0
        %1482 = vmatprep.subr.bf16.mxu0 0
        %1483 = vmatpush1.bf16.msra.mxu0 0
        %1484 = vmatprep.subr.bf16.mxu0 0
        %1485 = vmatpush1.bf16.msra.mxu0 0
        %1486 = vmatprep.subr.bf16.mxu0 0
        %1487 = vmatpush1.bf16.msra.mxu0 0
        %1488 = vmatprep.subr.bf16.mxu0 0
        %1489 = vmatpush1.bf16.msra.mxu0 %v1472
        %1490 = vmatprep.subr.bf16.mxu0 0
        %1491 = vmatpush2.bf16.msra.mxu0 0
        %1492 = vmatprep.subr.bf16.mxu0 0
        %1493 = vmatpush2.bf16.msra.mxu0 0
        %1494 = vmatprep.subr.bf16.mxu0 0
        %1495 = vmatpush2.bf16.msra.mxu0 0
        %1496 = vmatprep.subr.bf16.mxu0 0
        %1497 = vmatpush2.bf16.msra.mxu0 0
        %1498 = vmatprep.subr.bf16.mxu0 0
        %1499 = vmatpush2.bf16.msra.mxu0 0
        %1500 = vmatprep.subr.bf16.mxu0 0
        %1501 = vmatpush2.bf16.msra.mxu0 0
        %1502 = vmatprep.subr.bf16.mxu0 0
        %1503 = vmatpush2.bf16.msra.mxu0 0
        %1504 = vmatprep.subr.bf16.mxu0 0
        %1505 = vmatpush2.bf16.msra.mxu0 0
        %1506 = vmatprep.mubr.bf16.mxu0 0
        %1507 = vmatmul.mubr.bf16.gmra.mxu0 %v1469
        %v1508 = vpop.f32.mrf.mxu0
        %v1509 = vadd.f32 0.0, %v1508
        %v1510 = vpop.f32.mrf.mxu0
        %v1511 = vpop.f32.mrf.mxu0
        %v1512 = vpop.f32.mrf.mxu0
        %1513 = vdwg.mxu0
        %1515 = vrot.lane.b32.xlu0 %v1289, 32
        %v1516 = vpop.permute.xlu0 %1515
        %1519 = vrot.lane.b32.xlu0 %v1399, 64
        %v1520 = vpop.permute.xlu0 %1519
        %1523 = vrot.lane.b32.xlu0 %v1509, 96
        %v1524 = vpop.permute.xlu0 %1523
        %v1526 = vsel %vm1074, %v1176, %v1516
        %vm1527 = vcmask 523264
        %v1528 = vsel %vm1527, %v1526, %v1520
        %vm1529 = vcmask 785408
        %v1530 = vsel %vm1529, %v1528, %v1524
        %v1531 = vpack.c.bf16 %v1530, %v1530
        %v1532 = vld [vmem:[%s5] sm:$0xf]
        %v1533 = vld [vmem:[%s5 + $0x4] sm:$0xf]
        %v1534 = vld [vmem:[%s5 + $0x8] sm:$0xf]
        %v1535 = vld [vmem:[%s5 + $0xc] sm:$0xf]
        %v1536 = vld [vmem:[%s5 + $0x10] sm:$0xf]
        %v1537 = vld [vmem:[%s5 + $0x14] sm:$0xf]
        %v1538 = vld [vmem:[%s5 + $0x18] sm:$0xf]
        %v1539 = vld [vmem:[%s5 + $0x1c] sm:$0xf]
        %v1540 = vld [vmem:[%s5 + $0x20] sm:$0xf]
        %v1541 = vld [vmem:[%s5 + $0x24] sm:$0xf]
        %v1542 = vld [vmem:[%s5 + $0x28] sm:$0xf]
        %v1543 = vld [vmem:[%s5 + $0x2c] sm:$0xf]
        %v1544 = vld [vmem:[%s5 + $0x30] sm:$0xf]
        %v1545 = vld [vmem:[%s5 + $0x34] sm:$0xf]
        %v1546 = vld [vmem:[%s5 + $0x38] sm:$0xf]
        %v1547 = vld [vmem:[%s5 + $0x3c] sm:$0xf]
        %v1548 = vld [vmem:[%s6] sm:$0x1]
        %v1550 = vlaneseq
        %v1551 = vshrl.u32 %v1550, 7
        %v1552 = vsub.s32 0, %v1551
        %v1553 = vrot.slane %v1548, %v1552
        %v1571 = vunpack.c.l.b16 %v1532
        %v1572 = vunpack.c.l.b16 %v1533
        %v1573 = vunpack.c.l.b16 %v1534
        %v1574 = vunpack.c.l.b16 %v1535
        %v1575 = vunpack.c.l.b16 %v1536
        %v1576 = vunpack.c.l.b16 %v1537
        %v1577 = vunpack.c.l.b16 %v1538
        %v1578 = vunpack.c.l.b16 %v1539
        %v1579 = vunpack.c.l.b16 %v1540
        %v1580 = vunpack.c.l.b16 %v1541
        %v1581 = vunpack.c.l.b16 %v1542
        %v1582 = vunpack.c.l.b16 %v1543
        %v1583 = vunpack.c.l.b16 %v1544
        %v1584 = vunpack.c.l.b16 %v1545
        %v1585 = vunpack.c.l.b16 %v1546
        %v1586 = vunpack.c.l.b16 %v1547
        %v1587 = vpack.c.b16 %v1572, %v1571
        %v1588 = vpack.c.b16 %v1574, %v1573
        %v1589 = vpack.c.b16 %v1576, %v1575
        %v1590 = vpack.c.b16 %v1578, %v1577
        %v1591 = vpack.c.b16 %v1580, %v1579
        %v1592 = vpack.c.b16 %v1582, %v1581
        %v1593 = vpack.c.b16 %v1584, %v1583
        %v1594 = vpack.c.b16 %v1586, %v1585
        %1603 = vmatprep.subr.bf16.mxu0 0
        %1604 = vmatpush1.bf16.msra.mxu0 %v1594
        %1605 = vmatprep.subr.bf16.mxu0 0
        %1606 = vmatpush1.bf16.msra.mxu0 %v1593
        %1607 = vmatprep.subr.bf16.mxu0 0
        %1608 = vmatpush1.bf16.msra.mxu0 %v1592
        %1609 = vmatprep.subr.bf16.mxu0 0
        %1610 = vmatpush1.bf16.msra.mxu0 %v1591
        %1611 = vmatprep.subr.bf16.mxu0 0
        %1612 = vmatpush1.bf16.msra.mxu0 %v1590
        %1613 = vmatprep.subr.bf16.mxu0 0
        %1614 = vmatpush1.bf16.msra.mxu0 %v1589
        %1615 = vmatprep.subr.bf16.mxu0 0
        %1616 = vmatpush1.bf16.msra.mxu0 %v1588
        %1617 = vmatprep.subr.bf16.mxu0 0
        %1618 = vmatpush1.bf16.msra.mxu0 %v1587
        %1619 = vmatprep.subr.bf16.mxu0 0
        %1620 = vmatpush2.bf16.msra.mxu0 0
        %1621 = vmatprep.subr.bf16.mxu0 0
        %1622 = vmatpush2.bf16.msra.mxu0 0
        %1623 = vmatprep.subr.bf16.mxu0 0
        %1624 = vmatpush2.bf16.msra.mxu0 0
        %1625 = vmatprep.subr.bf16.mxu0 0
        %1626 = vmatpush2.bf16.msra.mxu0 0
        %1627 = vmatprep.subr.bf16.mxu0 0
        %1628 = vmatpush2.bf16.msra.mxu0 0
        %1629 = vmatprep.subr.bf16.mxu0 0
        %1630 = vmatpush2.bf16.msra.mxu0 0
        %1631 = vmatprep.subr.bf16.mxu0 0
        %1632 = vmatpush2.bf16.msra.mxu0 0
        %1633 = vmatprep.subr.bf16.mxu0 0
        %1634 = vmatpush2.bf16.msra.mxu0 0
        %1635 = vmatprep.mubr.bf16.mxu0 0
        %1636 = vmatmul.mubr.bf16.gmra.mxu0 %v1531
        %v1637 = vpop.f32.mrf.mxu0
        %v1638 = vadd.f32 %v1553, %v1637
        %v1639 = vpop.f32.mrf.mxu0
        %v1640 = vpop.f32.mrf.mxu0
        %v1641 = vpop.f32.mrf.mxu0
        %1642 = vdwg.mxu0
        %v1643 = vadd.f32 %v796, %v1638
        %v1644 = vld [vmem:[%s7] sm:$0x1]
        %v1645 = vld [vmem:[%s8] sm:$0x1]
        %1646 = vadd.xlane.f32.xlu0 %v1643
        %v1647 = vpop.xlane.xlu0 %1646
        %v1648 = vrcp.pop 128.0
        %v1649 = vmul.f32 %v1647, %v1648
        %v1650 = vsub.f32 %v1643, %v1649
        %v1651 = vmul.f32 %v1650, %v1650
        %1652 = vadd.xlane.f32.xlu0 %v1651
        %v1653 = vpop.xlane.xlu0 %1652
        %v1654 = vmul.f32 %v1653, %v1648
        %v1655 = vadd.f32 %v1654, 1e-05
        %v1656 = vrsqrt.pop %v1655
        %v1657 = vmul.f32 %v1650, %v1656
        %v1659 = vlaneseq
        %v1660 = vshrl.u32 %v1659, 7
        %v1661 = vsub.s32 0, %v1660
        %v1662 = vrot.slane %v1644, %v1661
        %v1664 = vmul.f32 %v1657, %v1662
        %v1666 = vlaneseq
        %v1667 = vshrl.u32 %v1666, 7
        %v1668 = vsub.s32 0, %v1667
        %v1669 = vrot.slane %v1645, %v1668
        %v1671 = vadd.f32 %v1664, %v1669
        %v1672 = vpack.c.bf16 %v1671, %v1671
        %v1673 = vld [vmem:[%s9] sm:$0xf]
        %v1674 = vld [vmem:[%s9 + $0x4] sm:$0xf]
        %v1675 = vld [vmem:[%s9 + $0x8] sm:$0xf]
        %v1676 = vld [vmem:[%s9 + $0xc] sm:$0xf]
        %v1677 = vld [vmem:[%s9 + $0x10] sm:$0xf]
        %v1678 = vld [vmem:[%s9 + $0x14] sm:$0xf]
        %v1679 = vld [vmem:[%s9 + $0x18] sm:$0xf]
        %v1680 = vld [vmem:[%s9 + $0x1c] sm:$0xf]
        %v1681 = vld [vmem:[%s9 + $0x20] sm:$0xf]
        %v1682 = vld [vmem:[%s9 + $0x24] sm:$0xf]
        %v1683 = vld [vmem:[%s9 + $0x28] sm:$0xf]
        %v1684 = vld [vmem:[%s9 + $0x2c] sm:$0xf]
        %v1685 = vld [vmem:[%s9 + $0x30] sm:$0xf]
        %v1686 = vld [vmem:[%s9 + $0x34] sm:$0xf]
        %v1687 = vld [vmem:[%s9 + $0x38] sm:$0xf]
        %v1688 = vld [vmem:[%s9 + $0x3c] sm:$0xf]
        %v1689 = vld [vmem:[%s10] sm:$0x1]
        %v1691 = vlaneseq
        %v1692 = vshrl.u32 %v1691, 7
        %v1693 = vsub.s32 0, %v1692
        %v1694 = vrot.slane %v1689, %v1693
        %v1712 = vunpack.c.l.b16 %v1673
        %v1713 = vunpack.c.l.b16 %v1674
        %v1714 = vunpack.c.l.b16 %v1675
        %v1715 = vunpack.c.l.b16 %v1676
        %v1716 = vunpack.c.l.b16 %v1677
        %v1717 = vunpack.c.l.b16 %v1678
        %v1718 = vunpack.c.l.b16 %v1679
        %v1719 = vunpack.c.l.b16 %v1680
        %v1720 = vunpack.c.l.b16 %v1681
        %v1721 = vunpack.c.l.b16 %v1682
        %v1722 = vunpack.c.l.b16 %v1683
        %v1723 = vunpack.c.l.b16 %v1684
        %v1724 = vunpack.c.l.b16 %v1685
        %v1725 = vunpack.c.l.b16 %v1686
        %v1726 = vunpack.c.l.b16 %v1687
        %v1727 = vunpack.c.l.b16 %v1688
        %v1728 = vpack.c.b16 %v1713, %v1712
        %v1729 = vpack.c.b16 %v1715, %v1714
        %v1730 = vpack.c.b16 %v1717, %v1716
        %v1731 = vpack.c.b16 %v1719, %v1718
        %v1732 = vpack.c.b16 %v1721, %v1720
        %v1733 = vpack.c.b16 %v1723, %v1722
        %v1734 = vpack.c.b16 %v1725, %v1724
        %v1735 = vpack.c.b16 %v1727, %v1726
        %1744 = vmatprep.subr.bf16.mxu0 0
        %1745 = vmatpush1.bf16.msra.mxu0 %v1735
        %1746 = vmatprep.subr.bf16.mxu0 0
        %1747 = vmatpush1.bf16.msra.mxu0 %v1734
        %1748 = vmatprep.subr.bf16.mxu0 0
        %1749 = vmatpush1.bf16.msra.mxu0 %v1733
        %1750 = vmatprep.subr.bf16.mxu0 0
        %1751 = vmatpush1.bf16.msra.mxu0 %v1732
        %1752 = vmatprep.subr.bf16.mxu0 0
        %1753 = vmatpush1.bf16.msra.mxu0 %v1731
        %1754 = vmatprep.subr.bf16.mxu0 0
        %1755 = vmatpush1.bf16.msra.mxu0 %v1730
        %1756 = vmatprep.subr.bf16.mxu0 0
        %1757 = vmatpush1.bf16.msra.mxu0 %v1729
        %1758 = vmatprep.subr.bf16.mxu0 0
        %1759 = vmatpush1.bf16.msra.mxu0 %v1728
        %1760 = vmatprep.subr.bf16.mxu0 0
        %1761 = vmatpush2.bf16.msra.mxu0 0
        %1762 = vmatprep.subr.bf16.mxu0 0
        %1763 = vmatpush2.bf16.msra.mxu0 0
        %1764 = vmatprep.subr.bf16.mxu0 0
        %1765 = vmatpush2.bf16.msra.mxu0 0
        %1766 = vmatprep.subr.bf16.mxu0 0
        %1767 = vmatpush2.bf16.msra.mxu0 0
        %1768 = vmatprep.subr.bf16.mxu0 0
        %1769 = vmatpush2.bf16.msra.mxu0 0
        %1770 = vmatprep.subr.bf16.mxu0 0
        %1771 = vmatpush2.bf16.msra.mxu0 0
        %1772 = vmatprep.subr.bf16.mxu0 0
        %1773 = vmatpush2.bf16.msra.mxu0 0
        %1774 = vmatprep.subr.bf16.mxu0 0
        %1775 = vmatpush2.bf16.msra.mxu0 0
        %1776 = vmatprep.mubr.bf16.mxu0 0
        %1777 = vmatmul.mubr.bf16.gmra.mxu0 %v1672
        %v1778 = vpop.f32.mrf.mxu0
        %v1779 = vadd.f32 %v1694, %v1778
        %v1780 = vpop.f32.mrf.mxu0
        %v1781 = vpop.f32.mrf.mxu0
        %v1782 = vpop.f32.mrf.mxu0
        %1783 = vdwg.mxu0
        %v1784 = vld [vmem:[%s11] sm:$0xff]
        %v1785 = vld [vmem:[%s11 + $0x8] sm:$0xff]
        %v1786 = vld [vmem:[%s11 + $0x10] sm:$0xff]
        %v1787 = vld [vmem:[%s11 + $0x18] sm:$0xff]
        %v1788 = vld [vmem:[%s11 + $0x20] sm:$0xff]
        %v1789 = vld [vmem:[%s11 + $0x28] sm:$0xff]
        %v1790 = vld [vmem:[%s11 + $0x30] sm:$0xff]
        %v1791 = vld [vmem:[%s11 + $0x38] sm:$0xff]
        %v1792 = vld [vmem:[%s11 + $0x40] sm:$0xff]
        %v1793 = vld [vmem:[%s11 + $0x48] sm:$0xff]
        %v1794 = vld [vmem:[%s11 + $0x50] sm:$0xff]
        %v1795 = vld [vmem:[%s11 + $0x58] sm:$0xff]
        %v1796 = vld [vmem:[%s11 + $0x60] sm:$0xff]
        %v1797 = vld [vmem:[%s11 + $0x68] sm:$0xff]
        %v1798 = vld [vmem:[%s11 + $0x70] sm:$0xff]
        %v1799 = vld [vmem:[%s11 + $0x78] sm:$0xff]
        %v1800 = vld [vmem:[%s12] sm:$0x3]
        %v1802 = vlaneseq
        %v1803 = vshrl.u32 %v1802, 7
        %v1804 = vsub.s32 0, %v1803
        %v1805 = vrot.slane %v1800, %v1804
        %v1806 = vlaneseq
        %v1807 = vshrl.u32 %v1806, 7
        %v1808 = vsub.s32 1, %v1807
        %v1809 = vrot.slane %v1800, %v1808
        %v1814 = vunpack.c.l.b16 %v797
        %v1815 = vunpack.c.l.b16 %v798
        %v1816 = vpack.c.b16 %v1815, %v1814
        %v1834 = vunpack.c.l.b16 %v1784
        %v1835 = vunpack.c.h.b16 %v1784
        %v1836 = vunpack.c.l.b16 %v1785
        %v1837 = vunpack.c.h.b16 %v1785
        %v1838 = vunpack.c.l.b16 %v1786
        %v1839 = vunpack.c.h.b16 %v1786
        %v1840 = vunpack.c.l.b16 %v1787
        %v1841 = vunpack.c.h.b16 %v1787
        %v1842 = vunpack.c.l.b16 %v1788
        %v1843 = vunpack.c.h.b16 %v1788
        %v1844 = vunpack.c.l.b16 %v1789
        %v1845 = vunpack.c.h.b16 %v1789
        %v1846 = vunpack.c.l.b16 %v1790
        %v1847 = vunpack.c.h.b16 %v1790
        %v1848 = vunpack.c.l.b16 %v1791
        %v1849 = vunpack.c.h.b16 %v1791
        %v1850 = vunpack.c.l.b16 %v1792
        %v1851 = vunpack.c.h.b16 %v1792
        %v1852 = vunpack.c.l.b16 %v1793
        %v1853 = vunpack.c.h.b16 %v1793
        %v1854 = vunpack.c.l.b16 %v1794
        %v1855 = vunpack.c.h.b16 %v1794
        %v1856 = vunpack.c.l.b16 %v1795
        %v1857 = vunpack.c.h.b16 %v1795
        %v1858 = vunpack.c.l.b16 %v1796
        %v1859 = vunpack.c.h.b16 %v1796
        %v1860 = vunpack.c.l.b16 %v1797
        %v1861 = vunpack.c.h.b16 %v1797
        %v1862 = vunpack.c.l.b16 %v1798
        %v1863 = vunpack.c.h.b16 %v1798
        %v1864 = vunpack.c.l.b16 %v1799
        %v1865 = vunpack.c.h.b16 %v1799
        %v1866 = vpack.c.b16 %v1836, %v1834
        %v1867 = vpack.c.b16 %v1837, %v1835
        %v1868 = vpack.c.b16 %v1840, %v1838
        %v1869 = vpack.c.b16 %v1841, %v1839
        %v1870 = vpack.c.b16 %v1844, %v1842
        %v1871 = vpack.c.b16 %v1845, %v1843
        %v1872 = vpack.c.b16 %v1848, %v1846
        %v1873 = vpack.c.b16 %v1849, %v1847
        %v1874 = vpack.c.b16 %v1852, %v1850
        %v1875 = vpack.c.b16 %v1853, %v1851
        %v1876 = vpack.c.b16 %v1856, %v1854
        %v1877 = vpack.c.b16 %v1857, %v1855
        %v1878 = vpack.c.b16 %v1860, %v1858
        %v1879 = vpack.c.b16 %v1861, %v1859
        %v1880 = vpack.c.b16 %v1864, %v1862
        %v1881 = vpack.c.b16 %v1865, %v1863
        %1898 = vmatprep.subr.bf16.mxu0 %v1881
        %1899 = vmatpush1.bf16.msra.mxu0 %v1880
        %1900 = vmatprep.subr.bf16.mxu0 %v1879
        %1901 = vmatpush1.bf16.msra.mxu0 %v1878
        %1902 = vmatprep.subr.bf16.mxu0 %v1877
        %1903 = vmatpush1.bf16.msra.mxu0 %v1876
        %1904 = vmatprep.subr.bf16.mxu0 %v1875
        %1905 = vmatpush1.bf16.msra.mxu0 %v1874
        %1906 = vmatprep.subr.bf16.mxu0 %v1873
        %1907 = vmatpush1.bf16.msra.mxu0 %v1872
        %1908 = vmatprep.subr.bf16.mxu0 %v1871
        %1909 = vmatpush1.bf16.msra.mxu0 %v1870
        %1910 = vmatprep.subr.bf16.mxu0 %v1869
        %1911 = vmatpush1.bf16.msra.mxu0 %v1868
        %1912 = vmatprep.subr.bf16.mxu0 %v1867
        %1913 = vmatpush1.bf16.msra.mxu0 %v1866
        %1914 = vmatprep.subr.bf16.mxu0 0
        %1915 = vmatpush2.bf16.msra.mxu0 0
        %1916 = vmatprep.subr.bf16.mxu0 0
        %1917 = vmatpush2.bf16.msra.mxu0 0
        %1918 = vmatprep.subr.bf16.mxu0 0
        %1919 = vmatpush2.bf16.msra.mxu0 0
        %1920 = vmatprep.subr.bf16.mxu0 0
        %1921 = vmatpush2.bf16.msra.mxu0 0
        %1922 = vmatprep.subr.bf16.mxu0 0
        %1923 = vmatpush2.bf16.msra.mxu0 0
        %1924 = vmatprep.subr.bf16.mxu0 0
        %1925 = vmatpush2.bf16.msra.mxu0 0
        %1926 = vmatprep.subr.bf16.mxu0 0
        %1927 = vmatpush2.bf16.msra.mxu0 0
        %1928 = vmatprep.subr.bf16.mxu0 0
        %1929 = vmatpush2.bf16.msra.mxu0 0
        %1930 = vmatprep.mubr.bf16.mxu0 0
        %1931 = vmatmul.mubr.bf16.gmra.mxu0 %v1816
        %v1932 = vpop.f32.mrf.mxu0
        %v1933 = vadd.f32 %v1805, %v1932
        %v1934 = vpop.f32.mrf.mxu0
        %v1935 = vadd.f32 %v1809, %v1934
        %v1936 = vpop.f32.mrf.mxu0
        %v1937 = vadd.f32 %v1805, %v1936
        %v1938 = vpop.f32.mrf.mxu0
        %v1939 = vadd.f32 %v1809, %v1938
        %1940 = vdwg.mxu0
        %v1941 = vpack.c.bf16 %v1779, %v1779
        %v1942 = vpack.c.bf16 %v1937, %v1933
        %v1943 = vpack.c.bf16 %v1939, %v1935
        %v1945 = vsel %vm1074, %v1941, 0
        %v1948 = vsel %vm1074, %v1942, 0
        %1950 = vmatprep.subr.bf16.mxu0 0
        %1951 = vmatpush1.bf16.xpose.msra.mxu0 0
        %1952 = vmatprep.subr.bf16.mxu0 0
        %1953 = vmatpush1.bf16.xpose.msra.mxu0 0
        %1954 = vmatprep.subr.bf16.mxu0 0
        %1955 = vmatpush1.bf16.xpose.msra.mxu0 0
        %1956 = vmatprep.subr.bf16.mxu0 0
        %1957 = vmatpush1.bf16.xpose.msra.mxu0 0
        %1958 = vmatprep.subr.bf16.mxu0 0
        %1959 = vmatpush1.bf16.xpose.msra.mxu0 0
        %1960 = vmatprep.subr.bf16.mxu0 0
        %1961 = vmatpush1.bf16.xpose.msra.mxu0 0
        %1962 = vmatprep.subr.bf16.mxu0 0
        %1963 = vmatpush1.bf16.xpose.msra.mxu0 0
        %1964 = vmatprep.subr.bf16.mxu0 0
        %1965 = vmatpush1.bf16.xpose.msra.mxu0 %v1948
        %1966 = vmatprep.subr.bf16.mxu0 0
        %1967 = vmatpush2.bf16.xpose.msra.mxu0 0
        %1968 = vmatprep.subr.bf16.mxu0 0
        %1969 = vmatpush2.bf16.xpose.msra.mxu0 0
        %1970 = vmatprep.subr.bf16.mxu0 0
        %1971 = vmatpush2.bf16.xpose.msra.mxu0 0
        %1972 = vmatprep.subr.bf16.mxu0 0
        %1973 = vmatpush2.bf16.xpose.msra.mxu0 0
        %1974 = vmatprep.subr.bf16.mxu0 0
        %1975 = vmatpush2.bf16.xpose.msra.mxu0 0
        %1976 = vmatprep.subr.bf16.mxu0 0
        %1977 = vmatpush2.bf16.xpose.msra.mxu0 0
        %1978 = vmatprep.subr.bf16.mxu0 0
        %1979 = vmatpush2.bf16.xpose.msra.mxu0 0
        %1980 = vmatprep.subr.bf16.mxu0 0
        %1981 = vmatpush2.bf16.xpose.msra.mxu0 0
        %1982 = vmatprep.mubr.bf16.mxu0 0
        %1983 = vmatmul.mubr.bf16.gmra.mxu0 %v1945
        %v1984 = vpop.f32.mrf.mxu0
        %v1985 = vadd.f32 0.0, %v1984
        %v1986 = vpop.f32.mrf.mxu0
        %v1987 = vpop.f32.mrf.mxu0
        %v1988 = vpop.f32.mrf.mxu0
        %1989 = vdwg.mxu0
        %vm1990 = vcmask 130048
        %v1991 = vsel %vm1990, %v1985, -inf
        %1992 = vmax.xlane.f32.xlu0 %v1991
        %v1993 = vpop.xlane.xlu0 %1992
        %v1994 = vsub.f32 %v1985, %v1993
        %v1995 = vmul.f32 %v1994, 1.442695
        %v1996 = vpow.pop %v1995
        %v1997 = vsel %vm1990, %v1996, 0.0
        %1998 = vadd.xlane.f32.xlu0 %v1997
        %v1999 = vpop.xlane.xlu0 %1998
        %v2000 = vrcp.pop %v1999
        %v2001 = vmul.f32 %v1996, %v2000
        %v2002 = vpack.c.bf16 %v2001, %v2001
        %v2004 = vsel %vm1990, %v2002, 0
        %2006 = vmatprep.subr.bf16.mxu0 0
        %2007 = vmatpush1.bf16.msra.mxu0 0
        %2008 = vmatprep.subr.bf16.mxu0 0
        %2009 = vmatpush1.bf16.msra.mxu0 0
        %2010 = vmatprep.subr.bf16.mxu0 0
        %2011 = vmatpush1.bf16.msra.mxu0 0
        %2012 = vmatprep.subr.bf16.mxu0 0
        %2013 = vmatpush1.bf16.msra.mxu0 0
        %2014 = vmatprep.subr.bf16.mxu0 0
        %2015 = vmatpush1.bf16.msra.mxu0 0
        %2016 = vmatprep.subr.bf16.mxu0 0
        %2017 = vmatpush1.bf16.msra.mxu0 0
        %2018 = vmatprep.subr.bf16.mxu0 0
        %2019 = vmatpush1.bf16.msra.mxu0 0
        %2020 = vmatprep.subr.bf16.mxu0 0
        %2021 = vmatpush1.bf16.msra.mxu0 %v1943
        %2022 = vmatprep.subr.bf16.mxu0 0
        %2023 = vmatpush2.bf16.msra.mxu0 0
        %2024 = vmatprep.subr.bf16.mxu0 0
        %2025 = vmatpush2.bf16.msra.mxu0 0
        %2026 = vmatprep.subr.bf16.mxu0 0
        %2027 = vmatpush2.bf16.msra.mxu0 0
        %2028 = vmatprep.subr.bf16.mxu0 0
        %2029 = vmatpush2.bf16.msra.mxu0 0
        %2030 = vmatprep.subr.bf16.mxu0 0
        %2031 = vmatpush2.bf16.msra.mxu0 0
        %2032 = vmatprep.subr.bf16.mxu0 0
        %2033 = vmatpush2.bf16.msra.mxu0 0
        %2034 = vmatprep.subr.bf16.mxu0 0
        %2035 = vmatpush2.bf16.msra.mxu0 0
        %2036 = vmatprep.subr.bf16.mxu0 0
        %2037 = vmatpush2.bf16.msra.mxu0 0
        %2038 = vmatprep.mubr.bf16.mxu0 0
        %2039 = vmatmul.mubr.bf16.gmra.mxu0 %v2004
        %v2040 = vpop.f32.mrf.mxu0
        %v2041 = vadd.f32 0.0, %v2040
        %v2042 = vpop.f32.mrf.mxu0
        %v2043 = vpop.f32.mrf.mxu0
        %v2044 = vpop.f32.mrf.mxu0
        %2045 = vdwg.mxu0
        %2047 = vrot.lane.b32.xlu0 %v1941, 96
        %v2048 = vpop.permute.xlu0 %2047
        %2050 = vrot.lane.b32.xlu0 %v1942, 96
        %v2051 = vpop.permute.xlu0 %2050
        %v2053 = vsel %vm1074, %v2048, 0
        %v2056 = vsel %vm1074, %v2051, 0
        %2058 = vmatprep.subr.bf16.mxu0 0
        %2059 = vmatpush1.bf16.xpose.msra.mxu0 0
        %2060 = vmatprep.subr.bf16.mxu0 0
        %2061 = vmatpush1.bf16.xpose.msra.mxu0 0
        %2062 = vmatprep.subr.bf16.mxu0 0
        %2063 = vmatpush1.bf16.xpose.msra.mxu0 0
        %2064 = vmatprep.subr.bf16.mxu0 0
        %2065 = vmatpush1.bf16.xpose.msra.mxu0 0
        %2066 = vmatprep.subr.bf16.mxu0 0
        %2067 = vmatpush1.bf16.xpose.msra.mxu0 0
        %2068 = vmatprep.subr.bf16.mxu0 0
        %2069 = vmatpush1.bf16.xpose.msra.mxu0 0
        %2070 = vmatprep.subr.bf16.mxu0 0
        %2071 = vmatpush1.bf16.xpose.msra.mxu0 0
        %2072 = vmatprep.subr.bf16.mxu0 0
        %2073 = vmatpush1.bf16.xpose.msra.mxu0 %v2056
        %2074 = vmatprep.subr.bf16.mxu0 0
        %2075 = vmatpush2.bf16.xpose.msra.mxu0 0
        %2076 = vmatprep.subr.bf16.mxu0 0
        %2077 = vmatpush2.bf16.xpose.msra.mxu0 0
        %2078 = vmatprep.subr.bf16.mxu0 0
        %2079 = vmatpush2.bf16.xpose.msra.mxu0 0
        %2080 = vmatprep.subr.bf16.mxu0 0
        %2081 = vmatpush2.bf16.xpose.msra.mxu0 0
        %2082 = vmatprep.subr.bf16.mxu0 0
        %2083 = vmatpush2.bf16.xpose.msra.mxu0 0
        %2084 = vmatprep.subr.bf16.mxu0 0
        %2085 = vmatpush2.bf16.xpose.msra.mxu0 0
        %2086 = vmatprep.subr.bf16.mxu0 0
        %2087 = vmatpush2.bf16.xpose.msra.mxu0 0
        %2088 = vmatprep.subr.bf16.mxu0 0
        %2089 = vmatpush2.bf16.xpose.msra.mxu0 0
        %2090 = vmatprep.mubr.bf16.mxu0 0
        %2091 = vmatmul.mubr.bf16.gmra.mxu0 %v2053
        %v2092 = vpop.f32.mrf.mxu0
        %v2093 = vadd.f32 0.0, %v2092
        %v2094 = vpop.f32.mrf.mxu0
        %v2095 = vpop.f32.mrf.mxu0
        %v2096 = vpop.f32.mrf.mxu0
        %2097 = vdwg.mxu0
        %v2098 = vsel %vm1990, %v2093, -inf
        %2099 = vmax.xlane.f32.xlu0 %v2098
        %v2100 = vpop.xlane.xlu0 %2099
        %v2101 = vsub.f32 %v2093, %v2100
        %v2102 = vmul.f32 %v2101, 1.442695
        %v2103 = vpow.pop %v2102
        %v2104 = vsel %vm1990, %v2103, 0.0
        %2105 = vadd.xlane.f32.xlu0 %v2104
        %v2106 = vpop.xlane.xlu0 %2105
        %v2107 = vrcp.pop %v2106
        %v2108 = vmul.f32 %v2103, %v2107
        %v2109 = vpack.c.bf16 %v2108, %v2108
        %2111 = vrot.lane.b32.xlu0 %v1943, 96
        %v2112 = vpop.permute.xlu0 %2111
        %v2115 = vsel %vm1990, %v2109, 0
        %2117 = vmatprep.subr.bf16.mxu0 0
        %2118 = vmatpush1.bf16.msra.mxu0 0
        %2119 = vmatprep.subr.bf16.mxu0 0
        %2120 = vmatpush1.bf16.msra.mxu0 0
        %2121 = vmatprep.subr.bf16.mxu0 0
        %2122 = vmatpush1.bf16.msra.mxu0 0
        %2123 = vmatprep.subr.bf16.mxu0 0
        %2124 = vmatpush1.bf16.msra.mxu0 0
        %2125 = vmatprep.subr.bf16.mxu0 0
        %2126 = vmatpush1.bf16.msra.mxu0 0
        %2127 = vmatprep.subr.bf16.mxu0 0
        %2128 = vmatpush1.bf16.msra.mxu0 0
        %2129 = vmatprep.subr.bf16.mxu0 0
        %2130 = vmatpush1.bf16.msra.mxu0 0
        %2131 = vmatprep.subr.bf16.mxu0 0
        %2132 = vmatpush1.bf16.msra.mxu0 %v2112
        %2133 = vmatprep.subr.bf16.mxu0 0
        %2134 = vmatpush2.bf16.msra.mxu0 0
        %2135 = vmatprep.subr.bf16.mxu0 0
        %2136 = vmatpush2.bf16.msra.mxu0 0
        %2137 = vmatprep.subr.bf16.mxu0 0
        %2138 = vmatpush2.bf16.msra.mxu0 0
        %2139 = vmatprep.subr.bf16.mxu0 0
        %2140 = vmatpush2.bf16.msra.mxu0 0
        %2141 = vmatprep.subr.bf16.mxu0 0
        %2142 = vmatpush2.bf16.msra.mxu0 0
        %2143 = vmatprep.subr.bf16.mxu0 0
        %2144 = vmatpush2.bf16.msra.mxu0 0
        %2145 = vmatprep.subr.bf16.mxu0 0
        %2146 = vmatpush2.bf16.msra.mxu0 0
        %2147 = vmatprep.subr.bf16.mxu0 0
        %2148 = vmatpush2.bf16.msra.mxu0 0
        %2149 = vmatprep.mubr.bf16.mxu0 0
        %2150 = vmatmul.mubr.bf16.gmra.mxu0 %v2115
        %v2151 = vpop.f32.mrf.mxu0
        %v2152 = vadd.f32 0.0, %v2151
        %v2153 = vpop.f32.mrf.mxu0
        %v2154 = vpop.f32.mrf.mxu0
        %v2155 = vpop.f32.mrf.mxu0
        %2156 = vdwg.mxu0
        %2157 = vrot.lane.b32.xlu0 %v1941, 64
        %v2158 = vpop.permute.xlu0 %2157
        %2159 = vrot.lane.b32.xlu0 %v1942, 64
        %v2160 = vpop.permute.xlu0 %2159
        %v2162 = vsel %vm1074, %v2158, 0
        %v2165 = vsel %vm1074, %v2160, 0
        %2167 = vmatprep.subr.bf16.mxu0 0
        %2168 = vmatpush1.bf16.xpose.msra.mxu0 0
        %2169 = vmatprep.subr.bf16.mxu0 0
        %2170 = vmatpush1.bf16.xpose.msra.mxu0 0
        %2171 = vmatprep.subr.bf16.mxu0 0
        %2172 = vmatpush1.bf16.xpose.msra.mxu0 0
        %2173 = vmatprep.subr.bf16.mxu0 0
        %2174 = vmatpush1.bf16.xpose.msra.mxu0 0
        %2175 = vmatprep.subr.bf16.mxu0 0
        %2176 = vmatpush1.bf16.xpose.msra.mxu0 0
        %2177 = vmatprep.subr.bf16.mxu0 0
        %2178 = vmatpush1.bf16.xpose.msra.mxu0 0
        %2179 = vmatprep.subr.bf16.mxu0 0
        %2180 = vmatpush1.bf16.xpose.msra.mxu0 0
        %2181 = vmatprep.subr.bf16.mxu0 0
        %2182 = vmatpush1.bf16.xpose.msra.mxu0 %v2165
        %2183 = vmatprep.subr.bf16.mxu0 0
        %2184 = vmatpush2.bf16.xpose.msra.mxu0 0
        %2185 = vmatprep.subr.bf16.mxu0 0
        %2186 = vmatpush2.bf16.xpose.msra.mxu0 0
        %2187 = vmatprep.subr.bf16.mxu0 0
        %2188 = vmatpush2.bf16.xpose.msra.mxu0 0
        %2189 = vmatprep.subr.bf16.mxu0 0
        %2190 = vmatpush2.bf16.xpose.msra.mxu0 0
        %2191 = vmatprep.subr.bf16.mxu0 0
        %2192 = vmatpush2.bf16.xpose.msra.mxu0 0
        %2193 = vmatprep.subr.bf16.mxu0 0
        %2194 = vmatpush2.bf16.xpose.msra.mxu0 0
        %2195 = vmatprep.subr.bf16.mxu0 0
        %2196 = vmatpush2.bf16.xpose.msra.mxu0 0
        %2197 = vmatprep.subr.bf16.mxu0 0
        %2198 = vmatpush2.bf16.xpose.msra.mxu0 0
        %2199 = vmatprep.mubr.bf16.mxu0 0
        %2200 = vmatmul.mubr.bf16.gmra.mxu0 %v2162
        %v2201 = vpop.f32.mrf.mxu0
        %v2202 = vadd.f32 0.0, %v2201
        %v2203 = vpop.f32.mrf.mxu0
        %v2204 = vpop.f32.mrf.mxu0
        %v2205 = vpop.f32.mrf.mxu0
        %2206 = vdwg.mxu0
        %v2207 = vsel %vm1990, %v2202, -inf
        %2208 = vmax.xlane.f32.xlu0 %v2207
        %v2209 = vpop.xlane.xlu0 %2208
        %v2210 = vsub.f32 %v2202, %v2209
        %v2211 = vmul.f32 %v2210, 1.442695
        %v2212 = vpow.pop %v2211
        %v2213 = vsel %vm1990, %v2212, 0.0
        %2214 = vadd.xlane.f32.xlu0 %v2213
        %v2215 = vpop.xlane.xlu0 %2214
        %v2216 = vrcp.pop %v2215
        %v2217 = vmul.f32 %v2212, %v2216
        %v2218 = vpack.c.bf16 %v2217, %v2217
        %2219 = vrot.lane.b32.xlu0 %v1943, 64
        %v2220 = vpop.permute.xlu0 %2219
        %v2223 = vsel %vm1990, %v2218, 0
        %2225 = vmatprep.subr.bf16.mxu0 0
        %2226 = vmatpush1.bf16.msra.mxu0 0
        %2227 = vmatprep.subr.bf16.mxu0 0
        %2228 = vmatpush1.bf16.msra.mxu0 0
        %2229 = vmatprep.subr.bf16.mxu0 0
        %2230 = vmatpush1.bf16.msra.mxu0 0
        %2231 = vmatprep.subr.bf16.mxu0 0
        %2232 = vmatpush1.bf16.msra.mxu0 0
        %2233 = vmatprep.subr.bf16.mxu0 0
        %2234 = vmatpush1.bf16.msra.mxu0 0
        %2235 = vmatprep.subr.bf16.mxu0 0
        %2236 = vmatpush1.bf16.msra.mxu0 0
        %2237 = vmatprep.subr.bf16.mxu0 0
        %2238 = vmatpush1.bf16.msra.mxu0 0
        %2239 = vmatprep.subr.bf16.mxu0 0
        %2240 = vmatpush1.bf16.msra.mxu0 %v2220
        %2241 = vmatprep.subr.bf16.mxu0 0
        %2242 = vmatpush2.bf16.msra.mxu0 0
        %2243 = vmatprep.subr.bf16.mxu0 0
        %2244 = vmatpush2.bf16.msra.mxu0 0
        %2245 = vmatprep.subr.bf16.mxu0 0
        %2246 = vmatpush2.bf16.msra.mxu0 0
        %2247 = vmatprep.subr.bf16.mxu0 0
        %2248 = vmatpush2.bf16.msra.mxu0 0
        %2249 = vmatprep.subr.bf16.mxu0 0
        %2250 = vmatpush2.bf16.msra.mxu0 0
        %2251 = vmatprep.subr.bf16.mxu0 0
        %2252 = vmatpush2.bf16.msra.mxu0 0
        %2253 = vmatprep.subr.bf16.mxu0 0
        %2254 = vmatpush2.bf16.msra.mxu0 0
        %2255 = vmatprep.subr.bf16.mxu0 0
        %2256 = vmatpush2.bf16.msra.mxu0 0
        %2257 = vmatprep.mubr.bf16.mxu0 0
        %2258 = vmatmul.mubr.bf16.gmra.mxu0 %v2223
        %v2259 = vpop.f32.mrf.mxu0
        %v2260 = vadd.f32 0.0, %v2259
        %v2261 = vpop.f32.mrf.mxu0
        %v2262 = vpop.f32.mrf.mxu0
        %v2263 = vpop.f32.mrf.mxu0
        %2264 = vdwg.mxu0
        %2265 = vrot.lane.b32.xlu0 %v1941, 32
        %v2266 = vpop.permute.xlu0 %2265
        %2267 = vrot.lane.b32.xlu0 %v1942, 32
        %v2268 = vpop.permute.xlu0 %2267
        %v2270 = vsel %vm1074, %v2266, 0
        %v2273 = vsel %vm1074, %v2268, 0
        %2275 = vmatprep.subr.bf16.mxu0 0
        %2276 = vmatpush1.bf16.xpose.msra.mxu0 0
        %2277 = vmatprep.subr.bf16.mxu0 0
        %2278 = vmatpush1.bf16.xpose.msra.mxu0 0
        %2279 = vmatprep.subr.bf16.mxu0 0
        %2280 = vmatpush1.bf16.xpose.msra.mxu0 0
        %2281 = vmatprep.subr.bf16.mxu0 0
        %2282 = vmatpush1.bf16.xpose.msra.mxu0 0
        %2283 = vmatprep.subr.bf16.mxu0 0
        %2284 = vmatpush1.bf16.xpose.msra.mxu0 0
        %2285 = vmatprep.subr.bf16.mxu0 0
        %2286 = vmatpush1.bf16.xpose.msra.mxu0 0
        %2287 = vmatprep.subr.bf16.mxu0 0
        %2288 = vmatpush1.bf16.xpose.msra.mxu0 0
        %2289 = vmatprep.subr.bf16.mxu0 0
        %2290 = vmatpush1.bf16.xpose.msra.mxu0 %v2273
        %2291 = vmatprep.subr.bf16.mxu0 0
        %2292 = vmatpush2.bf16.xpose.msra.mxu0 0
        %2293 = vmatprep.subr.bf16.mxu0 0
        %2294 = vmatpush2.bf16.xpose.msra.mxu0 0
        %2295 = vmatprep.subr.bf16.mxu0 0
        %2296 = vmatpush2.bf16.xpose.msra.mxu0 0
        %2297 = vmatprep.subr.bf16.mxu0 0
        %2298 = vmatpush2.bf16.xpose.msra.mxu0 0
        %2299 = vmatprep.subr.bf16.mxu0 0
        %2300 = vmatpush2.bf16.xpose.msra.mxu0 0
        %2301 = vmatprep.subr.bf16.mxu0 0
        %2302 = vmatpush2.bf16.xpose.msra.mxu0 0
        %2303 = vmatprep.subr.bf16.mxu0 0
        %2304 = vmatpush2.bf16.xpose.msra.mxu0 0
        %2305 = vmatprep.subr.bf16.mxu0 0
        %2306 = vmatpush2.bf16.xpose.msra.mxu0 0
        %2307 = vmatprep.mubr.bf16.mxu0 0
        %2308 = vmatmul.mubr.bf16.gmra.mxu0 %v2270
        %v2309 = vpop.f32.mrf.mxu0
        %v2310 = vadd.f32 0.0, %v2309
        %v2311 = vpop.f32.mrf.mxu0
        %v2312 = vpop.f32.mrf.mxu0
        %v2313 = vpop.f32.mrf.mxu0
        %2314 = vdwg.mxu0
        %v2315 = vsel %vm1990, %v2310, -inf
        %2316 = vmax.xlane.f32.xlu0 %v2315
        %v2317 = vpop.xlane.xlu0 %2316
        %v2318 = vsub.f32 %v2310, %v2317
        %v2319 = vmul.f32 %v2318, 1.442695
        %v2320 = vpow.pop %v2319
        %v2321 = vsel %vm1990, %v2320, 0.0
        %2322 = vadd.xlane.f32.xlu0 %v2321
        %v2323 = vpop.xlane.xlu0 %2322
        %v2324 = vrcp.pop %v2323
        %v2325 = vmul.f32 %v2320, %v2324
        %v2326 = vpack.c.bf16 %v2325, %v2325
        %2327 = vrot.lane.b32.xlu0 %v1943, 32
        %v2328 = vpop.permute.xlu0 %2327
        %v2331 = vsel %vm1990, %v2326, 0
        %2333 = vmatprep.subr.bf16.mxu0 0
        %2334 = vmatpush1.bf16.msra.mxu0 0
        %2335 = vmatprep.subr.bf16.mxu0 0
        %2336 = vmatpush1.bf16.msra.mxu0 0
        %2337 = vmatprep.subr.bf16.mxu0 0
        %2338 = vmatpush1.bf16.msra.mxu0 0
        %2339 = vmatprep.subr.bf16.mxu0 0
        %2340 = vmatpush1.bf16.msra.mxu0 0
        %2341 = vmatprep.subr.bf16.mxu0 0
        %2342 = vmatpush1.bf16.msra.mxu0 0
        %2343 = vmatprep.subr.bf16.mxu0 0
        %2344 = vmatpush1.bf16.msra.mxu0 0
        %2345 = vmatprep.subr.bf16.mxu0 0
        %2346 = vmatpush1.bf16.msra.mxu0 0
        %2347 = vmatprep.subr.bf16.mxu0 0
        %2348 = vmatpush1.bf16.msra.mxu0 %v2328
        %2349 = vmatprep.subr.bf16.mxu0 0
        %2350 = vmatpush2.bf16.msra.mxu0 0
        %2351 = vmatprep.subr.bf16.mxu0 0
        %2352 = vmatpush2.bf16.msra.mxu0 0
        %2353 = vmatprep.subr.bf16.mxu0 0
        %2354 = vmatpush2.bf16.msra.mxu0 0
        %2355 = vmatprep.subr.bf16.mxu0 0
        %2356 = vmatpush2.bf16.msra.mxu0 0
        %2357 = vmatprep.subr.bf16.mxu0 0
        %2358 = vmatpush2.bf16.msra.mxu0 0
        %2359 = vmatprep.subr.bf16.mxu0 0
        %2360 = vmatpush2.bf16.msra.mxu0 0
        %2361 = vmatprep.subr.bf16.mxu0 0
        %2362 = vmatpush2.bf16.msra.mxu0 0
        %2363 = vmatprep.subr.bf16.mxu0 0
        %2364 = vmatpush2.bf16.msra.mxu0 0
        %2365 = vmatprep.mubr.bf16.mxu0 0
        %2366 = vmatmul.mubr.bf16.gmra.mxu0 %v2331
        %v2367 = vpop.f32.mrf.mxu0
        %v2368 = vadd.f32 0.0, %v2367
        %v2369 = vpop.f32.mrf.mxu0
        %v2370 = vpop.f32.mrf.mxu0
        %v2371 = vpop.f32.mrf.mxu0
        %2372 = vdwg.mxu0
        %2374 = vrot.lane.b32.xlu0 %v2152, 32
        %v2375 = vpop.permute.xlu0 %2374
        %2378 = vrot.lane.b32.xlu0 %v2260, 64
        %v2379 = vpop.permute.xlu0 %2378
        %2382 = vrot.lane.b32.xlu0 %v2368, 96
        %v2383 = vpop.permute.xlu0 %2382
        %v2385 = vsel %vm1074, %v2041, %v2375
        %v2386 = vsel %vm1527, %v2385, %v2379
        %v2387 = vsel %vm1529, %v2386, %v2383
        %v2388 = vpack.c.bf16 %v2387, %v2387
        %v2389 = vld [vmem:[%s13] sm:$0xf]
        %v2390 = vld [vmem:[%s13 + $0x4] sm:$0xf]
        %v2391 = vld [vmem:[%s13 + $0x8] sm:$0xf]
        %v2392 = vld [vmem:[%s13 + $0xc] sm:$0xf]
        %v2393 = vld [vmem:[%s13 + $0x10] sm:$0xf]
        %v2394 = vld [vmem:[%s13 + $0x14] sm:$0xf]
        %v2395 = vld [vmem:[%s13 + $0x18] sm:$0xf]
        %v2396 = vld [vmem:[%s13 + $0x1c] sm:$0xf]
        %v2397 = vld [vmem:[%s13 + $0x20] sm:$0xf]
        %v2398 = vld [vmem:[%s13 + $0x24] sm:$0xf]
        %v2399 = vld [vmem:[%s13 + $0x28] sm:$0xf]
        %v2400 = vld [vmem:[%s13 + $0x2c] sm:$0xf]
        %v2401 = vld [vmem:[%s13 + $0x30] sm:$0xf]
        %v2402 = vld [vmem:[%s13 + $0x34] sm:$0xf]
        %v2403 = vld [vmem:[%s13 + $0x38] sm:$0xf]
        %v2404 = vld [vmem:[%s13 + $0x3c] sm:$0xf]
        %v2405 = vld [vmem:[%s14] sm:$0x1]
        %v2407 = vlaneseq
        %v2408 = vshrl.u32 %v2407, 7
        %v2409 = vsub.s32 0, %v2408
        %v2410 = vrot.slane %v2405, %v2409
        %v2428 = vunpack.c.l.b16 %v2389
        %v2429 = vunpack.c.l.b16 %v2390
        %v2430 = vunpack.c.l.b16 %v2391
        %v2431 = vunpack.c.l.b16 %v2392
        %v2432 = vunpack.c.l.b16 %v2393
        %v2433 = vunpack.c.l.b16 %v2394
        %v2434 = vunpack.c.l.b16 %v2395
        %v2435 = vunpack.c.l.b16 %v2396
        %v2436 = vunpack.c.l.b16 %v2397
        %v2437 = vunpack.c.l.b16 %v2398
        %v2438 = vunpack.c.l.b16 %v2399
        %v2439 = vunpack.c.l.b16 %v2400
        %v2440 = vunpack.c.l.b16 %v2401
        %v2441 = vunpack.c.l.b16 %v2402
        %v2442 = vunpack.c.l.b16 %v2403
        %v2443 = vunpack.c.l.b16 %v2404
        %v2444 = vpack.c.b16 %v2429, %v2428
        %v2445 = vpack.c.b16 %v2431, %v2430
        %v2446 = vpack.c.b16 %v2433, %v2432
        %v2447 = vpack.c.b16 %v2435, %v2434
        %v2448 = vpack.c.b16 %v2437, %v2436
        %v2449 = vpack.c.b16 %v2439, %v2438
        %v2450 = vpack.c.b16 %v2441, %v2440
        %v2451 = vpack.c.b16 %v2443, %v2442
        %2460 = vmatprep.subr.bf16.mxu0 0
        %2461 = vmatpush1.bf16.msra.mxu0 %v2451
        %2462 = vmatprep.subr.bf16.mxu0 0
        %2463 = vmatpush1.bf16.msra.mxu0 %v2450
        %2464 = vmatprep.subr.bf16.mxu0 0
        %2465 = vmatpush1.bf16.msra.mxu0 %v2449
        %2466 = vmatprep.subr.bf16.mxu0 0
        %2467 = vmatpush1.bf16.msra.mxu0 %v2448
        %2468 = vmatprep.subr.bf16.mxu0 0
        %2469 = vmatpush1.bf16.msra.mxu0 %v2447
        %2470 = vmatprep.subr.bf16.mxu0 0
        %2471 = vmatpush1.bf16.msra.mxu0 %v2446
        %2472 = vmatprep.subr.bf16.mxu0 0
        %2473 = vmatpush1.bf16.msra.mxu0 %v2445
        %2474 = vmatprep.subr.bf16.mxu0 0
        %2475 = vmatpush1.bf16.msra.mxu0 %v2444
        %2476 = vmatprep.subr.bf16.mxu0 0
        %2477 = vmatpush2.bf16.msra.mxu0 0
        %2478 = vmatprep.subr.bf16.mxu0 0
        %2479 = vmatpush2.bf16.msra.mxu0 0
        %2480 = vmatprep.subr.bf16.mxu0 0
        %2481 = vmatpush2.bf16.msra.mxu0 0
        %2482 = vmatprep.subr.bf16.mxu0 0
        %2483 = vmatpush2.bf16.msra.mxu0 0
        %2484 = vmatprep.subr.bf16.mxu0 0
        %2485 = vmatpush2.bf16.msra.mxu0 0
        %2486 = vmatprep.subr.bf16.mxu0 0
        %2487 = vmatpush2.bf16.msra.mxu0 0
        %2488 = vmatprep.subr.bf16.mxu0 0
        %2489 = vmatpush2.bf16.msra.mxu0 0
        %2490 = vmatprep.subr.bf16.mxu0 0
        %2491 = vmatpush2.bf16.msra.mxu0 0
        %2492 = vmatprep.mubr.bf16.mxu0 0
        %2493 = vmatmul.mubr.bf16.gmra.mxu0 %v2388
        %v2494 = vpop.f32.mrf.mxu0
        %v2495 = vadd.f32 %v2410, %v2494
        %v2496 = vpop.f32.mrf.mxu0
        %v2497 = vpop.f32.mrf.mxu0
        %v2498 = vpop.f32.mrf.mxu0
        %2499 = vdwg.mxu0
        %v2500 = vadd.f32 %v1671, %v2495
        %v2501 = vld [vmem:[%s15] sm:$0x1]
        %v2502 = vld [vmem:[%s16] sm:$0x1]
        %2503 = vadd.xlane.f32.xlu0 %v2500
        %v2504 = vpop.xlane.xlu0 %2503
        %v2505 = vmul.f32 %v2504, %v1648
        %v2506 = vsub.f32 %v2500, %v2505
        %v2507 = vmul.f32 %v2506, %v2506
        %2508 = vadd.xlane.f32.xlu0 %v2507
        %v2509 = vpop.xlane.xlu0 %2508
        %v2510 = vmul.f32 %v2509, %v1648
        %v2511 = vadd.f32 %v2510, 1e-05
        %v2512 = vrsqrt.pop %v2511
        %v2513 = vmul.f32 %v2506, %v2512
        %v2515 = vlaneseq
        %v2516 = vshrl.u32 %v2515, 7
        %v2517 = vsub.s32 0, %v2516
        %v2518 = vrot.slane %v2501, %v2517
        %v2520 = vmul.f32 %v2513, %v2518
        %v2522 = vlaneseq
        %v2523 = vshrl.u32 %v2522, 7
        %v2524 = vsub.s32 0, %v2523
        %v2525 = vrot.slane %v2502, %v2524
        %v2527 = vadd.f32 %v2520, %v2525
        %v2528 = vpack.c.bf16 %v2527, %v2527
        %v2529 = vld [vmem:[%s17] sm:$0xff]
        %v2530 = vld [vmem:[%s17 + $0x8] sm:$0xff]
        %v2531 = vld [vmem:[%s17 + $0x10] sm:$0xff]
        %v2532 = vld [vmem:[%s17 + $0x18] sm:$0xff]
        %v2533 = vld [vmem:[%s17 + $0x20] sm:$0xff]
        %v2534 = vld [vmem:[%s17 + $0x28] sm:$0xff]
        %v2535 = vld [vmem:[%s17 + $0x30] sm:$0xff]
        %v2536 = vld [vmem:[%s17 + $0x38] sm:$0xff]
        %v2537 = vld [vmem:[%s17 + $0x40] sm:$0xff]
        %v2538 = vld [vmem:[%s17 + $0x48] sm:$0xff]
        %v2539 = vld [vmem:[%s17 + $0x50] sm:$0xff]
        %v2540 = vld [vmem:[%s17 + $0x58] sm:$0xff]
        %v2541 = vld [vmem:[%s17 + $0x60] sm:$0xff]
        %v2542 = vld [vmem:[%s17 + $0x68] sm:$0xff]
        %v2543 = vld [vmem:[%s17 + $0x70] sm:$0xff]
        %v2544 = vld [vmem:[%s17 + $0x78] sm:$0xff]
        %v2545 = vld [vmem:[%s18] sm:$0x3]
        %v2547 = vlaneseq
        %v2548 = vshrl.u32 %v2547, 7
        %v2549 = vsub.s32 0, %v2548
        %v2550 = vrot.slane %v2545, %v2549
        %v2551 = vlaneseq
        %v2552 = vshrl.u32 %v2551, 7
        %v2553 = vsub.s32 1, %v2552
        %v2554 = vrot.slane %v2545, %v2553
        %v2573 = vunpack.c.l.b16 %v2529
        %v2574 = vunpack.c.h.b16 %v2529
        %v2575 = vunpack.c.l.b16 %v2530
        %v2576 = vunpack.c.h.b16 %v2530
        %v2577 = vunpack.c.l.b16 %v2531
        %v2578 = vunpack.c.h.b16 %v2531
        %v2579 = vunpack.c.l.b16 %v2532
        %v2580 = vunpack.c.h.b16 %v2532
        %v2581 = vunpack.c.l.b16 %v2533
        %v2582 = vunpack.c.h.b16 %v2533
        %v2583 = vunpack.c.l.b16 %v2534
        %v2584 = vunpack.c.h.b16 %v2534
        %v2585 = vunpack.c.l.b16 %v2535
        %v2586 = vunpack.c.h.b16 %v2535
        %v2587 = vunpack.c.l.b16 %v2536
        %v2588 = vunpack.c.h.b16 %v2536
        %v2589 = vunpack.c.l.b16 %v2537
        %v2590 = vunpack.c.h.b16 %v2537
        %v2591 = vunpack.c.l.b16 %v2538
        %v2592 = vunpack.c.h.b16 %v2538
        %v2593 = vunpack.c.l.b16 %v2539
        %v2594 = vunpack.c.h.b16 %v2539
        %v2595 = vunpack.c.l.b16 %v2540
        %v2596 = vunpack.c.h.b16 %v2540
        %v2597 = vunpack.c.l.b16 %v2541
        %v2598 = vunpack.c.h.b16 %v2541
        %v2599 = vunpack.c.l.b16 %v2542
        %v2600 = vunpack.c.h.b16 %v2542
        %v2601 = vunpack.c.l.b16 %v2543
        %v2602 = vunpack.c.h.b16 %v2543
        %v2603 = vunpack.c.l.b16 %v2544
        %v2604 = vunpack.c.h.b16 %v2544
        %v2605 = vpack.c.b16 %v2575, %v2573
        %v2606 = vpack.c.b16 %v2576, %v2574
        %v2607 = vpack.c.b16 %v2579, %v2577
        %v2608 = vpack.c.b16 %v2580, %v2578
        %v2609 = vpack.c.b16 %v2583, %v2581
        %v2610 = vpack.c.b16 %v2584, %v2582
        %v2611 = vpack.c.b16 %v2587, %v2585
        %v2612 = vpack.c.b16 %v2588, %v2586
        %v2613 = vpack.c.b16 %v2591, %v2589
        %v2614 = vpack.c.b16 %v2592, %v2590
        %v2615 = vpack.c.b16 %v2595, %v2593
        %v2616 = vpack.c.b16 %v2596, %v2594
        %v2617 = vpack.c.b16 %v2599, %v2597
        %v2618 = vpack.c.b16 %v2600, %v2598
        %v2619 = vpack.c.b16 %v2603, %v2601
        %v2620 = vpack.c.b16 %v2604, %v2602
        %2637 = vmatprep.subr.bf16.mxu0 %v2620
        %2638 = vmatpush1.bf16.msra.mxu0 %v2619
        %2639 = vmatprep.subr.bf16.mxu0 %v2618
        %2640 = vmatpush1.bf16.msra.mxu0 %v2617
        %2641 = vmatprep.subr.bf16.mxu0 %v2616
        %2642 = vmatpush1.bf16.msra.mxu0 %v2615
        %2643 = vmatprep.subr.bf16.mxu0 %v2614
        %2644 = vmatpush1.bf16.msra.mxu0 %v2613
        %2645 = vmatprep.subr.bf16.mxu0 %v2612
        %2646 = vmatpush1.bf16.msra.mxu0 %v2611
        %2647 = vmatprep.subr.bf16.mxu0 %v2610
        %2648 = vmatpush1.bf16.msra.mxu0 %v2609
        %2649 = vmatprep.subr.bf16.mxu0 %v2608
        %2650 = vmatpush1.bf16.msra.mxu0 %v2607
        %2651 = vmatprep.subr.bf16.mxu0 %v2606
        %2652 = vmatpush1.bf16.msra.mxu0 %v2605
        %2653 = vmatprep.subr.bf16.mxu0 0
        %2654 = vmatpush2.bf16.msra.mxu0 0
        %2655 = vmatprep.subr.bf16.mxu0 0
        %2656 = vmatpush2.bf16.msra.mxu0 0
        %2657 = vmatprep.subr.bf16.mxu0 0
        %2658 = vmatpush2.bf16.msra.mxu0 0
        %2659 = vmatprep.subr.bf16.mxu0 0
        %2660 = vmatpush2.bf16.msra.mxu0 0
        %2661 = vmatprep.subr.bf16.mxu0 0
        %2662 = vmatpush2.bf16.msra.mxu0 0
        %2663 = vmatprep.subr.bf16.mxu0 0
        %2664 = vmatpush2.bf16.msra.mxu0 0
        %2665 = vmatprep.subr.bf16.mxu0 0
        %2666 = vmatpush2.bf16.msra.mxu0 0
        %2667 = vmatprep.subr.bf16.mxu0 0
        %2668 = vmatpush2.bf16.msra.mxu0 0
        %2669 = vmatprep.mubr.bf16.mxu0 0
        %2670 = vmatmul.mubr.bf16.gmra.mxu0 %v2528
        %v2671 = vpop.f32.mrf.mxu0
        %v2672 = vadd.f32 %v2550, %v2671
        %v2673 = vpop.f32.mrf.mxu0
        %v2674 = vadd.f32 %v2554, %v2673
        %v2675 = vpop.f32.mrf.mxu0
        %v2676 = vpop.f32.mrf.mxu0
        %2677 = vdwg.mxu0
        %v2678 = vmax.f32 %v2672, 0.0
        %v2679 = vmax.f32 %v2674, 0.0
        %v2680 = vpack.c.bf16 %v2678, %v2678
        %v2681 = vpack.c.bf16 %v2679, %v2679
        %v2682 = vld [vmem:[%s19] sm:$0xf]
        %v2683 = vld [vmem:[%s19 + $0x4] sm:$0xf]
        %v2684 = vld [vmem:[%s19 + $0x8] sm:$0xf]
        %v2685 = vld [vmem:[%s19 + $0xc] sm:$0xf]
        %v2686 = vld [vmem:[%s19 + $0x10] sm:$0xf]
        %v2687 = vld [vmem:[%s19 + $0x14] sm:$0xf]
        %v2688 = vld [vmem:[%s19 + $0x18] sm:$0xf]
        %v2689 = vld [vmem:[%s19 + $0x1c] sm:$0xf]
        %v2690 = vld [vmem:[%s19 + $0x20] sm:$0xf]
        %v2691 = vld [vmem:[%s19 + $0x24] sm:$0xf]
        %v2692 = vld [vmem:[%s19 + $0x28] sm:$0xf]
        %v2693 = vld [vmem:[%s19 + $0x2c] sm:$0xf]
        %v2694 = vld [vmem:[%s19 + $0x30] sm:$0xf]
        %v2695 = vld [vmem:[%s19 + $0x34] sm:$0xf]
        %v2696 = vld [vmem:[%s19 + $0x38] sm:$0xf]
        %v2697 = vld [vmem:[%s19 + $0x3c] sm:$0xf]
        %v2698 = vld [vmem:[%s19 + $0x40] sm:$0xf]
        %v2699 = vld [vmem:[%s19 + $0x44] sm:$0xf]
        %v2700 = vld [vmem:[%s19 + $0x48] sm:$0xf]
        %v2701 = vld [vmem:[%s19 + $0x4c] sm:$0xf]
        %v2702 = vld [vmem:[%s19 + $0x50] sm:$0xf]
        %v2703 = vld [vmem:[%s19 + $0x54] sm:$0xf]
        %v2704 = vld [vmem:[%s19 + $0x58] sm:$0xf]
        %v2705 = vld [vmem:[%s19 + $0x5c] sm:$0xf]
        %v2706 = vld [vmem:[%s19 + $0x60] sm:$0xf]
        %v2707 = vld [vmem:[%s19 + $0x64] sm:$0xf]
        %v2708 = vld [vmem:[%s19 + $0x68] sm:$0xf]
        %v2709 = vld [vmem:[%s19 + $0x6c] sm:$0xf]
        %v2710 = vld [vmem:[%s19 + $0x70] sm:$0xf]
        %v2711 = vld [vmem:[%s19 + $0x74] sm:$0xf]
        %v2712 = vld [vmem:[%s19 + $0x78] sm:$0xf]
        %v2713 = vld [vmem:[%s19 + $0x7c] sm:$0xf]
        %v2714 = vld [vmem:[%s20] sm:$0x1]
        %v2716 = vlaneseq
        %v2717 = vshrl.u32 %v2716, 7
        %v2718 = vsub.s32 0, %v2717
        %v2719 = vrot.slane %v2714, %v2718
        %v2753 = vunpack.c.l.b16 %v2682
        %v2754 = vunpack.c.l.b16 %v2683
        %v2755 = vunpack.c.l.b16 %v2684
        %v2756 = vunpack.c.l.b16 %v2685
        %v2757 = vunpack.c.l.b16 %v2686
        %v2758 = vunpack.c.l.b16 %v2687
        %v2759 = vunpack.c.l.b16 %v2688
        %v2760 = vunpack.c.l.b16 %v2689
        %v2761 = vunpack.c.l.b16 %v2690
        %v2762 = vunpack.c.l.b16 %v2691
        %v2763 = vunpack.c.l.b16 %v2692
        %v2764 = vunpack.c.l.b16 %v2693
        %v2765 = vunpack.c.l.b16 %v2694
        %v2766 = vunpack.c.l.b16 %v2695
        %v2767 = vunpack.c.l.b16 %v2696
        %v2768 = vunpack.c.l.b16 %v2697
        %v2769 = vunpack.c.l.b16 %v2698
        %v2770 = vunpack.c.l.b16 %v2699
        %v2771 = vunpack.c.l.b16 %v2700
        %v2772 = vunpack.c.l.b16 %v2701
        %v2773 = vunpack.c.l.b16 %v2702
        %v2774 = vunpack.c.l.b16 %v2703
        %v2775 = vunpack.c.l.b16 %v2704
        %v2776 = vunpack.c.l.b16 %v2705
        %v2777 = vunpack.c.l.b16 %v2706
        %v2778 = vunpack.c.l.b16 %v2707
        %v2779 = vunpack.c.l.b16 %v2708
        %v2780 = vunpack.c.l.b16 %v2709
        %v2781 = vunpack.c.l.b16 %v2710
        %v2782 = vunpack.c.l.b16 %v2711
        %v2783 = vunpack.c.l.b16 %v2712
        %v2784 = vunpack.c.l.b16 %v2713
        %v2785 = vpack.c.b16 %v2754, %v2753
        %v2786 = vpack.c.b16 %v2756, %v2755
        %v2787 = vpack.c.b16 %v2758, %v2757
        %v2788 = vpack.c.b16 %v2760, %v2759
        %v2789 = vpack.c.b16 %v2762, %v2761
        %v2790 = vpack.c.b16 %v2764, %v2763
        %v2791 = vpack.c.b16 %v2766, %v2765
        %v2792 = vpack.c.b16 %v2768, %v2767
        %v2793 = vpack.c.b16 %v2770, %v2769
        %v2794 = vpack.c.b16 %v2772, %v2771
        %v2795 = vpack.c.b16 %v2774, %v2773
        %v2796 = vpack.c.b16 %v2776, %v2775
        %v2797 = vpack.c.b16 %v2778, %v2777
        %v2798 = vpack.c.b16 %v2780, %v2779
        %v2799 = vpack.c.b16 %v2782, %v2781
        %v2800 = vpack.c.b16 %v2784, %v2783
        %2817 = vmatprep.subr.bf16.mxu0 0
        %2818 = vmatpush1.bf16.msra.mxu0 %v2792
        %2819 = vmatprep.subr.bf16.mxu0 0
        %2820 = vmatpush1.bf16.msra.mxu0 %v2791
        %2821 = vmatprep.subr.bf16.mxu0 0
        %2822 = vmatpush1.bf16.msra.mxu0 %v2790
        %2823 = vmatprep.subr.bf16.mxu0 0
        %2824 = vmatpush1.bf16.msra.mxu0 %v2789
        %2825 = vmatprep.subr.bf16.mxu0 0
        %2826 = vmatpush1.bf16.msra.mxu0 %v2788
        %2827 = vmatprep.subr.bf16.mxu0 0
        %2828 = vmatpush1.bf16.msra.mxu0 %v2787
        %2829 = vmatprep.subr.bf16.mxu0 0
        %2830 = vmatpush1.bf16.msra.mxu0 %v2786
        %2831 = vmatprep.subr.bf16.mxu0 0
        %2832 = vmatpush1.bf16.msra.mxu0 %v2785
        %2833 = vmatprep.subr.bf16.mxu0 0
        %2834 = vmatpush2.bf16.msra.mxu0 %v2800
        %2835 = vmatprep.subr.bf16.mxu0 0
        %2836 = vmatpush2.bf16.msra.mxu0 %v2799
        %2837 = vmatprep.subr.bf16.mxu0 0
        %2838 = vmatpush2.bf16.msra.mxu0 %v2798
        %2839 = vmatprep.subr.bf16.mxu0 0
        %2840 = vmatpush2.bf16.msra.mxu0 %v2797
        %2841 = vmatprep.subr.bf16.mxu0 0
        %2842 = vmatpush2.bf16.msra.mxu0 %v2796
        %2843 = vmatprep.subr.bf16.mxu0 0
        %2844 = vmatpush2.bf16.msra.mxu0 %v2795
        %2845 = vmatprep.subr.bf16.mxu0 0
        %2846 = vmatpush2.bf16.msra.mxu0 %v2794
        %2847 = vmatprep.subr.bf16.mxu0 0
        %2848 = vmatpush2.bf16.msra.mxu0 %v2793
        %2849 = vmatprep.mubr.bf16.mxu0 %v2681
        %2850 = vmatmul.mubr.bf16.gmra.mxu0 %v2680
        %v2851 = vpop.f32.mrf.mxu0
        %v2852 = vadd.f32 %v2719, %v2851
        %v2853 = vpop.f32.mrf.mxu0
        %v2854 = vpop.f32.mrf.mxu0
        %v2855 = vpop.f32.mrf.mxu0
        %2856 = vdwg.mxu0
        %v2857 = vadd.f32 %v2527, %v2852
        %v2858 = vld [vmem:[%s21] sm:$0x1]
        %v2859 = vld [vmem:[%s22] sm:$0x1]
        %2860 = vadd.xlane.f32.xlu0 %v2857
        %v2861 = vpop.xlane.xlu0 %2860
        %v2862 = vmul.f32 %v2861, %v1648
        %v2863 = vsub.f32 %v2857, %v2862
        %v2864 = vmul.f32 %v2863, %v2863
        %2865 = vadd.xlane.f32.xlu0 %v2864
        %v2866 = vpop.xlane.xlu0 %2865
        %v2867 = vmul.f32 %v2866, %v1648
        %v2868 = vadd.f32 %v2867, 1e-05
        %v2869 = vrsqrt.pop %v2868
        %v2870 = vmul.f32 %v2863, %v2869
        %v2872 = vlaneseq
        %v2873 = vshrl.u32 %v2872, 7
        %v2874 = vsub.s32 0, %v2873
        %v2875 = vrot.slane %v2858, %v2874
        %v2877 = vmul.f32 %v2870, %v2875
        %v2879 = vlaneseq
        %v2880 = vshrl.u32 %v2879, 7
        %v2881 = vsub.s32 0, %v2880
        %v2882 = vrot.slane %v2859, %v2881
        %v2884 = vadd.f32 %v2877, %v2882
        %v2885 = vpack.c.bf16 %v2884, %v2884
        %v2886 = vld [vmem:[%s23] sm:$0xff]
        %v2887 = vld [vmem:[%s23 + $0x8] sm:$0xff]
        %v2888 = vld [vmem:[%s23 + $0x10] sm:$0xff]
        %v2889 = vld [vmem:[%s23 + $0x18] sm:$0xff]
        %v2890 = vld [vmem:[%s23 + $0x20] sm:$0xff]
        %v2891 = vld [vmem:[%s23 + $0x28] sm:$0xff]
        %v2892 = vld [vmem:[%s23 + $0x30] sm:$0xff]
        %v2893 = vld [vmem:[%s23 + $0x38] sm:$0xff]
        %v2894 = vld [vmem:[%s23 + $0x40] sm:$0xff]
        %v2895 = vld [vmem:[%s23 + $0x48] sm:$0xff]
        %v2896 = vld [vmem:[%s23 + $0x50] sm:$0xff]
        %v2897 = vld [vmem:[%s23 + $0x58] sm:$0xff]
        %v2898 = vld [vmem:[%s23 + $0x60] sm:$0xff]
        %v2899 = vld [vmem:[%s23 + $0x68] sm:$0xff]
        %v2900 = vld [vmem:[%s23 + $0x70] sm:$0xff]
        %v2901 = vld [vmem:[%s23 + $0x78] sm:$0xff]
        %v2902 = vld [vmem:[%s23 + $0x80] sm:$0xff]
        %v2903 = vld [vmem:[%s23 + $0x88] sm:$0xff]
        %v2904 = vld [vmem:[%s23 + $0x90] sm:$0xff]
        %v2905 = vld [vmem:[%s23 + $0x98] sm:$0xff]
        %v2906 = vld [vmem:[%s23 + $0xa0] sm:$0xff]
        %v2907 = vld [vmem:[%s23 + $0xa8] sm:$0xff]
        %v2908 = vld [vmem:[%s23 + $0xb0] sm:$0xff]
        %v2909 = vld [vmem:[%s23 + $0xb8] sm:$0xff]
        %v2910 = vld [vmem:[%s23 + $0xc0] sm:$0xff]
        %v2911 = vld [vmem:[%s23 + $0xc8] sm:$0xff]
        %v2912 = vld [vmem:[%s23 + $0xd0] sm:$0xff]
        %v2913 = vld [vmem:[%s23 + $0xd8] sm:$0xff]
        %v2914 = vld [vmem:[%s23 + $0xe0] sm:$0xff]
        %v2915 = vld [vmem:[%s23 + $0xe8] sm:$0xff]
        %v2916 = vld [vmem:[%s23 + $0xf0] sm:$0xff]
        %v2917 = vld [vmem:[%s23 + $0xf8] sm:$0xff]
        %v2918 = vld [vmem:[%s24] sm:$0xf]
        %v2920 = vlaneseq
        %v2921 = vshrl.u32 %v2920, 7
        %v2922 = vsub.s32 0, %v2921
        %v2923 = vrot.slane %v2918, %v2922
        %v2924 = vlaneseq
        %v2925 = vshrl.u32 %v2924, 7
        %v2926 = vsub.s32 1, %v2925
        %v2927 = vrot.slane %v2918, %v2926
        %v2928 = vlaneseq
        %v2929 = vshrl.u32 %v2928, 7
        %v2930 = vsub.s32 2, %v2929
        %v2931 = vrot.slane %v2918, %v2930
        %v2932 = vlaneseq
        %v2933 = vshrl.u32 %v2932, 7
        %v2934 = vsub.s32 3, %v2933
        %v2935 = vrot.slane %v2918, %v2934
        %v2972 = vunpack.c.l.b16 %v2886
        %v2973 = vunpack.c.h.b16 %v2886
        %v2974 = vunpack.c.l.b16 %v2887
        %v2975 = vunpack.c.h.b16 %v2887
        %v2976 = vunpack.c.l.b16 %v2888
        %v2977 = vunpack.c.h.b16 %v2888
        %v2978 = vunpack.c.l.b16 %v2889
        %v2979 = vunpack.c.h.b16 %v2889
        %v2980 = vunpack.c.l.b16 %v2890
        %v2981 = vunpack.c.h.b16 %v2890
        %v2982 = vunpack.c.l.b16 %v2891
        %v2983 = vunpack.c.h.b16 %v2891
        %v2984 = vunpack.c.l.b16 %v2892
        %v2985 = vunpack.c.h.b16 %v2892
        %v2986 = vunpack.c.l.b16 %v2893
        %v2987 = vunpack.c.h.b16 %v2893
        %v2988 = vunpack.c.l.b16 %v2894
        %v2989 = vunpack.c.h.b16 %v2894
        %v2990 = vunpack.c.l.b16 %v2895
        %v2991 = vunpack.c.h.b16 %v2895
        %v2992 = vunpack.c.l.b16 %v2896
        %v2993 = vunpack.c.h.b16 %v2896
        %v2994 = vunpack.c.l.b16 %v2897
        %v2995 = vunpack.c.h.b16 %v2897
        %v2996 = vunpack.c.l.b16 %v2898
        %v2997 = vunpack.c.h.b16 %v2898
        %v2998 = vunpack.c.l.b16 %v2899
        %v2999 = vunpack.c.h.b16 %v2899
        %v3000 = vunpack.c.l.b16 %v2900
        %v3001 = vunpack.c.h.b16 %v2900
        %v3002 = vunpack.c.l.b16 %v2901
        %v3003 = vunpack.c.h.b16 %v2901
        %v3004 = vunpack.c.l.b16 %v2902
        %v3005 = vunpack.c.h.b16 %v2902
        %v3006 = vunpack.c.l.b16 %v2903
        %v3007 = vunpack.c.h.b16 %v2903
        %v3008 = vunpack.c.l.b16 %v2904
        %v3009 = vunpack.c.h.b16 %v2904
        %v3010 = vunpack.c.l.b16 %v2905
        %v3011 = vunpack.c.h.b16 %v2905
        %v3012 = vunpack.c.l.b16 %v2906
        %v3013 = vunpack.c.h.b16 %v2906
        %v3014 = vunpack.c.l.b16 %v2907
        %v3015 = vunpack.c.h.b16 %v2907
        %v3016 = vunpack.c.l.b16 %v2908
        %v3017 = vunpack.c.h.b16 %v2908
        %v3018 = vunpack.c.l.b16 %v2909
        %v3019 = vunpack.c.h.b16 %v2909
        %v3020 = vunpack.c.l.b16 %v2910
        %v3021 = vunpack.c.h.b16 %v2910
        %v3022 = vunpack.c.l.b16 %v2911
        %v3023 = vunpack.c.h.b16 %v2911
        %v3024 = vunpack.c.l.b16 %v2912
        %v3025 = vunpack.c.h.b16 %v2912
        %v3026 = vunpack.c.l.b16 %v2913
        %v3027 = vunpack.c.h.b16 %v2913
        %v3028 = vunpack.c.l.b16 %v2914
        %v3029 = vunpack.c.h.b16 %v2914
        %v3030 = vunpack.c.l.b16 %v2915
        %v3031 = vunpack.c.h.b16 %v2915
        %v3032 = vunpack.c.l.b16 %v2916
        %v3033 = vunpack.c.h.b16 %v2916
        %v3034 = vunpack.c.l.b16 %v2917
        %v3035 = vunpack.c.h.b16 %v2917
        %v3036 = vpack.c.b16 %v2976, %v2972
        %v3037 = vpack.c.b16 %v2977, %v2973
        %v3038 = vpack.c.b16 %v2978, %v2974
        %v3039 = vpack.c.b16 %v2979, %v2975
        %v3040 = vpack.c.b16 %v2984, %v2980
        %v3041 = vpack.c.b16 %v2985, %v2981
        %v3042 = vpack.c.b16 %v2986, %v2982
        %v3043 = vpack.c.b16 %v2987, %v2983
        %v3044 = vpack.c.b16 %v2992, %v2988
        %v3045 = vpack.c.b16 %v2993, %v2989
        %v3046 = vpack.c.b16 %v2994, %v2990
        %v3047 = vpack.c.b16 %v2995, %v2991
        %v3048 = vpack.c.b16 %v3000, %v2996
        %v3049 = vpack.c.b16 %v3001, %v2997
        %v3050 = vpack.c.b16 %v3002, %v2998
        %v3051 = vpack.c.b16 %v3003, %v2999
        %v3052 = vpack.c.b16 %v3008, %v3004
        %v3053 = vpack.c.b16 %v3009, %v3005
        %v3054 = vpack.c.b16 %v3010, %v3006
        %v3055 = vpack.c.b16 %v3011, %v3007
        %v3056 = vpack.c.b16 %v3016, %v3012
        %v3057 = vpack.c.b16 %v3017, %v3013
        %v3058 = vpack.c.b16 %v3018, %v3014
        %v3059 = vpack.c.b16 %v3019, %v3015
        %v3060 = vpack.c.b16 %v3024, %v3020
        %v3061 = vpack.c.b16 %v3025, %v3021
        %v3062 = vpack.c.b16 %v3026, %v3022
        %v3063 = vpack.c.b16 %v3027, %v3023
        %v3064 = vpack.c.b16 %v3032, %v3028
        %v3065 = vpack.c.b16 %v3033, %v3029
        %v3066 = vpack.c.b16 %v3034, %v3030
        %v3067 = vpack.c.b16 %v3035, %v3031
        %3100 = vmatprep.subr.bf16.mxu0 %v3065
        %3101 = vmatpush1.bf16.msra.mxu0 %v3064
        %3102 = vmatprep.subr.bf16.mxu0 %v3061
        %3103 = vmatpush1.bf16.msra.mxu0 %v3060
        %3104 = vmatprep.subr.bf16.mxu0 %v3057
        %3105 = vmatpush1.bf16.msra.mxu0 %v3056
        %3106 = vmatprep.subr.bf16.mxu0 %v3053
        %3107 = vmatpush1.bf16.msra.mxu0 %v3052
        %3108 = vmatprep.subr.bf16.mxu0 %v3049
        %3109 = vmatpush1.bf16.msra.mxu0 %v3048
        %3110 = vmatprep.subr.bf16.mxu0 %v3045
        %3111 = vmatpush1.bf16.msra.mxu0 %v3044
        %3112 = vmatprep.subr.bf16.mxu0 %v3041
        %3113 = vmatpush1.bf16.msra.mxu0 %v3040
        %3114 = vmatprep.subr.bf16.mxu0 %v3037
        %3115 = vmatpush1.bf16.msra.mxu0 %v3036
        %3116 = vmatprep.subr.bf16.mxu0 0
        %3117 = vmatpush2.bf16.msra.mxu0 0
        %3118 = vmatprep.subr.bf16.mxu0 0
        %3119 = vmatpush2.bf16.msra.mxu0 0
        %3120 = vmatprep.subr.bf16.mxu0 0
        %3121 = vmatpush2.bf16.msra.mxu0 0
        %3122 = vmatprep.subr.bf16.mxu0 0
        %3123 = vmatpush2.bf16.msra.mxu0 0
        %3124 = vmatprep.subr.bf16.mxu0 0
        %3125 = vmatpush2.bf16.msra.mxu0 0
        %3126 = vmatprep.subr.bf16.mxu0 0
        %3127 = vmatpush2.bf16.msra.mxu0 0
        %3128 = vmatprep.subr.bf16.mxu0 0
        %3129 = vmatpush2.bf16.msra.mxu0 0
        %3130 = vmatprep.subr.bf16.mxu0 0
        %3131 = vmatpush2.bf16.msra.mxu0 0
        %3132 = vmatprep.mubr.bf16.mxu0 0
        %3133 = vmatmul.mubr.bf16.gmra.mxu0 %v2885
        %v3134 = vpop.f32.mrf.mxu0
        %v3135 = vadd.f32 %v2923, %v3134
        %v3136 = vpop.f32.mrf.mxu0
        %v3137 = vadd.f32 %v2927, %v3136
        %v3138 = vpop.f32.mrf.mxu0
        %v3139 = vpop.f32.mrf.mxu0
        %3140 = vdwg.mxu0
        %3141 = vmatprep.subr.bf16.mxu0 %v3067
        %3142 = vmatpush1.bf16.msra.mxu0 %v3066
        %3143 = vmatprep.subr.bf16.mxu0 %v3063
        %3144 = vmatpush1.bf16.msra.mxu0 %v3062
        %3145 = vmatprep.subr.bf16.mxu0 %v3059
        %3146 = vmatpush1.bf16.msra.mxu0 %v3058
        %3147 = vmatprep.subr.bf16.mxu0 %v3055
        %3148 = vmatpush1.bf16.msra.mxu0 %v3054
        %3149 = vmatprep.subr.bf16.mxu0 %v3051
        %3150 = vmatpush1.bf16.msra.mxu0 %v3050
        %3151 = vmatprep.subr.bf16.mxu0 %v3047
        %3152 = vmatpush1.bf16.msra.mxu0 %v3046
        %3153 = vmatprep.subr.bf16.mxu0 %v3043
        %3154 = vmatpush1.bf16.msra.mxu0 %v3042
        %3155 = vmatprep.subr.bf16.mxu0 %v3039
        %3156 = vmatpush1.bf16.msra.mxu0 %v3038
        %3157 = vmatprep.subr.bf16.mxu0 0
        %3158 = vmatpush2.bf16.msra.mxu0 0
        %3159 = vmatprep.subr.bf16.mxu0 0
        %3160 = vmatpush2.bf16.msra.mxu0 0
        %3161 = vmatprep.subr.bf16.mxu0 0
        %3162 = vmatpush2.bf16.msra.mxu0 0
        %3163 = vmatprep.subr.bf16.mxu0 0
        %3164 = vmatpush2.bf16.msra.mxu0 0
        %3165 = vmatprep.subr.bf16.mxu0 0
        %3166 = vmatpush2.bf16.msra.mxu0 0
        %3167 = vmatprep.subr.bf16.mxu0 0
        %3168 = vmatpush2.bf16.msra.mxu0 0
        %3169 = vmatprep.subr.bf16.mxu0 0
        %3170 = vmatpush2.bf16.msra.mxu0 0
        %3171 = vmatprep.subr.bf16.mxu0 0
        %3172 = vmatpush2.bf16.msra.mxu0 0
        %3173 = vmatprep.mubr.bf16.mxu0 0
        %3174 = vmatmul.mubr.bf16.gmra.mxu0 %v2885
        %v3175 = vpop.f32.mrf.mxu0
        %v3176 = vadd.f32 %v2931, %v3175
        %v3177 = vpop.f32.mrf.mxu0
        %v3178 = vadd.f32 %v2935, %v3177
        %v3179 = vpop.f32.mrf.mxu0
        %v3180 = vpop.f32.mrf.mxu0
        %3181 = vdwg.mxu0
        %3182 = vst [vmem:[%s781] sm:$0xff] %v3135
        %3183 = vst [vmem:[%s781 + $0x8] sm:$0xff] %v3137
        %3184 = vst [vmem:[%s781 + $0x10] sm:$0xff] %v3176
        %3185 = vst [vmem:[%s781 + $0x18] sm:$0xff] %v3178
        %s3186 = sand.u32 %s587, 1
        %s3187 = scalar_lea.sflag [#allocation3], %s3186
        %s3188 = sand.u32 %s587, 1
        %s3189 = smul.addr %s3188, 32
        %s3190 = scalar_lea.vmem [#allocation2], %s3189
        // Predicated region
        $region121: #{image_caption_forward.3} parent=119 // pred_check
          %p3191 = pneg %p597
        $region122: #{image_caption_forward.3} parent=119 // pred_check_branch
          %3193 = sbr.rel (%p3191) target = $region124
        $region123: #{image_caption_forward.3} parent=119 // pred_region
          %s3195 = ssub.s32 512, 512
          %3196 = vsyncadd %s3187, %s3195
          %s3197 = smul.addr %s39, 4
          %s3198 = smul.addr %s3197, 128
          %s3199 = scalar_lea.hbm %s25, %s3198
          %s3201 = sshll.u32 %s3190, 4
          %s3202 = int_to_ptr.vmem [resolvable:$true] %s3201
          %3204 = dma.vmem_to_hbm [thread:$0]  %s3202, 512, %s3199, %s3187
        $region124: #{image_caption_forward.3} parent=119 // pred_fallthru
          _
      $region120: #{image_caption_forward.3} parent=5 // pred_fallthru
        _
      %p3205 = scmp.le.s32.totalorder 2, %s34
      // Predicated region
      $region125: #{image_caption_forward.3} parent=5 // pred_check
        %p3206 = pneg %p3205
      $region126: #{image_caption_forward.3} parent=5 // pred_check_branch
        %3208 = sbr.rel (%p3206) target = $region128
      $region127: #{image_caption_forward.3} parent=5 // pred_region
        %s3209 = ssub.s32 %s34, 2
        // Predicated region
        $region129: #{image_caption_forward.3} parent=127 // pred_check
          %p3210 = pneg %p603
        $region130: #{image_caption_forward.3} parent=127 // pred_check_branch
          %3212 = sbr.rel (%p3210) target = $region132
        $region131: #{image_caption_forward.3} parent=127 // pred_region
          %s3213 = sand.u32 %s588, 1
          %s3214 = scalar_lea.sflag [#allocation3], %s3213
          %s3215 = sand.u32 %s588, 1
          %s3216 = smul.addr %s3215, 32
          %s3217 = scalar_lea.vmem [#allocation2], %s3216
          %3218 = dma.done %s3214, 512
        $region132: #{image_caption_forward.3} parent=127 // pred_fallthru
          _
      $region128: #{image_caption_forward.3} parent=5 // pred_fallthru
        _
    $region6: #{image_caption_forward.3} parent=1 // loop_footer
      %s38 = sadd.s32 1, %s34
    $region7: #{image_caption_forward.3} parent=1 // loop_footer_branch
      %33 = sbr.rel target = $region3
    $region8: #{image_caption_forward.3} parent=1 // loop_exit
      _
    %3219 = vsyncpa [#allocation3], 1
    %s3220 = scalar_lea.sflag [#allocation3], 1
    %3221 = vsyncpa %s3220, 1

</llo_original>
